<compile_context>
chip_gen: v7x
topology: tpu7x:2x2x1
jax: 0.10.0
libtpu: 0.0.40
codegen_flags: <defaults>
</compile_context>

<pallas_src>
import jax
import jax.numpy as jnp
from jax.experimental import pallas as pl
from jax.experimental.pallas import tpu as pltpu

# Static problem dimensions (W doubles as the Linear(32, ...) feature dim).
H, W = 8, 32
C_IN, C_MID, C_OUT = 3, 32, 3
C_PAD = 128                  # conv2 / fc output channels padded to a full lane width
HW = H * W                   # 256
KH = KW = 3                  # 3x3 convs / pool, stride 1, padding 1
K1 = KH * KW * C_IN          # 27   conv1 im2col contraction
K1_PAD = 32                  # padded contraction (sublane multiple)
N_ROWS = C_OUT * H           # 24   rows of the (c, h)-ordered result
OUT_ROWS = 2 * N_ROWS        # 48   packed output slab rows


# ------------------------------------------------------------------ kernel ---

def _fused_forward_kernel(
    col1_ref,               # (HW, 32)     conv1 im2col patches (K 27 -> 32 zero padded)
    w1_ref, b1_ref,         # (32, 32), (1, 32)
    w2_ref, b2_ref,         # (288, 128), (1, 128)  conv2 weights / bias, lane padded
    wf_ref, bf_ref,         # (32, 128), (1, 128)   folded fc1@fc2@fc3 (lane padded)
    out_ref,                # (48, 128)    rows 0:24 concatenated (lanes 0:32 valid),
                            #              rows 24:48 fc output   (lanes 0:3 valid)
    c1pad_ref,              # (H+2, W+2, C_MID) scratch: -inf halo pool input
    p2pad_ref,              # (H+2, W+2, C_MID) scratch: zero halo conv2 input
):
    f32 = jnp.float32

    # ---- Conv2d(3 -> 32, 3x3, s1, p1): one MXU dot on wrapper-built patches ----
    y1 = jnp.dot(col1_ref[...], w1_ref[...], preferred_element_type=f32) + b1_ref[...]
    center = y1.reshape(H, W, C_MID)                              # (8, 32, 32)

    # ---- MaxPool2d(3, s1, p1): halo-ring-only -inf init, centre-tap accumulator ----
    c1pad_ref[0:1, :, :] = jnp.full((1, W + 2, C_MID), -jnp.inf, f32)
    c1pad_ref[H + 1:H + 2, :, :] = jnp.full((1, W + 2, C_MID), -jnp.inf, f32)
    c1pad_ref[1:1 + H, 0:1, :] = jnp.full((H, 1, C_MID), -jnp.inf, f32)
    c1pad_ref[1:1 + H, W + 1:W + 2, :] = jnp.full((H, 1, C_MID), -jnp.inf, f32)
    c1pad_ref[1:1 + H, 1:1 + W, :] = center
    pool = center                                                 # centre tap
    for kh in range(KH):
        for kw in range(KW):
            if (kh, kw) != (1, 1):
                pool = jnp.maximum(pool, c1pad_ref[kh:kh + H, kw:kw + W, :])

    # ---- features2 conv (32 -> 3, 3x3, p1), output lane-padded to 128 ----
    # Nine accumulating K=32 dots straight off the zero-halo scratch; no
    # in-kernel lane concatenation of a 288-wide im2col matrix.
    p2pad_ref[0:1, :, :] = jnp.zeros((1, W + 2, C_MID), f32)
    p2pad_ref[H + 1:H + 2, :, :] = jnp.zeros((1, W + 2, C_MID), f32)
    p2pad_ref[1:1 + H, 0:1, :] = jnp.zeros((H, 1, C_MID), f32)
    p2pad_ref[1:1 + H, W + 1:W + 2, :] = jnp.zeros((H, 1, C_MID), f32)
    p2pad_ref[1:1 + H, 1:1 + W, :] = pool

    y2 = b2_ref[...]                                              # (1,128): broadcasts
    for t in range(KH * KW):
        kh, kw = divmod(t, KW)
        patch = p2pad_ref[kh:kh + H, kw:kw + W, :].reshape(HW, C_MID)
        y2 = y2 + jnp.dot(patch, w2_ref[t * C_MID:(t + 1) * C_MID, :],
                          preferred_element_type=f32)             # (HW, 128)

    # ---- NHWC -> NCHW (split([1,1,1],1) + cat == identity) ----
    # One minor-dim transpose (XLU) + 24 tiny static slices concatenated along
    # sublanes; no per-step permutation-matrix build, no perm matmul.
    y2t = jnp.transpose(y2)                                       # (128, HW) rows=c, cols=h*W+w
    cat_ch = jnp.concatenate(
        [y2t[c:c + 1, h * W:(h + 1) * W] for c in range(C_OUT) for h in range(H)],
        axis=0)                                                   # (24, 32) rows (c, h)

    # ---- fc3(fc2(fc1(.))) folded into a single dot (exact: no activations) ----
    fc_out = jnp.dot(cat_ch, wf_ref[...], preferred_element_type=f32) + bf_ref[...]  # (24,128)

    # ---- lane-dense packed output slab (unmasked full-lane stores) ----
    out_ref[0:N_ROWS, :] = jnp.concatenate(
        [cat_ch, jnp.zeros((N_ROWS, C_PAD - W), f32)], axis=1)
    out_ref[N_ROWS:OUT_ROWS, :] = fc_out


# ----------------------------------------------------------------- wrapper ---

def _im2col_nhwc(x_nhwc, c):
    """(N,H,W,c) -> (N, H*W, 9*c) patches of a 3x3/s1/p1 conv; K order (kh,kw,cin)."""
    n = x_nhwc.shape[0]
    xp = jnp.pad(x_nhwc, ((0, 0), (1, 1), (1, 1), (0, 0)))
    return jnp.concatenate(
        [xp[:, kh:kh + H, kw:kw + W, :].reshape(n, HW, c)
         for kh in range(KH) for kw in range(KW)], axis=-1)


@jax.jit
def forward(x_nchw, params):
    N = x_nchw.shape[0]

    # Layout-only XLA-side prep (keeps lane-sparse C_IN=3 shuffles out of the kernel).
    x_nhwc = jnp.transpose(x_nchw, (0, 2, 3, 1))                          # (N,8,32,3)
    col1 = _im2col_nhwc(x_nhwc, C_IN)                                     # (N,256,27)
    col1 = jnp.pad(col1, ((0, 0), (0, 0), (0, K1_PAD - K1)))              # (N,256,32)

    # Weight prep (tiny; weights only).
    w1 = jnp.pad(params["conv1_w"].reshape(K1, C_MID), ((0, K1_PAD - K1), (0, 0)))
    b1 = params["conv1_b"].reshape(1, C_MID)
    w2 = jnp.pad(params["conv2_w"].reshape(KH * KW * C_MID, C_OUT),
                 ((0, 0), (0, C_PAD - C_OUT)))                            # (288,128)
    b2 = jnp.pad(params["conv2_b"].reshape(1, C_OUT), ((0, 0), (0, C_PAD - C_OUT)))
    # fc1 -> fc2 -> fc3 folded into one affine map (exact: no nonlinearity between).
    wf = params["fc1_w"] @ params["fc2_w"] @ params["fc3_w"]              # (32, 3)
    bf = ((params["fc1_b"] @ params["fc2_w"] + params["fc2_b"]) @ params["fc3_w"]
          + params["fc3_b"])                                              # (3,)
    wf = jnp.pad(wf, ((0, 0), (0, C_PAD - C_OUT)))                        # (32,128)
    bf = jnp.pad(bf.reshape(1, C_OUT), ((0, 0), (0, C_PAD - C_OUT)))      # (1,128)

    def mm(m, k, n):
        return 2 * m * k * n

    flops = N * (mm(HW, K1_PAD, C_MID)
                 + KH * KW * mm(HW, C_MID, C_PAD)
                 + mm(N_ROWS, W, C_PAD))
    bytes_accessed = 4 * (col1.size + w1.size + b1.size + w2.size + b2.size
                          + wf.size + bf.size + N * OUT_ROWS * C_PAD)

    out = pl.pallas_call(
        _fused_forward_kernel,
        grid=(N,),
        in_specs=[
            pl.BlockSpec((None, HW, K1_PAD), lambda n: (n, 0, 0)),        # col1 per batch elem
            pl.BlockSpec((K1_PAD, C_MID), lambda n: (0, 0)),              # w1
            pl.BlockSpec((1, C_MID), lambda n: (0, 0)),                   # b1
            pl.BlockSpec((KH * KW * C_MID, C_PAD), lambda n: (0, 0)),     # w2 (lane padded)
            pl.BlockSpec((1, C_PAD), lambda n: (0, 0)),                   # b2
            pl.BlockSpec((C_MID, C_PAD), lambda n: (0, 0)),               # folded fc weight
            pl.BlockSpec((1, C_PAD), lambda n: (0, 0)),                   # folded fc bias
        ],
        out_specs=pl.BlockSpec((None, OUT_ROWS, C_PAD), lambda n: (n, 0, 0)),
        out_shape=jax.ShapeDtypeStruct((N, OUT_ROWS, C_PAD), jnp.float32),
        scratch_shapes=[
            pltpu.VMEM((H + 2, W + 2, C_MID), jnp.float32),               # pool halo buffer
            pltpu.VMEM((H + 2, W + 2, C_MID), jnp.float32),               # conv2 halo buffer
        ],
        compiler_params=pltpu.CompilerParams(
            dimension_semantics=("parallel",)),
        cost_estimate=pl.CostEstimate(
            flops=flops, transcendentals=0, bytes_accessed=bytes_accessed),
    )(col1, w1, b1, w2, b2, wf, bf)

    # Free (row-major preserving) slices / reshapes on the lane-dense slab.
    concatenated = out[:, :N_ROWS, :W].reshape(N, C_OUT, H, W)
    output = out[:, N_ROWS:, :C_OUT].reshape(N, C_OUT, H, C_OUT)
    return concatenated, output


# --------------------------------------------------------------- reference ---

@jax.jit
def _reference_forward(x_nchw, p):
    """Pure-JAX reference (HIGHEST precision) of the same forward pass."""
    hp = jax.lax.Precision.HIGHEST
    n = x_nchw.shape[0]
    x = jnp.transpose(x_nchw, (0, 2, 3, 1))                               # NHWC
    col1 = _im2col_nhwc(x, C_IN)
    y1 = (jnp.einsum('npk,kc->npc', col1, p["conv1_w"].reshape(K1, C_MID),
                     precision=hp) + p["conv1_b"]).reshape(n, H, W, C_MID)
    y1p = jnp.pad(y1, ((0, 0), (1, 1), (1, 1), (0, 0)), constant_values=-jnp.inf)
    pool = y1
    for kh in range(KH):
        for kw in range(KW):
            pool = jnp.maximum(pool, y1p[:, kh:kh + H, kw:kw + W, :])
    col2 = _im2col_nhwc(pool, C_MID)
    y2 = (jnp.einsum('npk,kc->npc', col2, p["conv2_w"].reshape(KH * KW * C_MID, C_OUT),
                     precision=hp) + p["conv2_b"]).reshape(n, H, W, C_OUT)
    cat = jnp.transpose(y2, (0, 3, 1, 2))                                 # NCHW == concatenated
    h1 = jnp.einsum('nchw,wi->nchi', cat, p["fc1_w"], precision=hp) + p["fc1_b"]
    h2 = jnp.einsum('nchw,wi->nchi', h1, p["fc2_w"], precision=hp) + p["fc2_b"]
    out = jnp.einsum('nchw,wi->nchi', h2, p["fc3_w"], precision=hp) + p["fc3_b"]
    return cat, out


# ------------------------------------------------------------------- setup ---

def init_params(key):
    # NOTE: conv weights stored HWIO and fc weights stored (in, out); a real
    # PyTorch checkpoint (OIHW / (out,in)) would need a transpose when loading.
    ks = jax.random.split(key, 10)

    def u(k, shape, fan_in):
        bound = 1.0 / (fan_in ** 0.5)
        return jax.random.uniform(k, shape, jnp.float32, -bound, bound)

    return {
        "conv1_w": u(ks[0], (KH, KW, C_IN, C_MID), C_IN * KH * KW),
        "conv1_b": u(ks[1], (C_MID,), C_IN * KH * KW),
        "conv2_w": u(ks[2], (KH, KW, C_MID, C_OUT), C_MID * KH * KW),
        "conv2_b": u(ks[3], (C_OUT,), C_MID * KH * KW),
        "fc1_w":   u(ks[4], (W, 32), W),
        "fc1_b":   u(ks[5], (32,), W),
        "fc2_w":   u(ks[6], (32, 32), 32),
        "fc2_b":   u(ks[7], (32,), 32),
        "fc3_w":   u(ks[8], (32, C_OUT), 32),
        "fc3_b":   u(ks[9], (C_OUT,), 32),
    }


if __name__ == "__main__":
    key = jax.random.PRNGKey(0)
    pkey, xkey = jax.random.split(key)
    params = init_params(pkey)

    # Small input: batch=2, channels=3, H=8, W=32 (W=32 so Linear(32,...) applies).
    x1 = jax.random.normal(xkey, (2, C_IN, H, W), jnp.float32)

    concatenated, output = forward(x1, params)
    jax.block_until_ready((concatenated, output))

    assert concatenated.shape == (2, C_OUT, H, W)
    assert output.shape == (2, C_OUT, H, C_OUT)
    assert bool(jnp.isfinite(concatenated).all())
    assert bool(jnp.isfinite(output).all())

    # Loose tolerance: robust to MXU f32 multi-pass rounding vs HIGHEST reference,
    # still catches any indexing / ordering bug (those give O(1) errors).
    ref_cat, ref_out = _reference_forward(x1, params)
    assert bool(jnp.allclose(concatenated, ref_cat, atol=2e-2, rtol=2e-2))
    assert bool(jnp.allclose(output, ref_out, atol=2e-2, rtol=2e-2))

    print("KERNEL_OK")
</pallas_src>

<mosaic_0001>
module attributes {stable_mosaic.version = 11 : i64} {
  func.func @_fused_forward_kernel(%arg0: i32, %arg1: memref<1x256x32xf32, #tpu.memory_space<vmem>>, %arg2: memref<32x32xf32, #tpu.memory_space<vmem>>, %arg3: memref<1x32xf32, #tpu.memory_space<vmem>>, %arg4: memref<288x128xf32, #tpu.memory_space<vmem>>, %arg5: memref<1x128xf32, #tpu.memory_space<vmem>>, %arg6: memref<32x128xf32, #tpu.memory_space<vmem>>, %arg7: memref<1x128xf32, #tpu.memory_space<vmem>>, %arg8: memref<1x48x128xf32, #tpu.memory_space<vmem>>, %arg9: memref<10x34x32xf32, #tpu.memory_space<vmem>>, %arg10: memref<10x34x32xf32, #tpu.memory_space<vmem>>) attributes {dimension_semantics = [#tpu.dimension_semantics<parallel>], iteration_bounds = array<i64: 2>, scalar_prefetch = 0 : i64, scratch_operands = 2 : i64, tpu.core_type = #tpu.core_type<tc>, window_params = [{transform_indices = @transform_0, window_bounds = array<i64: 1, 256, 32>}, {pipeline_mode = #tpu.pipeline_mode<synchronous>, transform_indices = @transform_1, window_bounds = array<i64: 32, 32>}, {pipeline_mode = #tpu.pipeline_mode<synchronous>, transform_indices = @transform_2, window_bounds = array<i64: 1, 32>}, {pipeline_mode = #tpu.pipeline_mode<synchronous>, transform_indices = @transform_3, window_bounds = array<i64: 288, 128>}, {pipeline_mode = #tpu.pipeline_mode<synchronous>, transform_indices = @transform_4, window_bounds = array<i64: 1, 128>}, {pipeline_mode = #tpu.pipeline_mode<synchronous>, transform_indices = @transform_5, window_bounds = array<i64: 32, 128>}, {pipeline_mode = #tpu.pipeline_mode<synchronous>, transform_indices = @transform_6, window_bounds = array<i64: 1, 128>}, {transform_indices = @transform_7, window_bounds = array<i64: 1, 48, 128>}]} {
    %c0 = arith.constant 0 : index
    %c0_0 = arith.constant 0 : index
    %c0_1 = arith.constant 0 : index
    %0 = vector.load %arg1[%c0, %c0_0, %c0_1] : memref<1x256x32xf32, #tpu.memory_space<vmem>>, vector<1x256x32xf32>
    %1 = vector.shape_cast %0 : vector<1x256x32xf32> to vector<256x32xf32>
    %c0_2 = arith.constant 0 : index
    %c0_3 = arith.constant 0 : index
    %2 = vector.load %arg2[%c0_2, %c0_3] : memref<32x32xf32, #tpu.memory_space<vmem>>, vector<32x32xf32>
    %cst = arith.constant dense<0.000000e+00> : vector<256x32xf32>
    %3 = tpu.matmul %1, %2, %cst {dimension_numbers = #tpu.dot_dimension_numbers<[1], [0], [0], [1], [0, 0, 1, 1], [], []>} : vector<256x32xf32>, vector<32x32xf32>, vector<256x32xf32> -> vector<256x32xf32>
    %c0_4 = arith.constant 0 : index
    %c0_5 = arith.constant 0 : index
    %4 = vector.load %arg3[%c0_4, %c0_5] : memref<1x32xf32, #tpu.memory_space<vmem>>, vector<1x32xf32>
    %5 = vector.broadcast %4 : vector<1x32xf32> to vector<256x32xf32>
    %6 = arith.addf %3, %5 : vector<256x32xf32>
    %7 = vector.shape_cast %6 : vector<256x32xf32> to vector<8x32x32xf32>
    %cst_6 = arith.constant 0xFF800000 : f32
    %8 = vector.broadcast %cst_6 : f32 to vector<1x34x32xf32>
    %c0_7 = arith.constant 0 : index
    %c0_8 = arith.constant 0 : index
    %c0_9 = arith.constant 0 : index
    %9 = vector.load %arg9[%c0_7, %c0_8, %c0_9] : memref<10x34x32xf32, #tpu.memory_space<vmem>>, vector<1x34x32xf32>
    tpu.vector_store %arg9[%c0_7, %c0_8, %c0_9], %8 {strides = array<i32>} : memref<10x34x32xf32, #tpu.memory_space<vmem>>, vector<1x34x32xf32>,
    %cst_10 = arith.constant 0xFF800000 : f32
    %10 = vector.broadcast %cst_10 : f32 to vector<1x34x32xf32>
    %c9 = arith.constant 9 : index
    %c0_11 = arith.constant 0 : index
    %c0_12 = arith.constant 0 : index
    %11 = vector.load %arg9[%c9, %c0_11, %c0_12] : memref<10x34x32xf32, #tpu.memory_space<vmem>>, vector<1x34x32xf32>
    tpu.vector_store %arg9[%c9, %c0_11, %c0_12], %10 {strides = array<i32>} : memref<10x34x32xf32, #tpu.memory_space<vmem>>, vector<1x34x32xf32>,
    %cst_13 = arith.constant 0xFF800000 : f32
    %12 = vector.broadcast %cst_13 : f32 to vector<8x1x32xf32>
    %c1 = arith.constant 1 : index
    %c0_14 = arith.constant 0 : index
    %c0_15 = arith.constant 0 : index
    %13 = vector.load %arg9[%c1, %c0_14, %c0_15] : memref<10x34x32xf32, #tpu.memory_space<vmem>>, vector<8x1x32xf32>
    tpu.vector_store %arg9[%c1, %c0_14, %c0_15], %12 {strides = array<i32>} : memref<10x34x32xf32, #tpu.memory_space<vmem>>, vector<8x1x32xf32>,
    %cst_16 = arith.constant 0xFF800000 : f32
    %14 = vector.broadcast %cst_16 : f32 to vector<8x1x32xf32>
    %c1_17 = arith.constant 1 : index
    %c33 = arith.constant 33 : index
    %c0_18 = arith.constant 0 : index
    %15 = vector.load %arg9[%c1_17, %c33, %c0_18] : memref<10x34x32xf32, #tpu.memory_space<vmem>>, vector<8x1x32xf32>
    tpu.vector_store %arg9[%c1_17, %c33, %c0_18], %14 {strides = array<i32>} : memref<10x34x32xf32, #tpu.memory_space<vmem>>, vector<8x1x32xf32>,
    %c1_19 = arith.constant 1 : index
    %c1_20 = arith.constant 1 : index
    %c0_21 = arith.constant 0 : index
    %16 = vector.load %arg9[%c1_19, %c1_20, %c0_21] : memref<10x34x32xf32, #tpu.memory_space<vmem>>, vector<8x32x32xf32>
    tpu.vector_store %arg9[%c1_19, %c1_20, %c0_21], %7 {strides = array<i32>} : memref<10x34x32xf32, #tpu.memory_space<vmem>>, vector<8x32x32xf32>,
    %c0_22 = arith.constant 0 : index
    %c0_23 = arith.constant 0 : index
    %c0_24 = arith.constant 0 : index
    %17 = vector.load %arg9[%c0_22, %c0_23, %c0_24] : memref<10x34x32xf32, #tpu.memory_space<vmem>>, vector<8x32x32xf32>
    %18 = arith.maximumf %7, %17 : vector<8x32x32xf32>
    %c0_25 = arith.constant 0 : index
    %c1_26 = arith.constant 1 : index
    %c0_27 = arith.constant 0 : index
    %19 = vector.load %arg9[%c0_25, %c1_26, %c0_27] : memref<10x34x32xf32, #tpu.memory_space<vmem>>, vector<8x32x32xf32>
    %20 = arith.maximumf %18, %19 : vector<8x32x32xf32>
    %c0_28 = arith.constant 0 : index
    %c2 = arith.constant 2 : index
    %c0_29 = arith.constant 0 : index
    %21 = vector.load %arg9[%c0_28, %c2, %c0_29] : memref<10x34x32xf32, #tpu.memory_space<vmem>>, vector<8x32x32xf32>
    %22 = arith.maximumf %20, %21 : vector<8x32x32xf32>
    %c1_30 = arith.constant 1 : index
    %c0_31 = arith.constant 0 : index
    %c0_32 = arith.constant 0 : index
    %23 = vector.load %arg9[%c1_30, %c0_31, %c0_32] : memref<10x34x32xf32, #tpu.memory_space<vmem>>, vector<8x32x32xf32>
    %24 = arith.maximumf %22, %23 : vector<8x32x32xf32>
    %c1_33 = arith.constant 1 : index
    %c2_34 = arith.constant 2 : index
    %c0_35 = arith.constant 0 : index
    %25 = vector.load %arg9[%c1_33, %c2_34, %c0_35] : memref<10x34x32xf32, #tpu.memory_space<vmem>>, vector<8x32x32xf32>
    %26 = arith.maximumf %24, %25 : vector<8x32x32xf32>
    %c2_36 = arith.constant 2 : index
    %c0_37 = arith.constant 0 : index
    %c0_38 = arith.constant 0 : index
    %27 = vector.load %arg9[%c2_36, %c0_37, %c0_38] : memref<10x34x32xf32, #tpu.memory_space<vmem>>, vector<8x32x32xf32>
    %28 = arith.maximumf %26, %27 : vector<8x32x32xf32>
    %c2_39 = arith.constant 2 : index
    %c1_40 = arith.constant 1 : index
    %c0_41 = arith.constant 0 : index
    %29 = vector.load %arg9[%c2_39, %c1_40, %c0_41] : memref<10x34x32xf32, #tpu.memory_space<vmem>>, vector<8x32x32xf32>
    %30 = arith.maximumf %28, %29 : vector<8x32x32xf32>
    %c2_42 = arith.constant 2 : index
    %c2_43 = arith.constant 2 : index
    %c0_44 = arith.constant 0 : index
    %31 = vector.load %arg9[%c2_42, %c2_43, %c0_44] : memref<10x34x32xf32, #tpu.memory_space<vmem>>, vector<8x32x32xf32>
    %32 = arith.maximumf %30, %31 : vector<8x32x32xf32>
    %cst_45 = arith.constant 0.000000e+00 : f32
    %33 = vector.broadcast %cst_45 : f32 to vector<1x34x32xf32>
    %c0_46 = arith.constant 0 : index
    %c0_47 = arith.constant 0 : index
    %c0_48 = arith.constant 0 : index
    %34 = vector.load %arg10[%c0_46, %c0_47, %c0_48] : memref<10x34x32xf32, #tpu.memory_space<vmem>>, vector<1x34x32xf32>
    tpu.vector_store %arg10[%c0_46, %c0_47, %c0_48], %33 {strides = array<i32>} : memref<10x34x32xf32, #tpu.memory_space<vmem>>, vector<1x34x32xf32>,
    %cst_49 = arith.constant 0.000000e+00 : f32
    %35 = vector.broadcast %cst_49 : f32 to vector<1x34x32xf32>
    %c9_50 = arith.constant 9 : index
    %c0_51 = arith.constant 0 : index
    %c0_52 = arith.constant 0 : index
    %36 = vector.load %arg10[%c9_50, %c0_51, %c0_52] : memref<10x34x32xf32, #tpu.memory_space<vmem>>, vector<1x34x32xf32>
    tpu.vector_store %arg10[%c9_50, %c0_51, %c0_52], %35 {strides = array<i32>} : memref<10x34x32xf32, #tpu.memory_space<vmem>>, vector<1x34x32xf32>,
    %cst_53 = arith.constant 0.000000e+00 : f32
    %37 = vector.broadcast %cst_53 : f32 to vector<8x1x32xf32>
    %c1_54 = arith.constant 1 : index
    %c0_55 = arith.constant 0 : index
    %c0_56 = arith.constant 0 : index
    %38 = vector.load %arg10[%c1_54, %c0_55, %c0_56] : memref<10x34x32xf32, #tpu.memory_space<vmem>>, vector<8x1x32xf32>
    tpu.vector_store %arg10[%c1_54, %c0_55, %c0_56], %37 {strides = array<i32>} : memref<10x34x32xf32, #tpu.memory_space<vmem>>, vector<8x1x32xf32>,
    %cst_57 = arith.constant 0.000000e+00 : f32
    %39 = vector.broadcast %cst_57 : f32 to vector<8x1x32xf32>
    %c1_58 = arith.constant 1 : index
    %c33_59 = arith.constant 33 : index
    %c0_60 = arith.constant 0 : index
    %40 = vector.load %arg10[%c1_58, %c33_59, %c0_60] : memref<10x34x32xf32, #tpu.memory_space<vmem>>, vector<8x1x32xf32>
    tpu.vector_store %arg10[%c1_58, %c33_59, %c0_60], %39 {strides = array<i32>} : memref<10x34x32xf32, #tpu.memory_space<vmem>>, vector<8x1x32xf32>,
    %c1_61 = arith.constant 1 : index
    %c1_62 = arith.constant 1 : index
    %c0_63 = arith.constant 0 : index
    %41 = vector.load %arg10[%c1_61, %c1_62, %c0_63] : memref<10x34x32xf32, #tpu.memory_space<vmem>>, vector<8x32x32xf32>
    tpu.vector_store %arg10[%c1_61, %c1_62, %c0_63], %32 {strides = array<i32>} : memref<10x34x32xf32, #tpu.memory_space<vmem>>, vector<8x32x32xf32>,
    %c0_64 = arith.constant 0 : index
    %c0_65 = arith.constant 0 : index
    %42 = vector.load %arg5[%c0_64, %c0_65] : memref<1x128xf32, #tpu.memory_space<vmem>>, vector<1x128xf32>
    %c0_66 = arith.constant 0 : index
    %c0_67 = arith.constant 0 : index
    %c0_68 = arith.constant 0 : index
    %43 = vector.load %arg10[%c0_66, %c0_67, %c0_68] : memref<10x34x32xf32, #tpu.memory_space<vmem>>, vector<8x32x32xf32>
    %44 = vector.shape_cast %43 : vector<8x32x32xf32> to vector<256x32xf32>
    %c0_69 = arith.constant 0 : index
    %c0_70 = arith.constant 0 : index
    %45 = vector.load %arg4[%c0_69, %c0_70] : memref<288x128xf32, #tpu.memory_space<vmem>>, vector<32x128xf32>
    %cst_71 = arith.constant dense<0.000000e+00> : vector<256x128xf32>
    %46 = tpu.matmul %44, %45, %cst_71 {dimension_numbers = #tpu.dot_dimension_numbers<[1], [0], [0], [1], [0, 0, 1, 1], [], []>} : vector<256x32xf32>, vector<32x128xf32>, vector<256x128xf32> -> vector<256x128xf32>
    %47 = vector.broadcast %42 : vector<1x128xf32> to vector<256x128xf32>
    %48 = arith.addf %47, %46 : vector<256x128xf32>
    %c0_72 = arith.constant 0 : index
    %c1_73 = arith.constant 1 : index
    %c0_74 = arith.constant 0 : index
    %49 = vector.load %arg10[%c0_72, %c1_73, %c0_74] : memref<10x34x32xf32, #tpu.memory_space<vmem>>, vector<8x32x32xf32>
    %50 = vector.shape_cast %49 : vector<8x32x32xf32> to vector<256x32xf32>
    %c32 = arith.constant 32 : index
    %c0_75 = arith.constant 0 : index
    %51 = vector.load %arg4[%c32, %c0_75] : memref<288x128xf32, #tpu.memory_space<vmem>>, vector<32x128xf32>
    %cst_76 = arith.constant dense<0.000000e+00> : vector<256x128xf32>
    %52 = tpu.matmul %50, %51, %cst_76 {dimension_numbers = #tpu.dot_dimension_numbers<[1], [0], [0], [1], [0, 0, 1, 1], [], []>} : vector<256x32xf32>, vector<32x128xf32>, vector<256x128xf32> -> vector<256x128xf32>
    %53 = arith.addf %48, %52 : vector<256x128xf32>
    %c0_77 = arith.constant 0 : index
    %c2_78 = arith.constant 2 : index
    %c0_79 = arith.constant 0 : index
    %54 = vector.load %arg10[%c0_77, %c2_78, %c0_79] : memref<10x34x32xf32, #tpu.memory_space<vmem>>, vector<8x32x32xf32>
    %55 = vector.shape_cast %54 : vector<8x32x32xf32> to vector<256x32xf32>
    %c64 = arith.constant 64 : index
    %c0_80 = arith.constant 0 : index
    %56 = vector.load %arg4[%c64, %c0_80] : memref<288x128xf32, #tpu.memory_space<vmem>>, vector<32x128xf32>
    %cst_81 = arith.constant dense<0.000000e+00> : vector<256x128xf32>
    %57 = tpu.matmul %55, %56, %cst_81 {dimension_numbers = #tpu.dot_dimension_numbers<[1], [0], [0], [1], [0, 0, 1, 1], [], []>} : vector<256x32xf32>, vector<32x128xf32>, vector<256x128xf32> -> vector<256x128xf32>
    %58 = arith.addf %53, %57 : vector<256x128xf32>
    %c1_82 = arith.constant 1 : index
    %c0_83 = arith.constant 0 : index
    %c0_84 = arith.constant 0 : index
    %59 = vector.load %arg10[%c1_82, %c0_83, %c0_84] : memref<10x34x32xf32, #tpu.memory_space<vmem>>, vector<8x32x32xf32>
    %60 = vector.shape_cast %59 : vector<8x32x32xf32> to vector<256x32xf32>
    %c96 = arith.constant 96 : index
    %c0_85 = arith.constant 0 : index
    %61 = vector.load %arg4[%c96, %c0_85] : memref<288x128xf32, #tpu.memory_space<vmem>>, vector<32x128xf32>
    %cst_86 = arith.constant dense<0.000000e+00> : vector<256x128xf32>
    %62 = tpu.matmul %60, %61, %cst_86 {dimension_numbers = #tpu.dot_dimension_numbers<[1], [0], [0], [1], [0, 0, 1, 1], [], []>} : vector<256x32xf32>, vector<32x128xf32>, vector<256x128xf32> -> vector<256x128xf32>
    %63 = arith.addf %58, %62 : vector<256x128xf32>
    %c1_87 = arith.constant 1 : index
    %c1_88 = arith.constant 1 : index
    %c0_89 = arith.constant 0 : index
    %64 = vector.load %arg10[%c1_87, %c1_88, %c0_89] : memref<10x34x32xf32, #tpu.memory_space<vmem>>, vector<8x32x32xf32>
    %65 = vector.shape_cast %64 : vector<8x32x32xf32> to vector<256x32xf32>
    %c128 = arith.constant 128 : index
    %c0_90 = arith.constant 0 : index
    %66 = vector.load %arg4[%c128, %c0_90] : memref<288x128xf32, #tpu.memory_space<vmem>>, vector<32x128xf32>
    %cst_91 = arith.constant dense<0.000000e+00> : vector<256x128xf32>
    %67 = tpu.matmul %65, %66, %cst_91 {dimension_numbers = #tpu.dot_dimension_numbers<[1], [0], [0], [1], [0, 0, 1, 1], [], []>} : vector<256x32xf32>, vector<32x128xf32>, vector<256x128xf32> -> vector<256x128xf32>
    %68 = arith.addf %63, %67 : vector<256x128xf32>
    %c1_92 = arith.constant 1 : index
    %c2_93 = arith.constant 2 : index
    %c0_94 = arith.constant 0 : index
    %69 = vector.load %arg10[%c1_92, %c2_93, %c0_94] : memref<10x34x32xf32, #tpu.memory_space<vmem>>, vector<8x32x32xf32>
    %70 = vector.shape_cast %69 : vector<8x32x32xf32> to vector<256x32xf32>
    %c160 = arith.constant 160 : index
    %c0_95 = arith.constant 0 : index
    %71 = vector.load %arg4[%c160, %c0_95] : memref<288x128xf32, #tpu.memory_space<vmem>>, vector<32x128xf32>
    %cst_96 = arith.constant dense<0.000000e+00> : vector<256x128xf32>
    %72 = tpu.matmul %70, %71, %cst_96 {dimension_numbers = #tpu.dot_dimension_numbers<[1], [0], [0], [1], [0, 0, 1, 1], [], []>} : vector<256x32xf32>, vector<32x128xf32>, vector<256x128xf32> -> vector<256x128xf32>
    %73 = arith.addf %68, %72 : vector<256x128xf32>
    %c2_97 = arith.constant 2 : index
    %c0_98 = arith.constant 0 : index
    %c0_99 = arith.constant 0 : index
    %74 = vector.load %arg10[%c2_97, %c0_98, %c0_99] : memref<10x34x32xf32, #tpu.memory_space<vmem>>, vector<8x32x32xf32>
    %75 = vector.shape_cast %74 : vector<8x32x32xf32> to vector<256x32xf32>
    %c192 = arith.constant 192 : index
    %c0_100 = arith.constant 0 : index
    %76 = vector.load %arg4[%c192, %c0_100] : memref<288x128xf32, #tpu.memory_space<vmem>>, vector<32x128xf32>
    %cst_101 = arith.constant dense<0.000000e+00> : vector<256x128xf32>
    %77 = tpu.matmul %75, %76, %cst_101 {dimension_numbers = #tpu.dot_dimension_numbers<[1], [0], [0], [1], [0, 0, 1, 1], [], []>} : vector<256x32xf32>, vector<32x128xf32>, vector<256x128xf32> -> vector<256x128xf32>
    %78 = arith.addf %73, %77 : vector<256x128xf32>
    %c2_102 = arith.constant 2 : index
    %c1_103 = arith.constant 1 : index
    %c0_104 = arith.constant 0 : index
    %79 = vector.load %arg10[%c2_102, %c1_103, %c0_104] : memref<10x34x32xf32, #tpu.memory_space<vmem>>, vector<8x32x32xf32>
    %80 = vector.shape_cast %79 : vector<8x32x32xf32> to vector<256x32xf32>
    %c224 = arith.constant 224 : index
    %c0_105 = arith.constant 0 : index
    %81 = vector.load %arg4[%c224, %c0_105] : memref<288x128xf32, #tpu.memory_space<vmem>>, vector<32x128xf32>
    %cst_106 = arith.constant dense<0.000000e+00> : vector<256x128xf32>
    %82 = tpu.matmul %80, %81, %cst_106 {dimension_numbers = #tpu.dot_dimension_numbers<[1], [0], [0], [1], [0, 0, 1, 1], [], []>} : vector<256x32xf32>, vector<32x128xf32>, vector<256x128xf32> -> vector<256x128xf32>
    %83 = arith.addf %78, %82 : vector<256x128xf32>
    %c2_107 = arith.constant 2 : index
    %c2_108 = arith.constant 2 : index
    %c0_109 = arith.constant 0 : index
    %84 = vector.load %arg10[%c2_107, %c2_108, %c0_109] : memref<10x34x32xf32, #tpu.memory_space<vmem>>, vector<8x32x32xf32>
    %85 = vector.shape_cast %84 : vector<8x32x32xf32> to vector<256x32xf32>
    %c256 = arith.constant 256 : index
    %c0_110 = arith.constant 0 : index
    %86 = vector.load %arg4[%c256, %c0_110] : memref<288x128xf32, #tpu.memory_space<vmem>>, vector<32x128xf32>
    %cst_111 = arith.constant dense<0.000000e+00> : vector<256x128xf32>
    %87 = tpu.matmul %85, %86, %cst_111 {dimension_numbers = #tpu.dot_dimension_numbers<[1], [0], [0], [1], [0, 0, 1, 1], [], []>} : vector<256x32xf32>, vector<32x128xf32>, vector<256x128xf32> -> vector<256x128xf32>
    %88 = arith.addf %83, %87 : vector<256x128xf32>
    %89 = tpu.transpose %88, [1, 0] : vector<256x128xf32> -> vector<128x256xf32>
    %90 = vector.extract_strided_slice %89 {offsets = [0, 0], sizes = [1, 32], strides = [1, 1]} : vector<128x256xf32> to vector<1x32xf32>
    %91 = vector.extract_strided_slice %89 {offsets = [0, 32], sizes = [1, 32], strides = [1, 1]} : vector<128x256xf32> to vector<1x32xf32>
    %92 = vector.extract_strided_slice %89 {offsets = [0, 64], sizes = [1, 32], strides = [1, 1]} : vector<128x256xf32> to vector<1x32xf32>
    %93 = vector.extract_strided_slice %89 {offsets = [0, 96], sizes = [1, 32], strides = [1, 1]} : vector<128x256xf32> to vector<1x32xf32>
    %94 = vector.extract_strided_slice %89 {offsets = [0, 128], sizes = [1, 32], strides = [1, 1]} : vector<128x256xf32> to vector<1x32xf32>
    %95 = vector.extract_strided_slice %89 {offsets = [0, 160], sizes = [1, 32], strides = [1, 1]} : vector<128x256xf32> to vector<1x32xf32>
    %96 = vector.extract_strided_slice %89 {offsets = [0, 192], sizes = [1, 32], strides = [1, 1]} : vector<128x256xf32> to vector<1x32xf32>
    %97 = vector.extract_strided_slice %89 {offsets = [0, 224], sizes = [1, 32], strides = [1, 1]} : vector<128x256xf32> to vector<1x32xf32>
    %98 = vector.extract_strided_slice %89 {offsets = [1, 0], sizes = [1, 32], strides = [1, 1]} : vector<128x256xf32> to vector<1x32xf32>
    %99 = vector.extract_strided_slice %89 {offsets = [1, 32], sizes = [1, 32], strides = [1, 1]} : vector<128x256xf32> to vector<1x32xf32>
    %100 = vector.extract_strided_slice %89 {offsets = [1, 64], sizes = [1, 32], strides = [1, 1]} : vector<128x256xf32> to vector<1x32xf32>
    %101 = vector.extract_strided_slice %89 {offsets = [1, 96], sizes = [1, 32], strides = [1, 1]} : vector<128x256xf32> to vector<1x32xf32>
    %102 = vector.extract_strided_slice %89 {offsets = [1, 128], sizes = [1, 32], strides = [1, 1]} : vector<128x256xf32> to vector<1x32xf32>
    %103 = vector.extract_strided_slice %89 {offsets = [1, 160], sizes = [1, 32], strides = [1, 1]} : vector<128x256xf32> to vector<1x32xf32>
    %104 = vector.extract_strided_slice %89 {offsets = [1, 192], sizes = [1, 32], strides = [1, 1]} : vector<128x256xf32> to vector<1x32xf32>
    %105 = vector.extract_strided_slice %89 {offsets = [1, 224], sizes = [1, 32], strides = [1, 1]} : vector<128x256xf32> to vector<1x32xf32>
    %106 = vector.extract_strided_slice %89 {offsets = [2, 0], sizes = [1, 32], strides = [1, 1]} : vector<128x256xf32> to vector<1x32xf32>
    %107 = vector.extract_strided_slice %89 {offsets = [2, 32], sizes = [1, 32], strides = [1, 1]} : vector<128x256xf32> to vector<1x32xf32>
    %108 = vector.extract_strided_slice %89 {offsets = [2, 64], sizes = [1, 32], strides = [1, 1]} : vector<128x256xf32> to vector<1x32xf32>
    %109 = vector.extract_strided_slice %89 {offsets = [2, 96], sizes = [1, 32], strides = [1, 1]} : vector<128x256xf32> to vector<1x32xf32>
    %110 = vector.extract_strided_slice %89 {offsets = [2, 128], sizes = [1, 32], strides = [1, 1]} : vector<128x256xf32> to vector<1x32xf32>
    %111 = vector.extract_strided_slice %89 {offsets = [2, 160], sizes = [1, 32], strides = [1, 1]} : vector<128x256xf32> to vector<1x32xf32>
    %112 = vector.extract_strided_slice %89 {offsets = [2, 192], sizes = [1, 32], strides = [1, 1]} : vector<128x256xf32> to vector<1x32xf32>
    %113 = vector.extract_strided_slice %89 {offsets = [2, 224], sizes = [1, 32], strides = [1, 1]} : vector<128x256xf32> to vector<1x32xf32>
    %114 = tpu.concatenate %90, %91, %92, %93, %94, %95, %96, %97, %98, %99, %100, %101, %102, %103, %104, %105 in 0 : vector<1x32xf32>, vector<1x32xf32>, vector<1x32xf32>, vector<1x32xf32>, vector<1x32xf32>, vector<1x32xf32>, vector<1x32xf32>, vector<1x32xf32>, vector<1x32xf32>, vector<1x32xf32>, vector<1x32xf32>, vector<1x32xf32>, vector<1x32xf32>, vector<1x32xf32>, vector<1x32xf32>, vector<1x32xf32> -> vector<16x32xf32>
    %115 = tpu.concatenate %106, %107, %108, %109, %110, %111, %112, %113 in 0 : vector<1x32xf32>, vector<1x32xf32>, vector<1x32xf32>, vector<1x32xf32>, vector<1x32xf32>, vector<1x32xf32>, vector<1x32xf32>, vector<1x32xf32> -> vector<8x32xf32>
    %116 = tpu.concatenate %114, %115 in 0 : vector<16x32xf32>, vector<8x32xf32> -> vector<24x32xf32>
    %c0_112 = arith.constant 0 : index
    %c0_113 = arith.constant 0 : index
    %117 = vector.load %arg6[%c0_112, %c0_113] : memref<32x128xf32, #tpu.memory_space<vmem>>, vector<32x128xf32>
    %cst_114 = arith.constant dense<0.000000e+00> : vector<24x128xf32>
    %118 = tpu.matmul %116, %117, %cst_114 {dimension_numbers = #tpu.dot_dimension_numbers<[1], [0], [0], [1], [0, 0, 1, 1], [], []>} : vector<24x32xf32>, vector<32x128xf32>, vector<24x128xf32> -> vector<24x128xf32>
    %c0_115 = arith.constant 0 : index
    %c0_116 = arith.constant 0 : index
    %119 = vector.load %arg7[%c0_115, %c0_116] : memref<1x128xf32, #tpu.memory_space<vmem>>, vector<1x128xf32>
    %120 = vector.broadcast %119 : vector<1x128xf32> to vector<24x128xf32>
    %121 = arith.addf %118, %120 : vector<24x128xf32>
    %cst_117 = arith.constant 0.000000e+00 : f32
    %122 = vector.broadcast %cst_117 : f32 to vector<24x96xf32>
    %123 = tpu.concatenate %116, %122 in 1 : vector<24x32xf32>, vector<24x96xf32> -> vector<24x128xf32>
    %c0_118 = arith.constant 0 : index
    %c0_119 = arith.constant 0 : index
    %c0_120 = arith.constant 0 : index
    %124 = vector.load %arg8[%c0_118, %c0_119, %c0_120] : memref<1x48x128xf32, #tpu.memory_space<vmem>>, vector<1x24x128xf32>
    %125 = vector.shape_cast %124 : vector<1x24x128xf32> to vector<24x128xf32>
    %126 = vector.shape_cast %123 : vector<24x128xf32> to vector<1x24x128xf32>
    tpu.vector_store %arg8[%c0_118, %c0_119, %c0_120], %126 {strides = array<i32>} : memref<1x48x128xf32, #tpu.memory_space<vmem>>, vector<1x24x128xf32>,
    %c0_121 = arith.constant 0 : index
    %c24 = arith.constant 24 : index
    %c0_122 = arith.constant 0 : index
    %127 = vector.load %arg8[%c0_121, %c24, %c0_122] : memref<1x48x128xf32, #tpu.memory_space<vmem>>, vector<1x24x128xf32>
    %128 = vector.shape_cast %127 : vector<1x24x128xf32> to vector<24x128xf32>
    %129 = vector.shape_cast %121 : vector<24x128xf32> to vector<1x24x128xf32>
    tpu.vector_store %arg8[%c0_121, %c24, %c0_122], %129 {strides = array<i32>} : memref<1x48x128xf32, #tpu.memory_space<vmem>>, vector<1x24x128xf32>,
    return
  }
  func.func @transform_0(%arg0: i32) -> (i32, i32, i32) {
    %c0_i32 = arith.constant 0 : i32
    %c0_i32_0 = arith.constant 0 : i32
    %c0_i32_1 = arith.constant 0 : i32
    return %arg0, %c0_i32, %c0_i32_0 : i32, i32, i32
  }
  func.func @transform_1(%arg0: i32) -> (i32, i32) {
    %c0_i32 = arith.constant 0 : i32
    %c0_i32_0 = arith.constant 0 : i32
    %c0_i32_1 = arith.constant 0 : i32
    return %c0_i32, %c0_i32_0 : i32, i32
  }
  func.func @transform_2(%arg0: i32) -> (i32, i32) {
    %c0_i32 = arith.constant 0 : i32
    %c0_i32_0 = arith.constant 0 : i32
    %c0_i32_1 = arith.constant 0 : i32
    return %c0_i32, %c0_i32_0 : i32, i32
  }
  func.func @transform_3(%arg0: i32) -> (i32, i32) {
    %c0_i32 = arith.constant 0 : i32
    %c0_i32_0 = arith.constant 0 : i32
    %c0_i32_1 = arith.constant 0 : i32
    return %c0_i32, %c0_i32_0 : i32, i32
  }
  func.func @transform_4(%arg0: i32) -> (i32, i32) {
    %c0_i32 = arith.constant 0 : i32
    %c0_i32_0 = arith.constant 0 : i32
    %c0_i32_1 = arith.constant 0 : i32
    return %c0_i32, %c0_i32_0 : i32, i32
  }
  func.func @transform_5(%arg0: i32) -> (i32, i32) {
    %c0_i32 = arith.constant 0 : i32
    %c0_i32_0 = arith.constant 0 : i32
    %c0_i32_1 = arith.constant 0 : i32
    return %c0_i32, %c0_i32_0 : i32, i32
  }
  func.func @transform_6(%arg0: i32) -> (i32, i32) {
    %c0_i32 = arith.constant 0 : i32
    %c0_i32_0 = arith.constant 0 : i32
    %c0_i32_1 = arith.constant 0 : i32
    return %c0_i32, %c0_i32_0 : i32, i32
  }
  func.func @transform_7(%arg0: i32) -> (i32, i32, i32) {
    %c0_i32 = arith.constant 0 : i32
    %c0_i32_0 = arith.constant 0 : i32
    %c0_i32_1 = arith.constant 0 : i32
    return %arg0, %c0_i32, %c0_i32_0 : i32, i32, i32
  }
}

</mosaic_0001>

<llo_original>
// kernel: forward.1
$region0: #{forward.1}
  #allocation0 [shape = 'u32[]', space=smem, size = 0x4, offset = 0x4, fixed_abs, tag = 'smem constant byte address 0x4 - core index']
  #allocation1 [shape = 'u32[144,128]{1,0:T(1,128)}', space=vmem, size = 0x12000, scoped, tag = 'internal scratch']
  #allocation2 [shape = 'f32[10,34,32]{2,1,0:T(8,128)}', space=vmem, size = 0x32000, scoped, tag = 'scratch operand']
  #allocation3 [shape = 'f32[10,34,32]{2,1,0:T(8,128)}', space=vmem, size = 0x32000, scoped, tag = 'scratch operand']
  %s0 = inlined_call_operand.vmem [shape: f32[2,256,32], index: 0, kind: input, shape index: {}]
  %s1 = inlined_call_operand.vmem [shape: f32[32,32], index: 1, kind: input, shape index: {}]
  %s2 = inlined_call_operand.vmem [shape: f32[1,32], index: 2, kind: input, shape index: {}]
  %s3 = inlined_call_operand.vmem [shape: f32[288,128], index: 3, kind: input, shape index: {}]
  %s4 = inlined_call_operand.vmem [shape: f32[1,128], index: 4, kind: input, shape index: {}]
  %s5 = inlined_call_operand.vmem [shape: f32[32,128], index: 5, kind: input, shape index: {}]
  %s6 = inlined_call_operand.vmem [shape: f32[1,128], index: 6, kind: input, shape index: {}]
  %s7 = inlined_call_operand.vmem [shape: f32[2,48,128], index: 7, kind: output, shape index: {}]
  %s8 = sld [smem:[#allocation0]]
  $region61: #{forward.1} parent=0
    _
  %s10 = ssub.s32 1, %s8
  %s11 = scalar_select 0, %s10, %s8
  loop: start=0, step=1, limit=4
  $region2: #{forward.1} parent=0 // loop_pre_header
    _
  $region3: #{forward.1} parent=0 // loop_header
    %s13 = sphi 0, %s17
    %p14 = scmp.ge.s32.totalorder %s13, 4
    %s23 = sphi 0, %s25
    %s26 = sphi 0, %s23
    %s27 = sphi 0, %s26
    %s43 = sphi 0, %s27
    %s47 = sphi 0, %s47
    %s49 = sphi 0, %s47
    %s50 = sphi 0, %s49
    %s64 = sphi 0, %s50
    %s68 = sphi 0, %s68
    %s70 = sphi 0, %s68
    %s71 = sphi 0, %s70
    %s85 = sphi 0, %s71
    %s89 = sphi 0, %s89
    %s91 = sphi 0, %s89
    %s92 = sphi 0, %s91
    %s106 = sphi 0, %s92
    %s110 = sphi 0, %s110
    %s112 = sphi 0, %s110
    %s113 = sphi 0, %s112
    %s127 = sphi 0, %s113
    %s131 = sphi 0, %s131
    %s133 = sphi 0, %s131
    %s134 = sphi 0, %s133
    %s148 = sphi 0, %s134
    %s152 = sphi 0, %s152
    %s154 = sphi 0, %s152
    %s155 = sphi 0, %s154
    %s169 = sphi 0, %s155
    %s175 = sphi 0, %s177
    %s178 = sphi 0, %s175
    %s179 = sphi 0, %s178
    %s195 = sphi 0, %s179
  $region4: #{forward.1} parent=0 // loop_header_branch
    %16 = sbr.rel (%p14) target = $region8
  $region5: #{forward.1} parent=0 // loop_body
    %s18 = ssub.s32 %s13, 1
    %s19 = ssub.s32 %s13, 2
    %s20 = sadd.s32 %s13, 1
    %s21 = ssub.s32 %s13, %s20
    %p22 = scmp.eq.s32.totalorder %s21, 0
    %s24 = sadd.s32 %s23, 1
    %s25 = scalar_select %p22, %s23, %s24
    %p28 = pneg %p22
    %p29 = scmp.eq.s32.totalorder %s13, 1
    %p30 = por %p28, %p29
    %p31 = scmp.ne.s32.totalorder %s23, %s26
    %p32 = scmp.eq.s32.totalorder %s13, 0
    %p33 = por %p31, %p32
    %p34 = scmp.ne.s32.totalorder %s23, %s26
    %p35 = scmp.eq.s32.totalorder %s18, 1
    %p36 = por %p34, %p35
    %p37 = scmp.ne.s32.totalorder %s26, %s27
    %p38 = scmp.eq.s32.totalorder %s18, 0
    %p39 = por %p37, %p38
    %p40 = scmp.ne.s32.totalorder %s26, %s27
    %p41 = scmp.eq.s32.totalorder %s19, 1
    %p42 = por %p40, %p41
    %p44 = scmp.ne.s32.totalorder %s27, %s43
    %p45 = scmp.eq.s32.totalorder %s19, 0
    %p46 = por %p44, %p45
    %s48 = sadd.s32 %s47, 1
    %p51 = scmp.eq.s32.totalorder %s13, 1
    %p52 = scmp.ne.s32.totalorder %s47, %s49
    %p53 = scmp.eq.s32.totalorder %s13, 0
    %p54 = por %p52, %p53
    %p55 = scmp.ne.s32.totalorder %s47, %s49
    %p56 = scmp.eq.s32.totalorder %s18, 1
    %p57 = por %p55, %p56
    %p58 = scmp.ne.s32.totalorder %s49, %s50
    %p59 = scmp.eq.s32.totalorder %s18, 0
    %p60 = por %p58, %p59
    %p61 = scmp.ne.s32.totalorder %s49, %s50
    %p62 = scmp.eq.s32.totalorder %s19, 1
    %p63 = por %p61, %p62
    %p65 = scmp.ne.s32.totalorder %s50, %s64
    %p66 = scmp.eq.s32.totalorder %s19, 0
    %p67 = por %p65, %p66
    %s69 = sadd.s32 %s68, 1
    %p72 = scmp.eq.s32.totalorder %s13, 1
    %p73 = scmp.ne.s32.totalorder %s68, %s70
    %p74 = scmp.eq.s32.totalorder %s13, 0
    %p75 = por %p73, %p74
    %p76 = scmp.ne.s32.totalorder %s68, %s70
    %p77 = scmp.eq.s32.totalorder %s18, 1
    %p78 = por %p76, %p77
    %p79 = scmp.ne.s32.totalorder %s70, %s71
    %p80 = scmp.eq.s32.totalorder %s18, 0
    %p81 = por %p79, %p80
    %p82 = scmp.ne.s32.totalorder %s70, %s71
    %p83 = scmp.eq.s32.totalorder %s19, 1
    %p84 = por %p82, %p83
    %p86 = scmp.ne.s32.totalorder %s71, %s85
    %p87 = scmp.eq.s32.totalorder %s19, 0
    %p88 = por %p86, %p87
    %s90 = sadd.s32 %s89, 1
    %p93 = scmp.eq.s32.totalorder %s13, 1
    %p94 = scmp.ne.s32.totalorder %s89, %s91
    %p95 = scmp.eq.s32.totalorder %s13, 0
    %p96 = por %p94, %p95
    %p97 = scmp.ne.s32.totalorder %s89, %s91
    %p98 = scmp.eq.s32.totalorder %s18, 1
    %p99 = por %p97, %p98
    %p100 = scmp.ne.s32.totalorder %s91, %s92
    %p101 = scmp.eq.s32.totalorder %s18, 0
    %p102 = por %p100, %p101
    %p103 = scmp.ne.s32.totalorder %s91, %s92
    %p104 = scmp.eq.s32.totalorder %s19, 1
    %p105 = por %p103, %p104
    %p107 = scmp.ne.s32.totalorder %s92, %s106
    %p108 = scmp.eq.s32.totalorder %s19, 0
    %p109 = por %p107, %p108
    %s111 = sadd.s32 %s110, 1
    %p114 = scmp.eq.s32.totalorder %s13, 1
    %p115 = scmp.ne.s32.totalorder %s110, %s112
    %p116 = scmp.eq.s32.totalorder %s13, 0
    %p117 = por %p115, %p116
    %p118 = scmp.ne.s32.totalorder %s110, %s112
    %p119 = scmp.eq.s32.totalorder %s18, 1
    %p120 = por %p118, %p119
    %p121 = scmp.ne.s32.totalorder %s112, %s113
    %p122 = scmp.eq.s32.totalorder %s18, 0
    %p123 = por %p121, %p122
    %p124 = scmp.ne.s32.totalorder %s112, %s113
    %p125 = scmp.eq.s32.totalorder %s19, 1
    %p126 = por %p124, %p125
    %p128 = scmp.ne.s32.totalorder %s113, %s127
    %p129 = scmp.eq.s32.totalorder %s19, 0
    %p130 = por %p128, %p129
    %s132 = sadd.s32 %s131, 1
    %p135 = scmp.eq.s32.totalorder %s13, 1
    %p136 = scmp.ne.s32.totalorder %s131, %s133
    %p137 = scmp.eq.s32.totalorder %s13, 0
    %p138 = por %p136, %p137
    %p139 = scmp.ne.s32.totalorder %s131, %s133
    %p140 = scmp.eq.s32.totalorder %s18, 1
    %p141 = por %p139, %p140
    %p142 = scmp.ne.s32.totalorder %s133, %s134
    %p143 = scmp.eq.s32.totalorder %s18, 0
    %p144 = por %p142, %p143
    %p145 = scmp.ne.s32.totalorder %s133, %s134
    %p146 = scmp.eq.s32.totalorder %s19, 1
    %p147 = por %p145, %p146
    %p149 = scmp.ne.s32.totalorder %s134, %s148
    %p150 = scmp.eq.s32.totalorder %s19, 0
    %p151 = por %p149, %p150
    %s153 = sadd.s32 %s152, 1
    %p156 = scmp.eq.s32.totalorder %s13, 1
    %p157 = scmp.ne.s32.totalorder %s152, %s154
    %p158 = scmp.eq.s32.totalorder %s13, 0
    %p159 = por %p157, %p158
    %p160 = scmp.ne.s32.totalorder %s152, %s154
    %p161 = scmp.eq.s32.totalorder %s18, 1
    %p162 = por %p160, %p161
    %p163 = scmp.ne.s32.totalorder %s154, %s155
    %p164 = scmp.eq.s32.totalorder %s18, 0
    %p165 = por %p163, %p164
    %p166 = scmp.ne.s32.totalorder %s154, %s155
    %p167 = scmp.eq.s32.totalorder %s19, 1
    %p168 = por %p166, %p167
    %p170 = scmp.ne.s32.totalorder %s155, %s169
    %p171 = scmp.eq.s32.totalorder %s19, 0
    %p172 = por %p170, %p171
    %s173 = ssub.s32 %s13, %s20
    %p174 = scmp.eq.s32.totalorder %s173, 0
    %s176 = sadd.s32 %s175, 1
    %s177 = scalar_select %p174, %s175, %s176
    %p180 = pneg %p174
    %p181 = scmp.eq.s32.totalorder %s13, 1
    %p182 = por %p180, %p181
    %p183 = scmp.ne.s32.totalorder %s175, %s178
    %p184 = scmp.eq.s32.totalorder %s13, 0
    %p185 = por %p183, %p184
    %p186 = scmp.ne.s32.totalorder %s175, %s178
    %p187 = scmp.eq.s32.totalorder %s18, 1
    %p188 = por %p186, %p187
    %p189 = scmp.ne.s32.totalorder %s178, %s179
    %p190 = scmp.eq.s32.totalorder %s18, 0
    %p191 = por %p189, %p190
    %p192 = scmp.ne.s32.totalorder %s178, %s179
    %p193 = scmp.eq.s32.totalorder %s19, 1
    %p194 = por %p192, %p193
    %p196 = scmp.ne.s32.totalorder %s179, %s195
    %p197 = scmp.eq.s32.totalorder %s19, 0
    %p198 = por %p196, %p197
    %p199 = scmp.le.s32.totalorder 1, %s13
    %p200 = scmp.lt.s32.totalorder %s13, 3
    %p201 = pnand %p199, %p200
    %p202 = pneg %p201
    // Predicated region
    $region9: #{forward.1} parent=5 // pred_check
      _
    $region10: #{forward.1} parent=5 // pred_check_branch
      %204 = sbr.rel (%p201) target = $region12
    $region11: #{forward.1} parent=5 // pred_region
      %s205 = ssub.s32 %s13, 1
      // Predicated region
      $region13: #{forward.1} parent=11 // pred_check
        %p206 = pneg %p60
      $region14: #{forward.1} parent=11 // pred_check_branch
        %208 = sbr.rel (%p206) target = $region16
      $region15: #{forward.1} parent=11 // pred_region
        _
      $region16: #{forward.1} parent=11 // pred_fallthru
        _
      // Predicated region
      $region17: #{forward.1} parent=11 // pred_check
        %p209 = pneg %p81
      $region18: #{forward.1} parent=11 // pred_check_branch
        %211 = sbr.rel (%p209) target = $region20
      $region19: #{forward.1} parent=11 // pred_region
        _
      $region20: #{forward.1} parent=11 // pred_fallthru
        _
      // Predicated region
      $region21: #{forward.1} parent=11 // pred_check
        %p212 = pneg %p102
      $region22: #{forward.1} parent=11 // pred_check_branch
        %214 = sbr.rel (%p212) target = $region24
      $region23: #{forward.1} parent=11 // pred_region
        _
      $region24: #{forward.1} parent=11 // pred_fallthru
        _
      // Predicated region
      $region25: #{forward.1} parent=11 // pred_check
        %p215 = pneg %p123
      $region26: #{forward.1} parent=11 // pred_check_branch
        %217 = sbr.rel (%p215) target = $region28
      $region27: #{forward.1} parent=11 // pred_region
        _
      $region28: #{forward.1} parent=11 // pred_fallthru
        _
      // Predicated region
      $region29: #{forward.1} parent=11 // pred_check
        %p218 = pneg %p144
      $region30: #{forward.1} parent=11 // pred_check_branch
        %220 = sbr.rel (%p218) target = $region32
      $region31: #{forward.1} parent=11 // pred_region
        _
      $region32: #{forward.1} parent=11 // pred_fallthru
        _
      // Predicated region
      $region33: #{forward.1} parent=11 // pred_check
        %p221 = pneg %p165
      $region34: #{forward.1} parent=11 // pred_check_branch
        %223 = sbr.rel (%p221) target = $region36
      $region35: #{forward.1} parent=11 // pred_region
        _
      $region36: #{forward.1} parent=11 // pred_fallthru
        _
    $region12: #{forward.1} parent=5 // pred_fallthru
      _
    %p224 = scmp.lt.s32.totalorder %s13, 2
    // Predicated region
    $region37: #{forward.1} parent=5 // pred_check
      %p225 = pneg %p224
    $region38: #{forward.1} parent=5 // pred_check_branch
      %227 = sbr.rel (%p225) target = $region40
    $region39: #{forward.1} parent=5 // pred_region
      // Predicated region
      $region41: #{forward.1} parent=39 // pred_check
        %p228 = pneg %p33
      $region42: #{forward.1} parent=39 // pred_check_branch
        %230 = sbr.rel (%p228) target = $region44
      $region43: #{forward.1} parent=39 // pred_region
        %p231 = scmp.lt.s32.totalorder %s13, 1
        %s232 = scalar_select %p231, %s13, 1
        %s233 = smul.addr %s232, 32
        %s234 = smul.addr %s233, 8
        %s235 = scalar_lea.vmem %s0, %s234
      $region44: #{forward.1} parent=39 // pred_fallthru
        _
    $region40: #{forward.1} parent=5 // pred_fallthru
      _
    %p236 = scmp.le.s32.totalorder 1, %s13
    %p237 = scmp.lt.s32.totalorder %s13, 3
    %p238 = pnand %p236, %p237
    %p239 = pneg %p238
    // Predicated region
    $region45: #{forward.1} parent=5 // pred_check
      _
    $region46: #{forward.1} parent=5 // pred_check_branch
      %241 = sbr.rel (%p238) target = $region48
    $region47: #{forward.1} parent=5 // pred_region
      %s242 = ssub.s32 %s13, 1
      %p243 = scmp.lt.s32.totalorder %s18, 1
      %s244 = scalar_select %p243, %s18, 1
      %s245 = smul.addr %s244, 32
      %s246 = smul.addr %s245, 8
      %s247 = scalar_lea.vmem %s0, %s246
      %p248 = pneg %p39
      %p249 = pneg %p36
      %p250 = pneg %p60
      %p251 = pneg %p57
      %p252 = pneg %p81
      %p253 = pneg %p78
      %p254 = pneg %p102
      %p255 = pneg %p99
      %p256 = pneg %p123
      %p257 = pneg %p120
      %p258 = pneg %p144
      %p259 = pneg %p141
      %p260 = pneg %p165
      %p261 = pneg %p162
      %p262 = pneg %p191
      %p263 = pneg %p188
      %p264 = scmp.lt.s32.totalorder %s18, 1
      %s265 = scalar_select %p264, %s18, 1
      %s266 = smul.addr %s265, 6
      %s267 = smul.addr %s266, 8
      %s268 = scalar_lea.vmem %s7, %s267
      %p269 = scmp.lt.s32.totalorder %s18, 1
      %s270 = scalar_select %p269, %s18, 1
      %s271 = smul.addr %s270, 32
      %s272 = smul.addr %s271, 8
      %s273 = scalar_lea.vmem %s0, %s272
      %p274 = scmp.lt.s32.totalorder %s18, 1
      %s275 = scalar_select %p274, %s18, 1
      %s276 = smul.addr %s275, 6
      %s277 = smul.addr %s276, 8
      %s278 = scalar_lea.vmem %s7, %s277
      %v279 = vld [vmem:[%s273] sm:$0xff]
      %v280 = vld [vmem:[%s273 + $0x8] sm:$0xff]
      %v281 = vld [vmem:[%s273 + $0x10] sm:$0xff]
      %v282 = vld [vmem:[%s273 + $0x18] sm:$0xff]
      %v283 = vld [vmem:[%s273 + $0x20] sm:$0xff]
      %v284 = vld [vmem:[%s273 + $0x28] sm:$0xff]
      %v285 = vld [vmem:[%s273 + $0x30] sm:$0xff]
      %v286 = vld [vmem:[%s273 + $0x38] sm:$0xff]
      %v287 = vld [vmem:[%s273 + $0x40] sm:$0xff]
      %v288 = vld [vmem:[%s273 + $0x48] sm:$0xff]
      %v289 = vld [vmem:[%s273 + $0x50] sm:$0xff]
      %v290 = vld [vmem:[%s273 + $0x58] sm:$0xff]
      %v291 = vld [vmem:[%s273 + $0x60] sm:$0xff]
      %v292 = vld [vmem:[%s273 + $0x68] sm:$0xff]
      %v293 = vld [vmem:[%s273 + $0x70] sm:$0xff]
      %v294 = vld [vmem:[%s273 + $0x78] sm:$0xff]
      %v295 = vld [vmem:[%s273 + $0x80] sm:$0xff]
      %v296 = vld [vmem:[%s273 + $0x88] sm:$0xff]
      %v297 = vld [vmem:[%s273 + $0x90] sm:$0xff]
      %v298 = vld [vmem:[%s273 + $0x98] sm:$0xff]
      %v299 = vld [vmem:[%s273 + $0xa0] sm:$0xff]
      %v300 = vld [vmem:[%s273 + $0xa8] sm:$0xff]
      %v301 = vld [vmem:[%s273 + $0xb0] sm:$0xff]
      %v302 = vld [vmem:[%s273 + $0xb8] sm:$0xff]
      %v303 = vld [vmem:[%s273 + $0xc0] sm:$0xff]
      %v304 = vld [vmem:[%s273 + $0xc8] sm:$0xff]
      %v305 = vld [vmem:[%s273 + $0xd0] sm:$0xff]
      %v306 = vld [vmem:[%s273 + $0xd8] sm:$0xff]
      %v307 = vld [vmem:[%s273 + $0xe0] sm:$0xff]
      %v308 = vld [vmem:[%s273 + $0xe8] sm:$0xff]
      %v309 = vld [vmem:[%s273 + $0xf0] sm:$0xff]
      %v310 = vld [vmem:[%s273 + $0xf8] sm:$0xff]
      %v311 = vld [vmem:[%s1] sm:$0xff]
      %v312 = vld [vmem:[%s1 + $0x8] sm:$0xff]
      %v313 = vld [vmem:[%s1 + $0x10] sm:$0xff]
      %v314 = vld [vmem:[%s1 + $0x18] sm:$0xff]
      %v315 = vld [vmem:[%s2] sm:$0x1]
      %v317 = vlaneseq
      %v318 = vshrl.u32 %v317, 7
      %v319 = vsub.s32 0, %v318
      %v320 = vrot.slane %v315, %v319
      %vm322 = vcmask 261120
      %v324 = vsel %vm322, %v279, 0
      %v327 = vsel %vm322, %v280, 0
      %v330 = vsel %vm322, %v281, 0
      %v333 = vsel %vm322, %v282, 0
      %v336 = vsel %vm322, %v283, 0
      %v339 = vsel %vm322, %v284, 0
      %v342 = vsel %vm322, %v285, 0
      %v345 = vsel %vm322, %v286, 0
      %v348 = vsel %vm322, %v287, 0
      %v351 = vsel %vm322, %v288, 0
      %v354 = vsel %vm322, %v289, 0
      %v357 = vsel %vm322, %v290, 0
      %v360 = vsel %vm322, %v291, 0
      %v363 = vsel %vm322, %v292, 0
      %v366 = vsel %vm322, %v293, 0
      %v369 = vsel %vm322, %v294, 0
      %v372 = vsel %vm322, %v295, 0
      %v375 = vsel %vm322, %v296, 0
      %v378 = vsel %vm322, %v297, 0
      %v381 = vsel %vm322, %v298, 0
      %v384 = vsel %vm322, %v299, 0
      %v387 = vsel %vm322, %v300, 0
      %v390 = vsel %vm322, %v301, 0
      %v393 = vsel %vm322, %v302, 0
      %v396 = vsel %vm322, %v303, 0
      %v399 = vsel %vm322, %v304, 0
      %v402 = vsel %vm322, %v305, 0
      %v405 = vsel %vm322, %v306, 0
      %v408 = vsel %vm322, %v307, 0
      %v411 = vsel %vm322, %v308, 0
      %v414 = vsel %vm322, %v309, 0
      %v417 = vsel %vm322, %v310, 0
      %419 = vmatprep.subr.mxu0 0.0
      %420 = vmatpush1.msra.mxu0 %v311
      %421 = vmatprep.subr.mxu0 0.0
      %422 = vmatpush1.msra.mxu0 %v312
      %423 = vmatprep.subr.mxu0 0.0
      %424 = vmatpush1.msra.mxu0 %v313
      %425 = vmatprep.subr.mxu0 0.0
      %426 = vmatpush1.msra.mxu0 %v314
      %427 = vmatprep.subr.mxu0 0.0
      %428 = vmatpush1.msra.mxu0 0.0
      %429 = vmatprep.subr.mxu0 0.0
      %430 = vmatpush1.msra.mxu0 0.0
      %431 = vmatprep.subr.mxu0 0.0
      %432 = vmatpush1.msra.mxu0 0.0
      %433 = vmatprep.subr.mxu0 0.0
      %434 = vmatpush1.msra.mxu0 0.0
      %435 = vmatprep.subr.mxu0 0.0
      %436 = vmatpush1.msra.mxu0 0.0
      %437 = vmatprep.subr.mxu0 0.0
      %438 = vmatpush1.msra.mxu0 0.0
      %439 = vmatprep.subr.mxu0 0.0
      %440 = vmatpush1.msra.mxu0 0.0
      %441 = vmatprep.subr.mxu0 0.0
      %442 = vmatpush1.msra.mxu0 0.0
      %443 = vmatprep.subr.mxu0 0.0
      %444 = vmatpush1.msra.mxu0 0.0
      %445 = vmatprep.subr.mxu0 0.0
      %446 = vmatpush1.msra.mxu0 0.0
      %447 = vmatprep.subr.mxu0 0.0
      %448 = vmatpush1.msra.mxu0 0.0
      %449 = vmatprep.subr.mxu0 0.0
      %450 = vmatpush1.msra.mxu0 0.0
      %451 = vmatprep.subr.mxu0 0.0
      %452 = vmatpush1.msra.mxu0 0.0
      %453 = vmatprep.subr.mxu0 0.0
      %454 = vmatpush1.msra.mxu0 0.0
      %455 = vmatprep.subr.mxu0 0.0
      %456 = vmatpush1.msra.mxu0 0.0
      %457 = vmatprep.subr.mxu0 0.0
      %458 = vmatpush1.msra.mxu0 0.0
      %459 = vmatprep.subr.mxu0 0.0
      %460 = vmatpush1.msra.mxu0 0.0
      %461 = vmatprep.subr.mxu0 0.0
      %462 = vmatpush1.msra.mxu0 0.0
      %463 = vmatprep.subr.mxu0 0.0
      %464 = vmatpush1.msra.mxu0 0.0
      %465 = vmatprep.subr.mxu0 0.0
      %466 = vmatpush1.msra.mxu0 0.0
      %467 = vmatprep.subr.mxu0 0.0
      %468 = vmatpush1.msra.mxu0 0.0
      %469 = vmatprep.subr.mxu0 0.0
      %470 = vmatpush1.msra.mxu0 0.0
      %471 = vmatprep.subr.mxu0 0.0
      %472 = vmatpush1.msra.mxu0 0.0
      %473 = vmatprep.subr.mxu0 0.0
      %474 = vmatpush1.msra.mxu0 0.0
      %475 = vmatprep.subr.mxu0 0.0
      %476 = vmatpush1.msra.mxu0 0.0
      %477 = vmatprep.subr.mxu0 0.0
      %478 = vmatpush1.msra.mxu0 0.0
      %479 = vmatprep.subr.mxu0 0.0
      %480 = vmatpush1.msra.mxu0 0.0
      %481 = vmatprep.subr.mxu0 0.0
      %482 = vmatpush1.msra.mxu0 0.0
      %483 = vmatprep.mubr.f32.mxu0 0.0
      %484 = vmatmul.mubr.f32.gmra.mrb[0].mxu0 %v324
      %v485 = vpop.f32.mrb[0].mxu0
      %v486 = vadd.f32 %v320, %v485
      %v487 = vpop.f32.mrb[0].mxu0
      %488 = vmatprep.mubr.f32.mxu0 0.0
      %489 = vmatmul.mubr.f32.gmra.mrb[0].mxu0 %v327
      %v490 = vpop.f32.mrb[0].mxu0
      %v491 = vadd.f32 %v320, %v490
      %v492 = vpop.f32.mrb[0].mxu0
      %493 = vmatprep.mubr.f32.mxu0 0.0
      %494 = vmatmul.mubr.f32.gmra.mrb[0].mxu0 %v330
      %v495 = vpop.f32.mrb[0].mxu0
      %v496 = vadd.f32 %v320, %v495
      %v497 = vpop.f32.mrb[0].mxu0
      %498 = vmatprep.mubr.f32.mxu0 0.0
      %499 = vmatmul.mubr.f32.gmra.mrb[0].mxu0 %v333
      %v500 = vpop.f32.mrb[0].mxu0
      %v501 = vadd.f32 %v320, %v500
      %v502 = vpop.f32.mrb[0].mxu0
      %503 = vmatprep.mubr.f32.mxu0 0.0
      %504 = vmatmul.mubr.f32.gmra.mrb[0].mxu0 %v336
      %v505 = vpop.f32.mrb[0].mxu0
      %v506 = vadd.f32 %v320, %v505
      %v507 = vpop.f32.mrb[0].mxu0
      %508 = vmatprep.mubr.f32.mxu0 0.0
      %509 = vmatmul.mubr.f32.gmra.mrb[0].mxu0 %v339
      %v510 = vpop.f32.mrb[0].mxu0
      %v511 = vadd.f32 %v320, %v510
      %v512 = vpop.f32.mrb[0].mxu0
      %513 = vmatprep.mubr.f32.mxu0 0.0
      %514 = vmatmul.mubr.f32.gmra.mrb[0].mxu0 %v342
      %v515 = vpop.f32.mrb[0].mxu0
      %v516 = vadd.f32 %v320, %v515
      %v517 = vpop.f32.mrb[0].mxu0
      %518 = vmatprep.mubr.f32.mxu0 0.0
      %519 = vmatmul.mubr.f32.gmra.mrb[0].mxu0 %v345
      %v520 = vpop.f32.mrb[0].mxu0
      %v521 = vadd.f32 %v320, %v520
      %v522 = vpop.f32.mrb[0].mxu0
      %523 = vmatprep.mubr.f32.mxu0 0.0
      %524 = vmatmul.mubr.f32.gmra.mrb[0].mxu0 %v348
      %v525 = vpop.f32.mrb[0].mxu0
      %v526 = vadd.f32 %v320, %v525
      %v527 = vpop.f32.mrb[0].mxu0
      %528 = vmatprep.mubr.f32.mxu0 0.0
      %529 = vmatmul.mubr.f32.gmra.mrb[0].mxu0 %v351
      %v530 = vpop.f32.mrb[0].mxu0
      %v531 = vadd.f32 %v320, %v530
      %v532 = vpop.f32.mrb[0].mxu0
      %533 = vmatprep.mubr.f32.mxu0 0.0
      %534 = vmatmul.mubr.f32.gmra.mrb[0].mxu0 %v354
      %v535 = vpop.f32.mrb[0].mxu0
      %v536 = vadd.f32 %v320, %v535
      %v537 = vpop.f32.mrb[0].mxu0
      %538 = vmatprep.mubr.f32.mxu0 0.0
      %539 = vmatmul.mubr.f32.gmra.mrb[0].mxu0 %v357
      %v540 = vpop.f32.mrb[0].mxu0
      %v541 = vadd.f32 %v320, %v540
      %v542 = vpop.f32.mrb[0].mxu0
      %543 = vmatprep.mubr.f32.mxu0 0.0
      %544 = vmatmul.mubr.f32.gmra.mrb[0].mxu0 %v360
      %v545 = vpop.f32.mrb[0].mxu0
      %v546 = vadd.f32 %v320, %v545
      %v547 = vpop.f32.mrb[0].mxu0
      %548 = vmatprep.mubr.f32.mxu0 0.0
      %549 = vmatmul.mubr.f32.gmra.mrb[0].mxu0 %v363
      %v550 = vpop.f32.mrb[0].mxu0
      %v551 = vadd.f32 %v320, %v550
      %v552 = vpop.f32.mrb[0].mxu0
      %553 = vmatprep.mubr.f32.mxu0 0.0
      %554 = vmatmul.mubr.f32.gmra.mrb[0].mxu0 %v366
      %v555 = vpop.f32.mrb[0].mxu0
      %v556 = vadd.f32 %v320, %v555
      %v557 = vpop.f32.mrb[0].mxu0
      %558 = vmatprep.mubr.f32.mxu0 0.0
      %559 = vmatmul.mubr.f32.gmra.mrb[0].mxu0 %v369
      %v560 = vpop.f32.mrb[0].mxu0
      %v561 = vadd.f32 %v320, %v560
      %v562 = vpop.f32.mrb[0].mxu0
      %563 = vmatprep.mubr.f32.mxu0 0.0
      %564 = vmatmul.mubr.f32.gmra.mrb[0].mxu0 %v372
      %v565 = vpop.f32.mrb[0].mxu0
      %v566 = vadd.f32 %v320, %v565
      %v567 = vpop.f32.mrb[0].mxu0
      %568 = vmatprep.mubr.f32.mxu0 0.0
      %569 = vmatmul.mubr.f32.gmra.mrb[0].mxu0 %v375
      %v570 = vpop.f32.mrb[0].mxu0
      %v571 = vadd.f32 %v320, %v570
      %v572 = vpop.f32.mrb[0].mxu0
      %573 = vmatprep.mubr.f32.mxu0 0.0
      %574 = vmatmul.mubr.f32.gmra.mrb[0].mxu0 %v378
      %v575 = vpop.f32.mrb[0].mxu0
      %v576 = vadd.f32 %v320, %v575
      %v577 = vpop.f32.mrb[0].mxu0
      %578 = vmatprep.mubr.f32.mxu0 0.0
      %579 = vmatmul.mubr.f32.gmra.mrb[0].mxu0 %v381
      %v580 = vpop.f32.mrb[0].mxu0
      %v581 = vadd.f32 %v320, %v580
      %v582 = vpop.f32.mrb[0].mxu0
      %583 = vmatprep.mubr.f32.mxu0 0.0
      %584 = vmatmul.mubr.f32.gmra.mrb[0].mxu0 %v384
      %v585 = vpop.f32.mrb[0].mxu0
      %v586 = vadd.f32 %v320, %v585
      %v587 = vpop.f32.mrb[0].mxu0
      %588 = vmatprep.mubr.f32.mxu0 0.0
      %589 = vmatmul.mubr.f32.gmra.mrb[0].mxu0 %v387
      %v590 = vpop.f32.mrb[0].mxu0
      %v591 = vadd.f32 %v320, %v590
      %v592 = vpop.f32.mrb[0].mxu0
      %593 = vmatprep.mubr.f32.mxu0 0.0
      %594 = vmatmul.mubr.f32.gmra.mrb[0].mxu0 %v390
      %v595 = vpop.f32.mrb[0].mxu0
      %v596 = vadd.f32 %v320, %v595
      %v597 = vpop.f32.mrb[0].mxu0
      %598 = vmatprep.mubr.f32.mxu0 0.0
      %599 = vmatmul.mubr.f32.gmra.mrb[0].mxu0 %v393
      %v600 = vpop.f32.mrb[0].mxu0
      %v601 = vadd.f32 %v320, %v600
      %v602 = vpop.f32.mrb[0].mxu0
      %603 = vmatprep.mubr.f32.mxu0 0.0
      %604 = vmatmul.mubr.f32.gmra.mrb[0].mxu0 %v396
      %v605 = vpop.f32.mrb[0].mxu0
      %v606 = vadd.f32 %v320, %v605
      %v607 = vpop.f32.mrb[0].mxu0
      %608 = vmatprep.mubr.f32.mxu0 0.0
      %609 = vmatmul.mubr.f32.gmra.mrb[0].mxu0 %v399
      %v610 = vpop.f32.mrb[0].mxu0
      %v611 = vadd.f32 %v320, %v610
      %v612 = vpop.f32.mrb[0].mxu0
      %613 = vmatprep.mubr.f32.mxu0 0.0
      %614 = vmatmul.mubr.f32.gmra.mrb[0].mxu0 %v402
      %v615 = vpop.f32.mrb[0].mxu0
      %v616 = vadd.f32 %v320, %v615
      %v617 = vpop.f32.mrb[0].mxu0
      %618 = vmatprep.mubr.f32.mxu0 0.0
      %619 = vmatmul.mubr.f32.gmra.mrb[0].mxu0 %v405
      %v620 = vpop.f32.mrb[0].mxu0
      %v621 = vadd.f32 %v320, %v620
      %v622 = vpop.f32.mrb[0].mxu0
      %623 = vmatprep.mubr.f32.mxu0 0.0
      %624 = vmatmul.mubr.f32.gmra.mrb[0].mxu0 %v408
      %v625 = vpop.f32.mrb[0].mxu0
      %v626 = vadd.f32 %v320, %v625
      %v627 = vpop.f32.mrb[0].mxu0
      %628 = vmatprep.mubr.f32.mxu0 0.0
      %629 = vmatmul.mubr.f32.gmra.mrb[0].mxu0 %v411
      %v630 = vpop.f32.mrb[0].mxu0
      %v631 = vadd.f32 %v320, %v630
      %v632 = vpop.f32.mrb[0].mxu0
      %633 = vmatprep.mubr.f32.mxu0 0.0
      %634 = vmatmul.mubr.f32.gmra.mrb[0].mxu0 %v414
      %v635 = vpop.f32.mrb[0].mxu0
      %v636 = vadd.f32 %v320, %v635
      %v637 = vpop.f32.mrb[0].mxu0
      %638 = vmatprep.mubr.f32.mxu0 0.0
      %639 = vmatmul.mubr.f32.gmra.mrb[0].mxu0 %v417
      %v640 = vpop.f32.mrb[0].mxu0
      %v641 = vadd.f32 %v320, %v640
      %v642 = vpop.f32.mrb[0].mxu0
      %643 = vdwg.mxu0
      %644 = vst.msk [vmem:[#allocation2] sm:$0xff] %vm322, -inf
      %645 = vst.msk [vmem:[#allocation2 + $0x8] sm:$0xff] %vm322, -inf
      %646 = vst.msk [vmem:[#allocation2 + $0x10] sm:$0xff] %vm322, -inf
      %647 = vst.msk [vmem:[#allocation2 + $0x18] sm:$0xff] %vm322, -inf
      %vm648 = vcmask 254976
      %649 = vst.msk [vmem:[#allocation2 + $0x20] sm:$0x3] %vm648, -inf
      %s650 = scalar_lea.vmem [#allocation2], 360
      %651 = vst.msk [vmem:[%s650] sm:$0xff] %vm322, -inf
      %652 = vst.msk [vmem:[%s650 + $0x8] sm:$0xff] %vm322, -inf
      %653 = vst.msk [vmem:[%s650 + $0x10] sm:$0xff] %vm322, -inf
      %654 = vst.msk [vmem:[%s650 + $0x18] sm:$0xff] %vm322, -inf
      %655 = vst.msk [vmem:[%s650 + $0x20] sm:$0x3] %vm648, -inf
      %s656 = scalar_lea.vmem [#allocation2], 40
      %vm657 = vcmask 253952
      %658 = vst.msk [vmem:[%s656] sm:$0x1] %vm657, -inf
      %659 = vst.msk [vmem:[%s656 + $0x28] sm:$0x1] %vm657, -inf
      %660 = vst.msk [vmem:[%s656 + $0x50] sm:$0x1] %vm657, -inf
      %661 = vst.msk [vmem:[%s656 + $0x78] sm:$0x1] %vm657, -inf
      %662 = vst.msk [vmem:[%s656 + $0xa0] sm:$0x1] %vm657, -inf
      %663 = vst.msk [vmem:[%s656 + $0xc8] sm:$0x1] %vm657, -inf
      %664 = vst.msk [vmem:[%s656 + $0xf0] sm:$0x1] %vm657, -inf
      %665 = vst.msk [vmem:[%s656 + $0x118] sm:$0x1] %vm657, -inf
      %666 = vst.msk [vmem:[%s656 + $0x21] sm:$0x1] %vm657, -inf
      %667 = vst.msk [vmem:[%s656 + $0x49] sm:$0x1] %vm657, -inf
      %668 = vst.msk [vmem:[%s656 + $0x71] sm:$0x1] %vm657, -inf
      %669 = vst.msk [vmem:[%s656 + $0x99] sm:$0x1] %vm657, -inf
      %670 = vst.msk [vmem:[%s656 + $0xc1] sm:$0x1] %vm657, -inf
      %671 = vst.msk [vmem:[%s656 + $0xe9] sm:$0x1] %vm657, -inf
      %672 = vst.msk [vmem:[%s656 + $0x111] sm:$0x1] %vm657, -inf
      %673 = vst.msk [vmem:[%s656 + $0x139] sm:$0x1] %vm657, -inf
      %674 = vst.msk [vmem:[%s656 + $0x1] sm:$0xff] %vm322, %v486
      %675 = vst.msk [vmem:[%s656 + $0x9] sm:$0xff] %vm322, %v491
      %676 = vst.msk [vmem:[%s656 + $0x11] sm:$0xff] %vm322, %v496
      %677 = vst.msk [vmem:[%s656 + $0x19] sm:$0xff] %vm322, %v501
      %678 = vst.msk [vmem:[%s656 + $0x29] sm:$0xff] %vm322, %v506
      %679 = vst.msk [vmem:[%s656 + $0x31] sm:$0xff] %vm322, %v511
      %680 = vst.msk [vmem:[%s656 + $0x39] sm:$0xff] %vm322, %v516
      %681 = vst.msk [vmem:[%s656 + $0x41] sm:$0xff] %vm322, %v521
      %682 = vst.msk [vmem:[%s656 + $0x51] sm:$0xff] %vm322, %v526
      %683 = vst.msk [vmem:[%s656 + $0x59] sm:$0xff] %vm322, %v531
      %684 = vst.msk [vmem:[%s656 + $0x61] sm:$0xff] %vm322, %v536
      %685 = vst.msk [vmem:[%s656 + $0x69] sm:$0xff] %vm322, %v541
      %686 = vst.msk [vmem:[%s656 + $0x79] sm:$0xff] %vm322, %v546
      %687 = vst.msk [vmem:[%s656 + $0x81] sm:$0xff] %vm322, %v551
      %688 = vst.msk [vmem:[%s656 + $0x89] sm:$0xff] %vm322, %v556
      %689 = vst.msk [vmem:[%s656 + $0x91] sm:$0xff] %vm322, %v561
      %690 = vst.msk [vmem:[%s656 + $0xa1] sm:$0xff] %vm322, %v566
      %691 = vst.msk [vmem:[%s656 + $0xa9] sm:$0xff] %vm322, %v571
      %692 = vst.msk [vmem:[%s656 + $0xb1] sm:$0xff] %vm322, %v576
      %693 = vst.msk [vmem:[%s656 + $0xb9] sm:$0xff] %vm322, %v581
      %694 = vst.msk [vmem:[%s656 + $0xc9] sm:$0xff] %vm322, %v586
      %695 = vst.msk [vmem:[%s656 + $0xd1] sm:$0xff] %vm322, %v591
      %696 = vst.msk [vmem:[%s656 + $0xd9] sm:$0xff] %vm322, %v596
      %697 = vst.msk [vmem:[%s656 + $0xe1] sm:$0xff] %vm322, %v601
      %698 = vst.msk [vmem:[%s656 + $0xf1] sm:$0xff] %vm322, %v606
      %699 = vst.msk [vmem:[%s656 + $0xf9] sm:$0xff] %vm322, %v611
      %700 = vst.msk [vmem:[%s656 + $0x101] sm:$0xff] %vm322, %v616
      %701 = vst.msk [vmem:[%s656 + $0x109] sm:$0xff] %vm322, %v621
      %702 = vst.msk [vmem:[%s656 + $0x119] sm:$0xff] %vm322, %v626
      %703 = vst.msk [vmem:[%s656 + $0x121] sm:$0xff] %vm322, %v631
      %704 = vst.msk [vmem:[%s656 + $0x129] sm:$0xff] %vm322, %v636
      %705 = vst.msk [vmem:[%s656 + $0x131] sm:$0xff] %vm322, %v641
      %v706 = vld [vmem:[#allocation2] sm:$0xff]
      %v707 = vld [vmem:[#allocation2 + $0x8] sm:$0xff]
      %v708 = vld [vmem:[#allocation2 + $0x10] sm:$0xff]
      %v709 = vld [vmem:[#allocation2 + $0x18] sm:$0xff]
      %v710 = vld [vmem:[#allocation2 + $0x28] sm:$0xff]
      %v711 = vld [vmem:[#allocation2 + $0x30] sm:$0xff]
      %v712 = vld [vmem:[#allocation2 + $0x38] sm:$0xff]
      %v713 = vld [vmem:[#allocation2 + $0x40] sm:$0xff]
      %v714 = vld [vmem:[#allocation2 + $0x50] sm:$0xff]
      %v715 = vld [vmem:[#allocation2 + $0x58] sm:$0xff]
      %v716 = vld [vmem:[#allocation2 + $0x60] sm:$0xff]
      %v717 = vld [vmem:[#allocation2 + $0x68] sm:$0xff]
      %v718 = vld [vmem:[#allocation2 + $0x78] sm:$0xff]
      %v719 = vld [vmem:[#allocation2 + $0x80] sm:$0xff]
      %v720 = vld [vmem:[#allocation2 + $0x88] sm:$0xff]
      %v721 = vld [vmem:[#allocation2 + $0x90] sm:$0xff]
      %v722 = vld [vmem:[#allocation2 + $0xa0] sm:$0xff]
      %v723 = vld [vmem:[#allocation2 + $0xa8] sm:$0xff]
      %v724 = vld [vmem:[#allocation2 + $0xb0] sm:$0xff]
      %v725 = vld [vmem:[#allocation2 + $0xb8] sm:$0xff]
      %v726 = vld [vmem:[#allocation2 + $0xc8] sm:$0xff]
      %v727 = vld [vmem:[#allocation2 + $0xd0] sm:$0xff]
      %v728 = vld [vmem:[#allocation2 + $0xd8] sm:$0xff]
      %v729 = vld [vmem:[#allocation2 + $0xe0] sm:$0xff]
      %v730 = vld [vmem:[#allocation2 + $0xf0] sm:$0xff]
      %v731 = vld [vmem:[#allocation2 + $0xf8] sm:$0xff]
      %v732 = vld [vmem:[#allocation2 + $0x100] sm:$0xff]
      %v733 = vld [vmem:[#allocation2 + $0x108] sm:$0xff]
      %v734 = vld [vmem:[#allocation2 + $0x118] sm:$0xff]
      %v735 = vld [vmem:[#allocation2 + $0x120] sm:$0xff]
      %v736 = vld [vmem:[#allocation2 + $0x128] sm:$0xff]
      %v737 = vld [vmem:[#allocation2 + $0x130] sm:$0xff]
      %v738 = vmax.f32 %v486, %v706
      %v739 = vmax.f32 %v491, %v707
      %v740 = vmax.f32 %v496, %v708
      %v741 = vmax.f32 %v501, %v709
      %v742 = vmax.f32 %v506, %v710
      %v743 = vmax.f32 %v511, %v711
      %v744 = vmax.f32 %v516, %v712
      %v745 = vmax.f32 %v521, %v713
      %v746 = vmax.f32 %v526, %v714
      %v747 = vmax.f32 %v531, %v715
      %v748 = vmax.f32 %v536, %v716
      %v749 = vmax.f32 %v541, %v717
      %v750 = vmax.f32 %v546, %v718
      %v751 = vmax.f32 %v551, %v719
      %v752 = vmax.f32 %v556, %v720
      %v753 = vmax.f32 %v561, %v721
      %v754 = vmax.f32 %v566, %v722
      %v755 = vmax.f32 %v571, %v723
      %v756 = vmax.f32 %v576, %v724
      %v757 = vmax.f32 %v581, %v725
      %v758 = vmax.f32 %v586, %v726
      %v759 = vmax.f32 %v591, %v727
      %v760 = vmax.f32 %v596, %v728
      %v761 = vmax.f32 %v601, %v729
      %v762 = vmax.f32 %v606, %v730
      %v763 = vmax.f32 %v611, %v731
      %v764 = vmax.f32 %v616, %v732
      %v765 = vmax.f32 %v621, %v733
      %v766 = vmax.f32 %v626, %v734
      %v767 = vmax.f32 %v631, %v735
      %v768 = vmax.f32 %v636, %v736
      %v769 = vmax.f32 %v641, %v737
      %v770 = vld [vmem:[#allocation2 + $0x1] sm:$0xff]
      %v771 = vld [vmem:[#allocation2 + $0x9] sm:$0xff]
      %v772 = vld [vmem:[#allocation2 + $0x11] sm:$0xff]
      %v773 = vld [vmem:[#allocation2 + $0x19] sm:$0xff]
      %v774 = vld [vmem:[#allocation2 + $0x29] sm:$0xff]
      %v775 = vld [vmem:[#allocation2 + $0x31] sm:$0xff]
      %v776 = vld [vmem:[#allocation2 + $0x39] sm:$0xff]
      %v777 = vld [vmem:[#allocation2 + $0x41] sm:$0xff]
      %v778 = vld [vmem:[#allocation2 + $0x51] sm:$0xff]
      %v779 = vld [vmem:[#allocation2 + $0x59] sm:$0xff]
      %v780 = vld [vmem:[#allocation2 + $0x61] sm:$0xff]
      %v781 = vld [vmem:[#allocation2 + $0x69] sm:$0xff]
      %v782 = vld [vmem:[#allocation2 + $0x79] sm:$0xff]
      %v783 = vld [vmem:[#allocation2 + $0x81] sm:$0xff]
      %v784 = vld [vmem:[#allocation2 + $0x89] sm:$0xff]
      %v785 = vld [vmem:[#allocation2 + $0x91] sm:$0xff]
      %v786 = vld [vmem:[#allocation2 + $0xa1] sm:$0xff]
      %v787 = vld [vmem:[#allocation2 + $0xa9] sm:$0xff]
      %v788 = vld [vmem:[#allocation2 + $0xb1] sm:$0xff]
      %v789 = vld [vmem:[#allocation2 + $0xb9] sm:$0xff]
      %v790 = vld [vmem:[#allocation2 + $0xc9] sm:$0xff]
      %v791 = vld [vmem:[#allocation2 + $0xd1] sm:$0xff]
      %v792 = vld [vmem:[#allocation2 + $0xd9] sm:$0xff]
      %v793 = vld [vmem:[#allocation2 + $0xe1] sm:$0xff]
      %v794 = vld [vmem:[#allocation2 + $0xf1] sm:$0xff]
      %v795 = vld [vmem:[#allocation2 + $0xf9] sm:$0xff]
      %v796 = vld [vmem:[#allocation2 + $0x101] sm:$0xff]
      %v797 = vld [vmem:[#allocation2 + $0x109] sm:$0xff]
      %v798 = vld [vmem:[#allocation2 + $0x119] sm:$0xff]
      %v799 = vld [vmem:[#allocation2 + $0x121] sm:$0xff]
      %v800 = vld [vmem:[#allocation2 + $0x129] sm:$0xff]
      %v801 = vld [vmem:[#allocation2 + $0x131] sm:$0xff]
      %v802 = vmax.f32 %v738, %v770
      %v803 = vmax.f32 %v739, %v771
      %v804 = vmax.f32 %v740, %v772
      %v805 = vmax.f32 %v741, %v773
      %v806 = vmax.f32 %v742, %v774
      %v807 = vmax.f32 %v743, %v775
      %v808 = vmax.f32 %v744, %v776
      %v809 = vmax.f32 %v745, %v777
      %v810 = vmax.f32 %v746, %v778
      %v811 = vmax.f32 %v747, %v779
      %v812 = vmax.f32 %v748, %v780
      %v813 = vmax.f32 %v749, %v781
      %v814 = vmax.f32 %v750, %v782
      %v815 = vmax.f32 %v751, %v783
      %v816 = vmax.f32 %v752, %v784
      %v817 = vmax.f32 %v753, %v785
      %v818 = vmax.f32 %v754, %v786
      %v819 = vmax.f32 %v755, %v787
      %v820 = vmax.f32 %v756, %v788
      %v821 = vmax.f32 %v757, %v789
      %v822 = vmax.f32 %v758, %v790
      %v823 = vmax.f32 %v759, %v791
      %v824 = vmax.f32 %v760, %v792
      %v825 = vmax.f32 %v761, %v793
      %v826 = vmax.f32 %v762, %v794
      %v827 = vmax.f32 %v763, %v795
      %v828 = vmax.f32 %v764, %v796
      %v829 = vmax.f32 %v765, %v797
      %v830 = vmax.f32 %v766, %v798
      %v831 = vmax.f32 %v767, %v799
      %v832 = vmax.f32 %v768, %v800
      %v833 = vmax.f32 %v769, %v801
      %v834 = vld [vmem:[#allocation2 + $0x2] sm:$0xff]
      %v835 = vld [vmem:[#allocation2 + $0xa] sm:$0xff]
      %v836 = vld [vmem:[#allocation2 + $0x12] sm:$0xff]
      %v837 = vld [vmem:[#allocation2 + $0x1a] sm:$0xff]
      %v838 = vld [vmem:[#allocation2 + $0x2a] sm:$0xff]
      %v839 = vld [vmem:[#allocation2 + $0x32] sm:$0xff]
      %v840 = vld [vmem:[#allocation2 + $0x3a] sm:$0xff]
      %v841 = vld [vmem:[#allocation2 + $0x42] sm:$0xff]
      %v842 = vld [vmem:[#allocation2 + $0x52] sm:$0xff]
      %v843 = vld [vmem:[#allocation2 + $0x5a] sm:$0xff]
      %v844 = vld [vmem:[#allocation2 + $0x62] sm:$0xff]
      %v845 = vld [vmem:[#allocation2 + $0x6a] sm:$0xff]
      %v846 = vld [vmem:[#allocation2 + $0x7a] sm:$0xff]
      %v847 = vld [vmem:[#allocation2 + $0x82] sm:$0xff]
      %v848 = vld [vmem:[#allocation2 + $0x8a] sm:$0xff]
      %v849 = vld [vmem:[#allocation2 + $0x92] sm:$0xff]
      %v850 = vld [vmem:[#allocation2 + $0xa2] sm:$0xff]
      %v851 = vld [vmem:[#allocation2 + $0xaa] sm:$0xff]
      %v852 = vld [vmem:[#allocation2 + $0xb2] sm:$0xff]
      %v853 = vld [vmem:[#allocation2 + $0xba] sm:$0xff]
      %v854 = vld [vmem:[#allocation2 + $0xca] sm:$0xff]
      %v855 = vld [vmem:[#allocation2 + $0xd2] sm:$0xff]
      %v856 = vld [vmem:[#allocation2 + $0xda] sm:$0xff]
      %v857 = vld [vmem:[#allocation2 + $0xe2] sm:$0xff]
      %v858 = vld [vmem:[#allocation2 + $0xf2] sm:$0xff]
      %v859 = vld [vmem:[#allocation2 + $0xfa] sm:$0xff]
      %v860 = vld [vmem:[#allocation2 + $0x102] sm:$0xff]
      %v861 = vld [vmem:[#allocation2 + $0x10a] sm:$0xff]
      %v862 = vld [vmem:[#allocation2 + $0x11a] sm:$0xff]
      %v863 = vld [vmem:[#allocation2 + $0x122] sm:$0xff]
      %v864 = vld [vmem:[#allocation2 + $0x12a] sm:$0xff]
      %v865 = vld [vmem:[#allocation2 + $0x132] sm:$0xff]
      %v866 = vmax.f32 %v802, %v834
      %v867 = vmax.f32 %v803, %v835
      %v868 = vmax.f32 %v804, %v836
      %v869 = vmax.f32 %v805, %v837
      %v870 = vmax.f32 %v806, %v838
      %v871 = vmax.f32 %v807, %v839
      %v872 = vmax.f32 %v808, %v840
      %v873 = vmax.f32 %v809, %v841
      %v874 = vmax.f32 %v810, %v842
      %v875 = vmax.f32 %v811, %v843
      %v876 = vmax.f32 %v812, %v844
      %v877 = vmax.f32 %v813, %v845
      %v878 = vmax.f32 %v814, %v846
      %v879 = vmax.f32 %v815, %v847
      %v880 = vmax.f32 %v816, %v848
      %v881 = vmax.f32 %v817, %v849
      %v882 = vmax.f32 %v818, %v850
      %v883 = vmax.f32 %v819, %v851
      %v884 = vmax.f32 %v820, %v852
      %v885 = vmax.f32 %v821, %v853
      %v886 = vmax.f32 %v822, %v854
      %v887 = vmax.f32 %v823, %v855
      %v888 = vmax.f32 %v824, %v856
      %v889 = vmax.f32 %v825, %v857
      %v890 = vmax.f32 %v826, %v858
      %v891 = vmax.f32 %v827, %v859
      %v892 = vmax.f32 %v828, %v860
      %v893 = vmax.f32 %v829, %v861
      %v894 = vmax.f32 %v830, %v862
      %v895 = vmax.f32 %v831, %v863
      %v896 = vmax.f32 %v832, %v864
      %v897 = vmax.f32 %v833, %v865
      %v898 = vld [vmem:[%s656] sm:$0xff]
      %v899 = vld [vmem:[%s656 + $0x8] sm:$0xff]
      %v900 = vld [vmem:[%s656 + $0x10] sm:$0xff]
      %v901 = vld [vmem:[%s656 + $0x18] sm:$0xff]
      %v902 = vld [vmem:[%s656 + $0x28] sm:$0xff]
      %v903 = vld [vmem:[%s656 + $0x30] sm:$0xff]
      %v904 = vld [vmem:[%s656 + $0x38] sm:$0xff]
      %v905 = vld [vmem:[%s656 + $0x40] sm:$0xff]
      %v906 = vld [vmem:[%s656 + $0x50] sm:$0xff]
      %v907 = vld [vmem:[%s656 + $0x58] sm:$0xff]
      %v908 = vld [vmem:[%s656 + $0x60] sm:$0xff]
      %v909 = vld [vmem:[%s656 + $0x68] sm:$0xff]
      %v910 = vld [vmem:[%s656 + $0x78] sm:$0xff]
      %v911 = vld [vmem:[%s656 + $0x80] sm:$0xff]
      %v912 = vld [vmem:[%s656 + $0x88] sm:$0xff]
      %v913 = vld [vmem:[%s656 + $0x90] sm:$0xff]
      %v914 = vld [vmem:[%s656 + $0xa0] sm:$0xff]
      %v915 = vld [vmem:[%s656 + $0xa8] sm:$0xff]
      %v916 = vld [vmem:[%s656 + $0xb0] sm:$0xff]
      %v917 = vld [vmem:[%s656 + $0xb8] sm:$0xff]
      %v918 = vld [vmem:[%s656 + $0xc8] sm:$0xff]
      %v919 = vld [vmem:[%s656 + $0xd0] sm:$0xff]
      %v920 = vld [vmem:[%s656 + $0xd8] sm:$0xff]
      %v921 = vld [vmem:[%s656 + $0xe0] sm:$0xff]
      %v922 = vld [vmem:[%s656 + $0xf0] sm:$0xff]
      %v923 = vld [vmem:[%s656 + $0xf8] sm:$0xff]
      %v924 = vld [vmem:[%s656 + $0x100] sm:$0xff]
      %v925 = vld [vmem:[%s656 + $0x108] sm:$0xff]
      %v926 = vld [vmem:[%s656 + $0x118] sm:$0xff]
      %v927 = vld [vmem:[%s656 + $0x120] sm:$0xff]
      %v928 = vld [vmem:[%s656 + $0x128] sm:$0xff]
      %v929 = vld [vmem:[%s656 + $0x130] sm:$0xff]
      %v930 = vmax.f32 %v866, %v898
      %v931 = vmax.f32 %v867, %v899
      %v932 = vmax.f32 %v868, %v900
      %v933 = vmax.f32 %v869, %v901
      %v934 = vmax.f32 %v870, %v902
      %v935 = vmax.f32 %v871, %v903
      %v936 = vmax.f32 %v872, %v904
      %v937 = vmax.f32 %v873, %v905
      %v938 = vmax.f32 %v874, %v906
      %v939 = vmax.f32 %v875, %v907
      %v940 = vmax.f32 %v876, %v908
      %v941 = vmax.f32 %v877, %v909
      %v942 = vmax.f32 %v878, %v910
      %v943 = vmax.f32 %v879, %v911
      %v944 = vmax.f32 %v880, %v912
      %v945 = vmax.f32 %v881, %v913
      %v946 = vmax.f32 %v882, %v914
      %v947 = vmax.f32 %v883, %v915
      %v948 = vmax.f32 %v884, %v916
      %v949 = vmax.f32 %v885, %v917
      %v950 = vmax.f32 %v886, %v918
      %v951 = vmax.f32 %v887, %v919
      %v952 = vmax.f32 %v888, %v920
      %v953 = vmax.f32 %v889, %v921
      %v954 = vmax.f32 %v890, %v922
      %v955 = vmax.f32 %v891, %v923
      %v956 = vmax.f32 %v892, %v924
      %v957 = vmax.f32 %v893, %v925
      %v958 = vmax.f32 %v894, %v926
      %v959 = vmax.f32 %v895, %v927
      %v960 = vmax.f32 %v896, %v928
      %v961 = vmax.f32 %v897, %v929
      %v962 = vld [vmem:[%s656 + $0x2] sm:$0xff]
      %v963 = vld [vmem:[%s656 + $0xa] sm:$0xff]
      %v964 = vld [vmem:[%s656 + $0x12] sm:$0xff]
      %v965 = vld [vmem:[%s656 + $0x1a] sm:$0xff]
      %v966 = vld [vmem:[%s656 + $0x2a] sm:$0xff]
      %v967 = vld [vmem:[%s656 + $0x32] sm:$0xff]
      %v968 = vld [vmem:[%s656 + $0x3a] sm:$0xff]
      %v969 = vld [vmem:[%s656 + $0x42] sm:$0xff]
      %v970 = vld [vmem:[%s656 + $0x52] sm:$0xff]
      %v971 = vld [vmem:[%s656 + $0x5a] sm:$0xff]
      %v972 = vld [vmem:[%s656 + $0x62] sm:$0xff]
      %v973 = vld [vmem:[%s656 + $0x6a] sm:$0xff]
      %v974 = vld [vmem:[%s656 + $0x7a] sm:$0xff]
      %v975 = vld [vmem:[%s656 + $0x82] sm:$0xff]
      %v976 = vld [vmem:[%s656 + $0x8a] sm:$0xff]
      %v977 = vld [vmem:[%s656 + $0x92] sm:$0xff]
      %v978 = vld [vmem:[%s656 + $0xa2] sm:$0xff]
      %v979 = vld [vmem:[%s656 + $0xaa] sm:$0xff]
      %v980 = vld [vmem:[%s656 + $0xb2] sm:$0xff]
      %v981 = vld [vmem:[%s656 + $0xba] sm:$0xff]
      %v982 = vld [vmem:[%s656 + $0xca] sm:$0xff]
      %v983 = vld [vmem:[%s656 + $0xd2] sm:$0xff]
      %v984 = vld [vmem:[%s656 + $0xda] sm:$0xff]
      %v985 = vld [vmem:[%s656 + $0xe2] sm:$0xff]
      %v986 = vld [vmem:[%s656 + $0xf2] sm:$0xff]
      %v987 = vld [vmem:[%s656 + $0xfa] sm:$0xff]
      %v988 = vld [vmem:[%s656 + $0x102] sm:$0xff]
      %v989 = vld [vmem:[%s656 + $0x10a] sm:$0xff]
      %v990 = vld [vmem:[%s656 + $0x11a] sm:$0xff]
      %v991 = vld [vmem:[%s656 + $0x122] sm:$0xff]
      %v992 = vld [vmem:[%s656 + $0x12a] sm:$0xff]
      %v993 = vld [vmem:[%s656 + $0x132] sm:$0xff]
      %v994 = vmax.f32 %v930, %v962
      %v995 = vmax.f32 %v931, %v963
      %v996 = vmax.f32 %v932, %v964
      %v997 = vmax.f32 %v933, %v965
      %v998 = vmax.f32 %v934, %v966
      %v999 = vmax.f32 %v935, %v967
      %v1000 = vmax.f32 %v936, %v968
      %v1001 = vmax.f32 %v937, %v969
      %v1002 = vmax.f32 %v938, %v970
      %v1003 = vmax.f32 %v939, %v971
      %v1004 = vmax.f32 %v940, %v972
      %v1005 = vmax.f32 %v941, %v973
      %v1006 = vmax.f32 %v942, %v974
      %v1007 = vmax.f32 %v943, %v975
      %v1008 = vmax.f32 %v944, %v976
      %v1009 = vmax.f32 %v945, %v977
      %v1010 = vmax.f32 %v946, %v978
      %v1011 = vmax.f32 %v947, %v979
      %v1012 = vmax.f32 %v948, %v980
      %v1013 = vmax.f32 %v949, %v981
      %v1014 = vmax.f32 %v950, %v982
      %v1015 = vmax.f32 %v951, %v983
      %v1016 = vmax.f32 %v952, %v984
      %v1017 = vmax.f32 %v953, %v985
      %v1018 = vmax.f32 %v954, %v986
      %v1019 = vmax.f32 %v955, %v987
      %v1020 = vmax.f32 %v956, %v988
      %v1021 = vmax.f32 %v957, %v989
      %v1022 = vmax.f32 %v958, %v990
      %v1023 = vmax.f32 %v959, %v991
      %v1024 = vmax.f32 %v960, %v992
      %v1025 = vmax.f32 %v961, %v993
      %s1026 = scalar_lea.vmem [#allocation2], 80
      %v1027 = vld [vmem:[%s1026] sm:$0xff]
      %v1028 = vld [vmem:[%s1026 + $0x8] sm:$0xff]
      %v1029 = vld [vmem:[%s1026 + $0x10] sm:$0xff]
      %v1030 = vld [vmem:[%s1026 + $0x18] sm:$0xff]
      %v1031 = vld [vmem:[%s1026 + $0x28] sm:$0xff]
      %v1032 = vld [vmem:[%s1026 + $0x30] sm:$0xff]
      %v1033 = vld [vmem:[%s1026 + $0x38] sm:$0xff]
      %v1034 = vld [vmem:[%s1026 + $0x40] sm:$0xff]
      %v1035 = vld [vmem:[%s1026 + $0x50] sm:$0xff]
      %v1036 = vld [vmem:[%s1026 + $0x58] sm:$0xff]
      %v1037 = vld [vmem:[%s1026 + $0x60] sm:$0xff]
      %v1038 = vld [vmem:[%s1026 + $0x68] sm:$0xff]
      %v1039 = vld [vmem:[%s1026 + $0x78] sm:$0xff]
      %v1040 = vld [vmem:[%s1026 + $0x80] sm:$0xff]
      %v1041 = vld [vmem:[%s1026 + $0x88] sm:$0xff]
      %v1042 = vld [vmem:[%s1026 + $0x90] sm:$0xff]
      %v1043 = vld [vmem:[%s1026 + $0xa0] sm:$0xff]
      %v1044 = vld [vmem:[%s1026 + $0xa8] sm:$0xff]
      %v1045 = vld [vmem:[%s1026 + $0xb0] sm:$0xff]
      %v1046 = vld [vmem:[%s1026 + $0xb8] sm:$0xff]
      %v1047 = vld [vmem:[%s1026 + $0xc8] sm:$0xff]
      %v1048 = vld [vmem:[%s1026 + $0xd0] sm:$0xff]
      %v1049 = vld [vmem:[%s1026 + $0xd8] sm:$0xff]
      %v1050 = vld [vmem:[%s1026 + $0xe0] sm:$0xff]
      %v1051 = vld [vmem:[%s1026 + $0xf0] sm:$0xff]
      %v1052 = vld [vmem:[%s1026 + $0xf8] sm:$0xff]
      %v1053 = vld [vmem:[%s1026 + $0x100] sm:$0xff]
      %v1054 = vld [vmem:[%s1026 + $0x108] sm:$0xff]
      %v1055 = vld [vmem:[%s1026 + $0x118] sm:$0xff]
      %v1056 = vld [vmem:[%s1026 + $0x120] sm:$0xff]
      %v1057 = vld [vmem:[%s1026 + $0x128] sm:$0xff]
      %v1058 = vld [vmem:[%s1026 + $0x130] sm:$0xff]
      %v1059 = vmax.f32 %v994, %v1027
      %v1060 = vmax.f32 %v995, %v1028
      %v1061 = vmax.f32 %v996, %v1029
      %v1062 = vmax.f32 %v997, %v1030
      %v1063 = vmax.f32 %v998, %v1031
      %v1064 = vmax.f32 %v999, %v1032
      %v1065 = vmax.f32 %v1000, %v1033
      %v1066 = vmax.f32 %v1001, %v1034
      %v1067 = vmax.f32 %v1002, %v1035
      %v1068 = vmax.f32 %v1003, %v1036
      %v1069 = vmax.f32 %v1004, %v1037
      %v1070 = vmax.f32 %v1005, %v1038
      %v1071 = vmax.f32 %v1006, %v1039
      %v1072 = vmax.f32 %v1007, %v1040
      %v1073 = vmax.f32 %v1008, %v1041
      %v1074 = vmax.f32 %v1009, %v1042
      %v1075 = vmax.f32 %v1010, %v1043
      %v1076 = vmax.f32 %v1011, %v1044
      %v1077 = vmax.f32 %v1012, %v1045
      %v1078 = vmax.f32 %v1013, %v1046
      %v1079 = vmax.f32 %v1014, %v1047
      %v1080 = vmax.f32 %v1015, %v1048
      %v1081 = vmax.f32 %v1016, %v1049
      %v1082 = vmax.f32 %v1017, %v1050
      %v1083 = vmax.f32 %v1018, %v1051
      %v1084 = vmax.f32 %v1019, %v1052
      %v1085 = vmax.f32 %v1020, %v1053
      %v1086 = vmax.f32 %v1021, %v1054
      %v1087 = vmax.f32 %v1022, %v1055
      %v1088 = vmax.f32 %v1023, %v1056
      %v1089 = vmax.f32 %v1024, %v1057
      %v1090 = vmax.f32 %v1025, %v1058
      %v1091 = vld [vmem:[%s1026 + $0x1] sm:$0xff]
      %v1092 = vld [vmem:[%s1026 + $0x9] sm:$0xff]
      %v1093 = vld [vmem:[%s1026 + $0x11] sm:$0xff]
      %v1094 = vld [vmem:[%s1026 + $0x19] sm:$0xff]
      %v1095 = vld [vmem:[%s1026 + $0x29] sm:$0xff]
      %v1096 = vld [vmem:[%s1026 + $0x31] sm:$0xff]
      %v1097 = vld [vmem:[%s1026 + $0x39] sm:$0xff]
      %v1098 = vld [vmem:[%s1026 + $0x41] sm:$0xff]
      %v1099 = vld [vmem:[%s1026 + $0x51] sm:$0xff]
      %v1100 = vld [vmem:[%s1026 + $0x59] sm:$0xff]
      %v1101 = vld [vmem:[%s1026 + $0x61] sm:$0xff]
      %v1102 = vld [vmem:[%s1026 + $0x69] sm:$0xff]
      %v1103 = vld [vmem:[%s1026 + $0x79] sm:$0xff]
      %v1104 = vld [vmem:[%s1026 + $0x81] sm:$0xff]
      %v1105 = vld [vmem:[%s1026 + $0x89] sm:$0xff]
      %v1106 = vld [vmem:[%s1026 + $0x91] sm:$0xff]
      %v1107 = vld [vmem:[%s1026 + $0xa1] sm:$0xff]
      %v1108 = vld [vmem:[%s1026 + $0xa9] sm:$0xff]
      %v1109 = vld [vmem:[%s1026 + $0xb1] sm:$0xff]
      %v1110 = vld [vmem:[%s1026 + $0xb9] sm:$0xff]
      %v1111 = vld [vmem:[%s1026 + $0xc9] sm:$0xff]
      %v1112 = vld [vmem:[%s1026 + $0xd1] sm:$0xff]
      %v1113 = vld [vmem:[%s1026 + $0xd9] sm:$0xff]
      %v1114 = vld [vmem:[%s1026 + $0xe1] sm:$0xff]
      %v1115 = vld [vmem:[%s1026 + $0xf1] sm:$0xff]
      %v1116 = vld [vmem:[%s1026 + $0xf9] sm:$0xff]
      %v1117 = vld [vmem:[%s1026 + $0x101] sm:$0xff]
      %v1118 = vld [vmem:[%s1026 + $0x109] sm:$0xff]
      %v1119 = vld [vmem:[%s1026 + $0x119] sm:$0xff]
      %v1120 = vld [vmem:[%s1026 + $0x121] sm:$0xff]
      %v1121 = vld [vmem:[%s1026 + $0x129] sm:$0xff]
      %v1122 = vld [vmem:[%s1026 + $0x131] sm:$0xff]
      %v1123 = vmax.f32 %v1059, %v1091
      %v1124 = vmax.f32 %v1060, %v1092
      %v1125 = vmax.f32 %v1061, %v1093
      %v1126 = vmax.f32 %v1062, %v1094
      %v1127 = vmax.f32 %v1063, %v1095
      %v1128 = vmax.f32 %v1064, %v1096
      %v1129 = vmax.f32 %v1065, %v1097
      %v1130 = vmax.f32 %v1066, %v1098
      %v1131 = vmax.f32 %v1067, %v1099
      %v1132 = vmax.f32 %v1068, %v1100
      %v1133 = vmax.f32 %v1069, %v1101
      %v1134 = vmax.f32 %v1070, %v1102
      %v1135 = vmax.f32 %v1071, %v1103
      %v1136 = vmax.f32 %v1072, %v1104
      %v1137 = vmax.f32 %v1073, %v1105
      %v1138 = vmax.f32 %v1074, %v1106
      %v1139 = vmax.f32 %v1075, %v1107
      %v1140 = vmax.f32 %v1076, %v1108
      %v1141 = vmax.f32 %v1077, %v1109
      %v1142 = vmax.f32 %v1078, %v1110
      %v1143 = vmax.f32 %v1079, %v1111
      %v1144 = vmax.f32 %v1080, %v1112
      %v1145 = vmax.f32 %v1081, %v1113
      %v1146 = vmax.f32 %v1082, %v1114
      %v1147 = vmax.f32 %v1083, %v1115
      %v1148 = vmax.f32 %v1084, %v1116
      %v1149 = vmax.f32 %v1085, %v1117
      %v1150 = vmax.f32 %v1086, %v1118
      %v1151 = vmax.f32 %v1087, %v1119
      %v1152 = vmax.f32 %v1088, %v1120
      %v1153 = vmax.f32 %v1089, %v1121
      %v1154 = vmax.f32 %v1090, %v1122
      %v1155 = vld [vmem:[%s1026 + $0x2] sm:$0xff]
      %v1156 = vld [vmem:[%s1026 + $0xa] sm:$0xff]
      %v1157 = vld [vmem:[%s1026 + $0x12] sm:$0xff]
      %v1158 = vld [vmem:[%s1026 + $0x1a] sm:$0xff]
      %v1159 = vld [vmem:[%s1026 + $0x2a] sm:$0xff]
      %v1160 = vld [vmem:[%s1026 + $0x32] sm:$0xff]
      %v1161 = vld [vmem:[%s1026 + $0x3a] sm:$0xff]
      %v1162 = vld [vmem:[%s1026 + $0x42] sm:$0xff]
      %v1163 = vld [vmem:[%s1026 + $0x52] sm:$0xff]
      %v1164 = vld [vmem:[%s1026 + $0x5a] sm:$0xff]
      %v1165 = vld [vmem:[%s1026 + $0x62] sm:$0xff]
      %v1166 = vld [vmem:[%s1026 + $0x6a] sm:$0xff]
      %v1167 = vld [vmem:[%s1026 + $0x7a] sm:$0xff]
      %v1168 = vld [vmem:[%s1026 + $0x82] sm:$0xff]
      %v1169 = vld [vmem:[%s1026 + $0x8a] sm:$0xff]
      %v1170 = vld [vmem:[%s1026 + $0x92] sm:$0xff]
      %v1171 = vld [vmem:[%s1026 + $0xa2] sm:$0xff]
      %v1172 = vld [vmem:[%s1026 + $0xaa] sm:$0xff]
      %v1173 = vld [vmem:[%s1026 + $0xb2] sm:$0xff]
      %v1174 = vld [vmem:[%s1026 + $0xba] sm:$0xff]
      %v1175 = vld [vmem:[%s1026 + $0xca] sm:$0xff]
      %v1176 = vld [vmem:[%s1026 + $0xd2] sm:$0xff]
      %v1177 = vld [vmem:[%s1026 + $0xda] sm:$0xff]
      %v1178 = vld [vmem:[%s1026 + $0xe2] sm:$0xff]
      %v1179 = vld [vmem:[%s1026 + $0xf2] sm:$0xff]
      %v1180 = vld [vmem:[%s1026 + $0xfa] sm:$0xff]
      %v1181 = vld [vmem:[%s1026 + $0x102] sm:$0xff]
      %v1182 = vld [vmem:[%s1026 + $0x10a] sm:$0xff]
      %v1183 = vld [vmem:[%s1026 + $0x11a] sm:$0xff]
      %v1184 = vld [vmem:[%s1026 + $0x122] sm:$0xff]
      %v1185 = vld [vmem:[%s1026 + $0x12a] sm:$0xff]
      %v1186 = vld [vmem:[%s1026 + $0x132] sm:$0xff]
      %v1187 = vmax.f32 %v1123, %v1155
      %v1188 = vmax.f32 %v1124, %v1156
      %v1189 = vmax.f32 %v1125, %v1157
      %v1190 = vmax.f32 %v1126, %v1158
      %v1191 = vmax.f32 %v1127, %v1159
      %v1192 = vmax.f32 %v1128, %v1160
      %v1193 = vmax.f32 %v1129, %v1161
      %v1194 = vmax.f32 %v1130, %v1162
      %v1195 = vmax.f32 %v1131, %v1163
      %v1196 = vmax.f32 %v1132, %v1164
      %v1197 = vmax.f32 %v1133, %v1165
      %v1198 = vmax.f32 %v1134, %v1166
      %v1199 = vmax.f32 %v1135, %v1167
      %v1200 = vmax.f32 %v1136, %v1168
      %v1201 = vmax.f32 %v1137, %v1169
      %v1202 = vmax.f32 %v1138, %v1170
      %v1203 = vmax.f32 %v1139, %v1171
      %v1204 = vmax.f32 %v1140, %v1172
      %v1205 = vmax.f32 %v1141, %v1173
      %v1206 = vmax.f32 %v1142, %v1174
      %v1207 = vmax.f32 %v1143, %v1175
      %v1208 = vmax.f32 %v1144, %v1176
      %v1209 = vmax.f32 %v1145, %v1177
      %v1210 = vmax.f32 %v1146, %v1178
      %v1211 = vmax.f32 %v1147, %v1179
      %v1212 = vmax.f32 %v1148, %v1180
      %v1213 = vmax.f32 %v1149, %v1181
      %v1214 = vmax.f32 %v1150, %v1182
      %v1215 = vmax.f32 %v1151, %v1183
      %v1216 = vmax.f32 %v1152, %v1184
      %v1217 = vmax.f32 %v1153, %v1185
      %v1218 = vmax.f32 %v1154, %v1186
      %1219 = vst.msk [vmem:[#allocation3] sm:$0xff] %vm322, 0.0
      %1220 = vst.msk [vmem:[#allocation3 + $0x8] sm:$0xff] %vm322, 0.0
      %1221 = vst.msk [vmem:[#allocation3 + $0x10] sm:$0xff] %vm322, 0.0
      %1222 = vst.msk [vmem:[#allocation3 + $0x18] sm:$0xff] %vm322, 0.0
      %1223 = vst.msk [vmem:[#allocation3 + $0x20] sm:$0x3] %vm648, 0.0
      %s1224 = scalar_lea.vmem [#allocation3], 360
      %1225 = vst.msk [vmem:[%s1224] sm:$0xff] %vm322, 0.0
      %1226 = vst.msk [vmem:[%s1224 + $0x8] sm:$0xff] %vm322, 0.0
      %1227 = vst.msk [vmem:[%s1224 + $0x10] sm:$0xff] %vm322, 0.0
      %1228 = vst.msk [vmem:[%s1224 + $0x18] sm:$0xff] %vm322, 0.0
      %1229 = vst.msk [vmem:[%s1224 + $0x20] sm:$0x3] %vm648, 0.0
      %s1230 = scalar_lea.vmem [#allocation3], 40
      %1231 = vst.msk [vmem:[%s1230] sm:$0x1] %vm657, 0.0
      %1232 = vst.msk [vmem:[%s1230 + $0x28] sm:$0x1] %vm657, 0.0
      %1233 = vst.msk [vmem:[%s1230 + $0x50] sm:$0x1] %vm657, 0.0
      %1234 = vst.msk [vmem:[%s1230 + $0x78] sm:$0x1] %vm657, 0.0
      %1235 = vst.msk [vmem:[%s1230 + $0xa0] sm:$0x1] %vm657, 0.0
      %1236 = vst.msk [vmem:[%s1230 + $0xc8] sm:$0x1] %vm657, 0.0
      %1237 = vst.msk [vmem:[%s1230 + $0xf0] sm:$0x1] %vm657, 0.0
      %1238 = vst.msk [vmem:[%s1230 + $0x118] sm:$0x1] %vm657, 0.0
      %1239 = vst.msk [vmem:[%s1230 + $0x21] sm:$0x1] %vm657, 0.0
      %1240 = vst.msk [vmem:[%s1230 + $0x49] sm:$0x1] %vm657, 0.0
      %1241 = vst.msk [vmem:[%s1230 + $0x71] sm:$0x1] %vm657, 0.0
      %1242 = vst.msk [vmem:[%s1230 + $0x99] sm:$0x1] %vm657, 0.0
      %1243 = vst.msk [vmem:[%s1230 + $0xc1] sm:$0x1] %vm657, 0.0
      %1244 = vst.msk [vmem:[%s1230 + $0xe9] sm:$0x1] %vm657, 0.0
      %1245 = vst.msk [vmem:[%s1230 + $0x111] sm:$0x1] %vm657, 0.0
      %1246 = vst.msk [vmem:[%s1230 + $0x139] sm:$0x1] %vm657, 0.0
      %1247 = vst.msk [vmem:[%s1230 + $0x1] sm:$0xff] %vm322, %v1187
      %1248 = vst.msk [vmem:[%s1230 + $0x9] sm:$0xff] %vm322, %v1188
      %1249 = vst.msk [vmem:[%s1230 + $0x11] sm:$0xff] %vm322, %v1189
      %1250 = vst.msk [vmem:[%s1230 + $0x19] sm:$0xff] %vm322, %v1190
      %1251 = vst.msk [vmem:[%s1230 + $0x29] sm:$0xff] %vm322, %v1191
      %1252 = vst.msk [vmem:[%s1230 + $0x31] sm:$0xff] %vm322, %v1192
      %1253 = vst.msk [vmem:[%s1230 + $0x39] sm:$0xff] %vm322, %v1193
      %1254 = vst.msk [vmem:[%s1230 + $0x41] sm:$0xff] %vm322, %v1194
      %1255 = vst.msk [vmem:[%s1230 + $0x51] sm:$0xff] %vm322, %v1195
      %1256 = vst.msk [vmem:[%s1230 + $0x59] sm:$0xff] %vm322, %v1196
      %1257 = vst.msk [vmem:[%s1230 + $0x61] sm:$0xff] %vm322, %v1197
      %1258 = vst.msk [vmem:[%s1230 + $0x69] sm:$0xff] %vm322, %v1198
      %1259 = vst.msk [vmem:[%s1230 + $0x79] sm:$0xff] %vm322, %v1199
      %1260 = vst.msk [vmem:[%s1230 + $0x81] sm:$0xff] %vm322, %v1200
      %1261 = vst.msk [vmem:[%s1230 + $0x89] sm:$0xff] %vm322, %v1201
      %1262 = vst.msk [vmem:[%s1230 + $0x91] sm:$0xff] %vm322, %v1202
      %1263 = vst.msk [vmem:[%s1230 + $0xa1] sm:$0xff] %vm322, %v1203
      %1264 = vst.msk [vmem:[%s1230 + $0xa9] sm:$0xff] %vm322, %v1204
      %1265 = vst.msk [vmem:[%s1230 + $0xb1] sm:$0xff] %vm322, %v1205
      %1266 = vst.msk [vmem:[%s1230 + $0xb9] sm:$0xff] %vm322, %v1206
      %1267 = vst.msk [vmem:[%s1230 + $0xc9] sm:$0xff] %vm322, %v1207
      %1268 = vst.msk [vmem:[%s1230 + $0xd1] sm:$0xff] %vm322, %v1208
      %1269 = vst.msk [vmem:[%s1230 + $0xd9] sm:$0xff] %vm322, %v1209
      %1270 = vst.msk [vmem:[%s1230 + $0xe1] sm:$0xff] %vm322, %v1210
      %1271 = vst.msk [vmem:[%s1230 + $0xf1] sm:$0xff] %vm322, %v1211
      %1272 = vst.msk [vmem:[%s1230 + $0xf9] sm:$0xff] %vm322, %v1212
      %1273 = vst.msk [vmem:[%s1230 + $0x101] sm:$0xff] %vm322, %v1213
      %1274 = vst.msk [vmem:[%s1230 + $0x109] sm:$0xff] %vm322, %v1214
      %1275 = vst.msk [vmem:[%s1230 + $0x119] sm:$0xff] %vm322, %v1215
      %1276 = vst.msk [vmem:[%s1230 + $0x121] sm:$0xff] %vm322, %v1216
      %1277 = vst.msk [vmem:[%s1230 + $0x129] sm:$0xff] %vm322, %v1217
      %1278 = vst.msk [vmem:[%s1230 + $0x131] sm:$0xff] %vm322, %v1218
      %v1279 = vld [vmem:[%s4] sm:$0x1]
      %v1280 = vld [vmem:[#allocation3] sm:$0xff]
      %v1281 = vld [vmem:[#allocation3 + $0x8] sm:$0xff]
      %v1282 = vld [vmem:[#allocation3 + $0x10] sm:$0xff]
      %v1283 = vld [vmem:[#allocation3 + $0x18] sm:$0xff]
      %v1284 = vld [vmem:[#allocation3 + $0x28] sm:$0xff]
      %v1285 = vld [vmem:[#allocation3 + $0x30] sm:$0xff]
      %v1286 = vld [vmem:[#allocation3 + $0x38] sm:$0xff]
      %v1287 = vld [vmem:[#allocation3 + $0x40] sm:$0xff]
      %v1288 = vld [vmem:[#allocation3 + $0x50] sm:$0xff]
      %v1289 = vld [vmem:[#allocation3 + $0x58] sm:$0xff]
      %v1290 = vld [vmem:[#allocation3 + $0x60] sm:$0xff]
      %v1291 = vld [vmem:[#allocation3 + $0x68] sm:$0xff]
      %v1292 = vld [vmem:[#allocation3 + $0x78] sm:$0xff]
      %v1293 = vld [vmem:[#allocation3 + $0x80] sm:$0xff]
      %v1294 = vld [vmem:[#allocation3 + $0x88] sm:$0xff]
      %v1295 = vld [vmem:[#allocation3 + $0x90] sm:$0xff]
      %v1296 = vld [vmem:[#allocation3 + $0xa0] sm:$0xff]
      %v1297 = vld [vmem:[#allocation3 + $0xa8] sm:$0xff]
      %v1298 = vld [vmem:[#allocation3 + $0xb0] sm:$0xff]
      %v1299 = vld [vmem:[#allocation3 + $0xb8] sm:$0xff]
      %v1300 = vld [vmem:[#allocation3 + $0xc8] sm:$0xff]
      %v1301 = vld [vmem:[#allocation3 + $0xd0] sm:$0xff]
      %v1302 = vld [vmem:[#allocation3 + $0xd8] sm:$0xff]
      %v1303 = vld [vmem:[#allocation3 + $0xe0] sm:$0xff]
      %v1304 = vld [vmem:[#allocation3 + $0xf0] sm:$0xff]
      %v1305 = vld [vmem:[#allocation3 + $0xf8] sm:$0xff]
      %v1306 = vld [vmem:[#allocation3 + $0x100] sm:$0xff]
      %v1307 = vld [vmem:[#allocation3 + $0x108] sm:$0xff]
      %v1308 = vld [vmem:[#allocation3 + $0x118] sm:$0xff]
      %v1309 = vld [vmem:[#allocation3 + $0x120] sm:$0xff]
      %v1310 = vld [vmem:[#allocation3 + $0x128] sm:$0xff]
      %v1311 = vld [vmem:[#allocation3 + $0x130] sm:$0xff]
      %v1312 = vld [vmem:[%s3] sm:$0xff]
      %v1313 = vld [vmem:[%s3 + $0x8] sm:$0xff]
      %v1314 = vld [vmem:[%s3 + $0x10] sm:$0xff]
      %v1315 = vld [vmem:[%s3 + $0x18] sm:$0xff]
      %v1317 = vsel %vm322, %v1280, 0
      %v1320 = vsel %vm322, %v1281, 0
      %v1323 = vsel %vm322, %v1282, 0
      %v1326 = vsel %vm322, %v1283, 0
      %v1329 = vsel %vm322, %v1284, 0
      %v1332 = vsel %vm322, %v1285, 0
      %v1335 = vsel %vm322, %v1286, 0
      %v1338 = vsel %vm322, %v1287, 0
      %v1341 = vsel %vm322, %v1288, 0
      %v1344 = vsel %vm322, %v1289, 0
      %v1347 = vsel %vm322, %v1290, 0
      %v1350 = vsel %vm322, %v1291, 0
      %v1353 = vsel %vm322, %v1292, 0
      %v1356 = vsel %vm322, %v1293, 0
      %v1359 = vsel %vm322, %v1294, 0
      %v1362 = vsel %vm322, %v1295, 0
      %v1365 = vsel %vm322, %v1296, 0
      %v1368 = vsel %vm322, %v1297, 0
      %v1371 = vsel %vm322, %v1298, 0
      %v1374 = vsel %vm322, %v1299, 0
      %v1377 = vsel %vm322, %v1300, 0
      %v1380 = vsel %vm322, %v1301, 0
      %v1383 = vsel %vm322, %v1302, 0
      %v1386 = vsel %vm322, %v1303, 0
      %v1389 = vsel %vm322, %v1304, 0
      %v1392 = vsel %vm322, %v1305, 0
      %v1395 = vsel %vm322, %v1306, 0
      %v1398 = vsel %vm322, %v1307, 0
      %v1401 = vsel %vm322, %v1308, 0
      %v1404 = vsel %vm322, %v1309, 0
      %v1407 = vsel %vm322, %v1310, 0
      %v1410 = vsel %vm322, %v1311, 0
      %1412 = vmatprep.subr.mxu0 0.0
      %1413 = vmatpush1.msra.mxu0 %v1312
      %1414 = vmatprep.subr.mxu0 0.0
      %1415 = vmatpush1.msra.mxu0 %v1313
      %1416 = vmatprep.subr.mxu0 0.0
      %1417 = vmatpush1.msra.mxu0 %v1314
      %1418 = vmatprep.subr.mxu0 0.0
      %1419 = vmatpush1.msra.mxu0 %v1315
      %1420 = vmatprep.subr.mxu0 0.0
      %1421 = vmatpush1.msra.mxu0 0.0
      %1422 = vmatprep.subr.mxu0 0.0
      %1423 = vmatpush1.msra.mxu0 0.0
      %1424 = vmatprep.subr.mxu0 0.0
      %1425 = vmatpush1.msra.mxu0 0.0
      %1426 = vmatprep.subr.mxu0 0.0
      %1427 = vmatpush1.msra.mxu0 0.0
      %1428 = vmatprep.subr.mxu0 0.0
      %1429 = vmatpush1.msra.mxu0 0.0
      %1430 = vmatprep.subr.mxu0 0.0
      %1431 = vmatpush1.msra.mxu0 0.0
      %1432 = vmatprep.subr.mxu0 0.0
      %1433 = vmatpush1.msra.mxu0 0.0
      %1434 = vmatprep.subr.mxu0 0.0
      %1435 = vmatpush1.msra.mxu0 0.0
      %1436 = vmatprep.subr.mxu0 0.0
      %1437 = vmatpush1.msra.mxu0 0.0
      %1438 = vmatprep.subr.mxu0 0.0
      %1439 = vmatpush1.msra.mxu0 0.0
      %1440 = vmatprep.subr.mxu0 0.0
      %1441 = vmatpush1.msra.mxu0 0.0
      %1442 = vmatprep.subr.mxu0 0.0
      %1443 = vmatpush1.msra.mxu0 0.0
      %1444 = vmatprep.subr.mxu0 0.0
      %1445 = vmatpush1.msra.mxu0 0.0
      %1446 = vmatprep.subr.mxu0 0.0
      %1447 = vmatpush1.msra.mxu0 0.0
      %1448 = vmatprep.subr.mxu0 0.0
      %1449 = vmatpush1.msra.mxu0 0.0
      %1450 = vmatprep.subr.mxu0 0.0
      %1451 = vmatpush1.msra.mxu0 0.0
      %1452 = vmatprep.subr.mxu0 0.0
      %1453 = vmatpush1.msra.mxu0 0.0
      %1454 = vmatprep.subr.mxu0 0.0
      %1455 = vmatpush1.msra.mxu0 0.0
      %1456 = vmatprep.subr.mxu0 0.0
      %1457 = vmatpush1.msra.mxu0 0.0
      %1458 = vmatprep.subr.mxu0 0.0
      %1459 = vmatpush1.msra.mxu0 0.0
      %1460 = vmatprep.subr.mxu0 0.0
      %1461 = vmatpush1.msra.mxu0 0.0
      %1462 = vmatprep.subr.mxu0 0.0
      %1463 = vmatpush1.msra.mxu0 0.0
      %1464 = vmatprep.subr.mxu0 0.0
      %1465 = vmatpush1.msra.mxu0 0.0
      %1466 = vmatprep.subr.mxu0 0.0
      %1467 = vmatpush1.msra.mxu0 0.0
      %1468 = vmatprep.subr.mxu0 0.0
      %1469 = vmatpush1.msra.mxu0 0.0
      %1470 = vmatprep.subr.mxu0 0.0
      %1471 = vmatpush1.msra.mxu0 0.0
      %1472 = vmatprep.subr.mxu0 0.0
      %1473 = vmatpush1.msra.mxu0 0.0
      %1474 = vmatprep.subr.mxu0 0.0
      %1475 = vmatpush1.msra.mxu0 0.0
      %1476 = vmatprep.mubr.f32.mxu0 0.0
      %1477 = vmatmul.mubr.f32.gmra.mrb[0].mxu0 %v1317
      %v1478 = vpop.f32.mrb[0].mxu0
      %v1479 = vadd.f32 0.0, %v1478
      %v1480 = vpop.f32.mrb[0].mxu0
      %1481 = vmatprep.mubr.f32.mxu0 0.0
      %1482 = vmatmul.mubr.f32.gmra.mrb[0].mxu0 %v1320
      %v1483 = vpop.f32.mrb[0].mxu0
      %v1484 = vadd.f32 0.0, %v1483
      %v1485 = vpop.f32.mrb[0].mxu0
      %1486 = vmatprep.mubr.f32.mxu0 0.0
      %1487 = vmatmul.mubr.f32.gmra.mrb[0].mxu0 %v1323
      %v1488 = vpop.f32.mrb[0].mxu0
      %v1489 = vadd.f32 0.0, %v1488
      %v1490 = vpop.f32.mrb[0].mxu0
      %1491 = vmatprep.mubr.f32.mxu0 0.0
      %1492 = vmatmul.mubr.f32.gmra.mrb[0].mxu0 %v1326
      %v1493 = vpop.f32.mrb[0].mxu0
      %v1494 = vadd.f32 0.0, %v1493
      %v1495 = vpop.f32.mrb[0].mxu0
      %1496 = vmatprep.mubr.f32.mxu0 0.0
      %1497 = vmatmul.mubr.f32.gmra.mrb[0].mxu0 %v1329
      %v1498 = vpop.f32.mrb[0].mxu0
      %v1499 = vadd.f32 0.0, %v1498
      %v1500 = vpop.f32.mrb[0].mxu0
      %1501 = vmatprep.mubr.f32.mxu0 0.0
      %1502 = vmatmul.mubr.f32.gmra.mrb[0].mxu0 %v1332
      %v1503 = vpop.f32.mrb[0].mxu0
      %v1504 = vadd.f32 0.0, %v1503
      %v1505 = vpop.f32.mrb[0].mxu0
      %1506 = vmatprep.mubr.f32.mxu0 0.0
      %1507 = vmatmul.mubr.f32.gmra.mrb[0].mxu0 %v1335
      %v1508 = vpop.f32.mrb[0].mxu0
      %v1509 = vadd.f32 0.0, %v1508
      %v1510 = vpop.f32.mrb[0].mxu0
      %1511 = vmatprep.mubr.f32.mxu0 0.0
      %1512 = vmatmul.mubr.f32.gmra.mrb[0].mxu0 %v1338
      %v1513 = vpop.f32.mrb[0].mxu0
      %v1514 = vadd.f32 0.0, %v1513
      %v1515 = vpop.f32.mrb[0].mxu0
      %1516 = vmatprep.mubr.f32.mxu0 0.0
      %1517 = vmatmul.mubr.f32.gmra.mrb[0].mxu0 %v1341
      %v1518 = vpop.f32.mrb[0].mxu0
      %v1519 = vadd.f32 0.0, %v1518
      %v1520 = vpop.f32.mrb[0].mxu0
      %1521 = vmatprep.mubr.f32.mxu0 0.0
      %1522 = vmatmul.mubr.f32.gmra.mrb[0].mxu0 %v1344
      %v1523 = vpop.f32.mrb[0].mxu0
      %v1524 = vadd.f32 0.0, %v1523
      %v1525 = vpop.f32.mrb[0].mxu0
      %1526 = vmatprep.mubr.f32.mxu0 0.0
      %1527 = vmatmul.mubr.f32.gmra.mrb[0].mxu0 %v1347
      %v1528 = vpop.f32.mrb[0].mxu0
      %v1529 = vadd.f32 0.0, %v1528
      %v1530 = vpop.f32.mrb[0].mxu0
      %1531 = vmatprep.mubr.f32.mxu0 0.0
      %1532 = vmatmul.mubr.f32.gmra.mrb[0].mxu0 %v1350
      %v1533 = vpop.f32.mrb[0].mxu0
      %v1534 = vadd.f32 0.0, %v1533
      %v1535 = vpop.f32.mrb[0].mxu0
      %1536 = vmatprep.mubr.f32.mxu0 0.0
      %1537 = vmatmul.mubr.f32.gmra.mrb[0].mxu0 %v1353
      %v1538 = vpop.f32.mrb[0].mxu0
      %v1539 = vadd.f32 0.0, %v1538
      %v1540 = vpop.f32.mrb[0].mxu0
      %1541 = vmatprep.mubr.f32.mxu0 0.0
      %1542 = vmatmul.mubr.f32.gmra.mrb[0].mxu0 %v1356
      %v1543 = vpop.f32.mrb[0].mxu0
      %v1544 = vadd.f32 0.0, %v1543
      %v1545 = vpop.f32.mrb[0].mxu0
      %1546 = vmatprep.mubr.f32.mxu0 0.0
      %1547 = vmatmul.mubr.f32.gmra.mrb[0].mxu0 %v1359
      %v1548 = vpop.f32.mrb[0].mxu0
      %v1549 = vadd.f32 0.0, %v1548
      %v1550 = vpop.f32.mrb[0].mxu0
      %1551 = vmatprep.mubr.f32.mxu0 0.0
      %1552 = vmatmul.mubr.f32.gmra.mrb[0].mxu0 %v1362
      %v1553 = vpop.f32.mrb[0].mxu0
      %v1554 = vadd.f32 0.0, %v1553
      %v1555 = vpop.f32.mrb[0].mxu0
      %1556 = vmatprep.mubr.f32.mxu0 0.0
      %1557 = vmatmul.mubr.f32.gmra.mrb[0].mxu0 %v1365
      %v1558 = vpop.f32.mrb[0].mxu0
      %v1559 = vadd.f32 0.0, %v1558
      %v1560 = vpop.f32.mrb[0].mxu0
      %1561 = vmatprep.mubr.f32.mxu0 0.0
      %1562 = vmatmul.mubr.f32.gmra.mrb[0].mxu0 %v1368
      %v1563 = vpop.f32.mrb[0].mxu0
      %v1564 = vadd.f32 0.0, %v1563
      %v1565 = vpop.f32.mrb[0].mxu0
      %1566 = vmatprep.mubr.f32.mxu0 0.0
      %1567 = vmatmul.mubr.f32.gmra.mrb[0].mxu0 %v1371
      %v1568 = vpop.f32.mrb[0].mxu0
      %v1569 = vadd.f32 0.0, %v1568
      %v1570 = vpop.f32.mrb[0].mxu0
      %1571 = vmatprep.mubr.f32.mxu0 0.0
      %1572 = vmatmul.mubr.f32.gmra.mrb[0].mxu0 %v1374
      %v1573 = vpop.f32.mrb[0].mxu0
      %v1574 = vadd.f32 0.0, %v1573
      %v1575 = vpop.f32.mrb[0].mxu0
      %1576 = vmatprep.mubr.f32.mxu0 0.0
      %1577 = vmatmul.mubr.f32.gmra.mrb[0].mxu0 %v1377
      %v1578 = vpop.f32.mrb[0].mxu0
      %v1579 = vadd.f32 0.0, %v1578
      %v1580 = vpop.f32.mrb[0].mxu0
      %1581 = vmatprep.mubr.f32.mxu0 0.0
      %1582 = vmatmul.mubr.f32.gmra.mrb[0].mxu0 %v1380
      %v1583 = vpop.f32.mrb[0].mxu0
      %v1584 = vadd.f32 0.0, %v1583
      %v1585 = vpop.f32.mrb[0].mxu0
      %1586 = vmatprep.mubr.f32.mxu0 0.0
      %1587 = vmatmul.mubr.f32.gmra.mrb[0].mxu0 %v1383
      %v1588 = vpop.f32.mrb[0].mxu0
      %v1589 = vadd.f32 0.0, %v1588
      %v1590 = vpop.f32.mrb[0].mxu0
      %1591 = vmatprep.mubr.f32.mxu0 0.0
      %1592 = vmatmul.mubr.f32.gmra.mrb[0].mxu0 %v1386
      %v1593 = vpop.f32.mrb[0].mxu0
      %v1594 = vadd.f32 0.0, %v1593
      %v1595 = vpop.f32.mrb[0].mxu0
      %1596 = vmatprep.mubr.f32.mxu0 0.0
      %1597 = vmatmul.mubr.f32.gmra.mrb[0].mxu0 %v1389
      %v1598 = vpop.f32.mrb[0].mxu0
      %v1599 = vadd.f32 0.0, %v1598
      %v1600 = vpop.f32.mrb[0].mxu0
      %1601 = vmatprep.mubr.f32.mxu0 0.0
      %1602 = vmatmul.mubr.f32.gmra.mrb[0].mxu0 %v1392
      %v1603 = vpop.f32.mrb[0].mxu0
      %v1604 = vadd.f32 0.0, %v1603
      %v1605 = vpop.f32.mrb[0].mxu0
      %1606 = vmatprep.mubr.f32.mxu0 0.0
      %1607 = vmatmul.mubr.f32.gmra.mrb[0].mxu0 %v1395
      %v1608 = vpop.f32.mrb[0].mxu0
      %v1609 = vadd.f32 0.0, %v1608
      %v1610 = vpop.f32.mrb[0].mxu0
      %1611 = vmatprep.mubr.f32.mxu0 0.0
      %1612 = vmatmul.mubr.f32.gmra.mrb[0].mxu0 %v1398
      %v1613 = vpop.f32.mrb[0].mxu0
      %v1614 = vadd.f32 0.0, %v1613
      %v1615 = vpop.f32.mrb[0].mxu0
      %1616 = vmatprep.mubr.f32.mxu0 0.0
      %1617 = vmatmul.mubr.f32.gmra.mrb[0].mxu0 %v1401
      %v1618 = vpop.f32.mrb[0].mxu0
      %v1619 = vadd.f32 0.0, %v1618
      %v1620 = vpop.f32.mrb[0].mxu0
      %1621 = vmatprep.mubr.f32.mxu0 0.0
      %1622 = vmatmul.mubr.f32.gmra.mrb[0].mxu0 %v1404
      %v1623 = vpop.f32.mrb[0].mxu0
      %v1624 = vadd.f32 0.0, %v1623
      %v1625 = vpop.f32.mrb[0].mxu0
      %1626 = vmatprep.mubr.f32.mxu0 0.0
      %1627 = vmatmul.mubr.f32.gmra.mrb[0].mxu0 %v1407
      %v1628 = vpop.f32.mrb[0].mxu0
      %v1629 = vadd.f32 0.0, %v1628
      %v1630 = vpop.f32.mrb[0].mxu0
      %1631 = vmatprep.mubr.f32.mxu0 0.0
      %1632 = vmatmul.mubr.f32.gmra.mrb[0].mxu0 %v1410
      %v1633 = vpop.f32.mrb[0].mxu0
      %v1634 = vadd.f32 0.0, %v1633
      %v1635 = vpop.f32.mrb[0].mxu0
      %1636 = vdwg.mxu0
      %v1638 = vlaneseq
      %v1639 = vshrl.u32 %v1638, 7
      %v1640 = vsub.s32 0, %v1639
      %v1641 = vrot.slane %v1279, %v1640
      %v1643 = vadd.f32 %v1641, %v1479
      %v1644 = vadd.f32 %v1641, %v1484
      %v1645 = vadd.f32 %v1641, %v1489
      %v1646 = vadd.f32 %v1641, %v1494
      %v1647 = vadd.f32 %v1641, %v1499
      %v1648 = vadd.f32 %v1641, %v1504
      %v1649 = vadd.f32 %v1641, %v1509
      %v1650 = vadd.f32 %v1641, %v1514
      %v1651 = vadd.f32 %v1641, %v1519
      %v1652 = vadd.f32 %v1641, %v1524
      %v1653 = vadd.f32 %v1641, %v1529
      %v1654 = vadd.f32 %v1641, %v1534
      %v1655 = vadd.f32 %v1641, %v1539
      %v1656 = vadd.f32 %v1641, %v1544
      %v1657 = vadd.f32 %v1641, %v1549
      %v1658 = vadd.f32 %v1641, %v1554
      %v1659 = vadd.f32 %v1641, %v1559
      %v1660 = vadd.f32 %v1641, %v1564
      %v1661 = vadd.f32 %v1641, %v1569
      %v1662 = vadd.f32 %v1641, %v1574
      %v1663 = vadd.f32 %v1641, %v1579
      %v1664 = vadd.f32 %v1641, %v1584
      %v1665 = vadd.f32 %v1641, %v1589
      %v1666 = vadd.f32 %v1641, %v1594
      %v1667 = vadd.f32 %v1641, %v1599
      %v1668 = vadd.f32 %v1641, %v1604
      %v1669 = vadd.f32 %v1641, %v1609
      %v1670 = vadd.f32 %v1641, %v1614
      %v1671 = vadd.f32 %v1641, %v1619
      %v1672 = vadd.f32 %v1641, %v1624
      %v1673 = vadd.f32 %v1641, %v1629
      %v1674 = vadd.f32 %v1641, %v1634
      %v1675 = vld [vmem:[#allocation3 + $0x1] sm:$0xff]
      %v1676 = vld [vmem:[#allocation3 + $0x9] sm:$0xff]
      %v1677 = vld [vmem:[#allocation3 + $0x11] sm:$0xff]
      %v1678 = vld [vmem:[#allocation3 + $0x19] sm:$0xff]
      %v1679 = vld [vmem:[#allocation3 + $0x29] sm:$0xff]
      %v1680 = vld [vmem:[#allocation3 + $0x31] sm:$0xff]
      %v1681 = vld [vmem:[#allocation3 + $0x39] sm:$0xff]
      %v1682 = vld [vmem:[#allocation3 + $0x41] sm:$0xff]
      %v1683 = vld [vmem:[#allocation3 + $0x51] sm:$0xff]
      %v1684 = vld [vmem:[#allocation3 + $0x59] sm:$0xff]
      %v1685 = vld [vmem:[#allocation3 + $0x61] sm:$0xff]
      %v1686 = vld [vmem:[#allocation3 + $0x69] sm:$0xff]
      %v1687 = vld [vmem:[#allocation3 + $0x79] sm:$0xff]
      %v1688 = vld [vmem:[#allocation3 + $0x81] sm:$0xff]
      %v1689 = vld [vmem:[#allocation3 + $0x89] sm:$0xff]
      %v1690 = vld [vmem:[#allocation3 + $0x91] sm:$0xff]
      %v1691 = vld [vmem:[#allocation3 + $0xa1] sm:$0xff]
      %v1692 = vld [vmem:[#allocation3 + $0xa9] sm:$0xff]
      %v1693 = vld [vmem:[#allocation3 + $0xb1] sm:$0xff]
      %v1694 = vld [vmem:[#allocation3 + $0xb9] sm:$0xff]
      %v1695 = vld [vmem:[#allocation3 + $0xc9] sm:$0xff]
      %v1696 = vld [vmem:[#allocation3 + $0xd1] sm:$0xff]
      %v1697 = vld [vmem:[#allocation3 + $0xd9] sm:$0xff]
      %v1698 = vld [vmem:[#allocation3 + $0xe1] sm:$0xff]
      %v1699 = vld [vmem:[#allocation3 + $0xf1] sm:$0xff]
      %v1700 = vld [vmem:[#allocation3 + $0xf9] sm:$0xff]
      %v1701 = vld [vmem:[#allocation3 + $0x101] sm:$0xff]
      %v1702 = vld [vmem:[#allocation3 + $0x109] sm:$0xff]
      %v1703 = vld [vmem:[#allocation3 + $0x119] sm:$0xff]
      %v1704 = vld [vmem:[#allocation3 + $0x121] sm:$0xff]
      %v1705 = vld [vmem:[#allocation3 + $0x129] sm:$0xff]
      %v1706 = vld [vmem:[#allocation3 + $0x131] sm:$0xff]
      %v1707 = vld [vmem:[%s3 + $0x20] sm:$0xff]
      %v1708 = vld [vmem:[%s3 + $0x28] sm:$0xff]
      %v1709 = vld [vmem:[%s3 + $0x30] sm:$0xff]
      %v1710 = vld [vmem:[%s3 + $0x38] sm:$0xff]
      %v1712 = vsel %vm322, %v1675, 0
      %v1715 = vsel %vm322, %v1676, 0
      %v1718 = vsel %vm322, %v1677, 0
      %v1721 = vsel %vm322, %v1678, 0
      %v1724 = vsel %vm322, %v1679, 0
      %v1727 = vsel %vm322, %v1680, 0
      %v1730 = vsel %vm322, %v1681, 0
      %v1733 = vsel %vm322, %v1682, 0
      %v1736 = vsel %vm322, %v1683, 0
      %v1739 = vsel %vm322, %v1684, 0
      %v1742 = vsel %vm322, %v1685, 0
      %v1745 = vsel %vm322, %v1686, 0
      %v1748 = vsel %vm322, %v1687, 0
      %v1751 = vsel %vm322, %v1688, 0
      %v1754 = vsel %vm322, %v1689, 0
      %v1757 = vsel %vm322, %v1690, 0
      %v1760 = vsel %vm322, %v1691, 0
      %v1763 = vsel %vm322, %v1692, 0
      %v1766 = vsel %vm322, %v1693, 0
      %v1769 = vsel %vm322, %v1694, 0
      %v1772 = vsel %vm322, %v1695, 0
      %v1775 = vsel %vm322, %v1696, 0
      %v1778 = vsel %vm322, %v1697, 0
      %v1781 = vsel %vm322, %v1698, 0
      %v1784 = vsel %vm322, %v1699, 0
      %v1787 = vsel %vm322, %v1700, 0
      %v1790 = vsel %vm322, %v1701, 0
      %v1793 = vsel %vm322, %v1702, 0
      %v1796 = vsel %vm322, %v1703, 0
      %v1799 = vsel %vm322, %v1704, 0
      %v1802 = vsel %vm322, %v1705, 0
      %v1805 = vsel %vm322, %v1706, 0
      %1807 = vmatprep.subr.mxu0 0.0
      %1808 = vmatpush1.msra.mxu0 %v1707
      %1809 = vmatprep.subr.mxu0 0.0
      %1810 = vmatpush1.msra.mxu0 %v1708
      %1811 = vmatprep.subr.mxu0 0.0
      %1812 = vmatpush1.msra.mxu0 %v1709
      %1813 = vmatprep.subr.mxu0 0.0
      %1814 = vmatpush1.msra.mxu0 %v1710
      %1815 = vmatprep.subr.mxu0 0.0
      %1816 = vmatpush1.msra.mxu0 0.0
      %1817 = vmatprep.subr.mxu0 0.0
      %1818 = vmatpush1.msra.mxu0 0.0
      %1819 = vmatprep.subr.mxu0 0.0
      %1820 = vmatpush1.msra.mxu0 0.0
      %1821 = vmatprep.subr.mxu0 0.0
      %1822 = vmatpush1.msra.mxu0 0.0
      %1823 = vmatprep.subr.mxu0 0.0
      %1824 = vmatpush1.msra.mxu0 0.0
      %1825 = vmatprep.subr.mxu0 0.0
      %1826 = vmatpush1.msra.mxu0 0.0
      %1827 = vmatprep.subr.mxu0 0.0
      %1828 = vmatpush1.msra.mxu0 0.0
      %1829 = vmatprep.subr.mxu0 0.0
      %1830 = vmatpush1.msra.mxu0 0.0
      %1831 = vmatprep.subr.mxu0 0.0
      %1832 = vmatpush1.msra.mxu0 0.0
      %1833 = vmatprep.subr.mxu0 0.0
      %1834 = vmatpush1.msra.mxu0 0.0
      %1835 = vmatprep.subr.mxu0 0.0
      %1836 = vmatpush1.msra.mxu0 0.0
      %1837 = vmatprep.subr.mxu0 0.0
      %1838 = vmatpush1.msra.mxu0 0.0
      %1839 = vmatprep.subr.mxu0 0.0
      %1840 = vmatpush1.msra.mxu0 0.0
      %1841 = vmatprep.subr.mxu0 0.0
      %1842 = vmatpush1.msra.mxu0 0.0
      %1843 = vmatprep.subr.mxu0 0.0
      %1844 = vmatpush1.msra.mxu0 0.0
      %1845 = vmatprep.subr.mxu0 0.0
      %1846 = vmatpush1.msra.mxu0 0.0
      %1847 = vmatprep.subr.mxu0 0.0
      %1848 = vmatpush1.msra.mxu0 0.0
      %1849 = vmatprep.subr.mxu0 0.0
      %1850 = vmatpush1.msra.mxu0 0.0
      %1851 = vmatprep.subr.mxu0 0.0
      %1852 = vmatpush1.msra.mxu0 0.0
      %1853 = vmatprep.subr.mxu0 0.0
      %1854 = vmatpush1.msra.mxu0 0.0
      %1855 = vmatprep.subr.mxu0 0.0
      %1856 = vmatpush1.msra.mxu0 0.0
      %1857 = vmatprep.subr.mxu0 0.0
      %1858 = vmatpush1.msra.mxu0 0.0
      %1859 = vmatprep.subr.mxu0 0.0
      %1860 = vmatpush1.msra.mxu0 0.0
      %1861 = vmatprep.subr.mxu0 0.0
      %1862 = vmatpush1.msra.mxu0 0.0
      %1863 = vmatprep.subr.mxu0 0.0
      %1864 = vmatpush1.msra.mxu0 0.0
      %1865 = vmatprep.subr.mxu0 0.0
      %1866 = vmatpush1.msra.mxu0 0.0
      %1867 = vmatprep.subr.mxu0 0.0
      %1868 = vmatpush1.msra.mxu0 0.0
      %1869 = vmatprep.subr.mxu0 0.0
      %1870 = vmatpush1.msra.mxu0 0.0
      %1871 = vmatprep.mubr.f32.mxu0 0.0
      %1872 = vmatmul.mubr.f32.gmra.mrb[0].mxu0 %v1712
      %v1873 = vpop.f32.mrb[0].mxu0
      %v1874 = vadd.f32 0.0, %v1873
      %v1875 = vpop.f32.mrb[0].mxu0
      %1876 = vmatprep.mubr.f32.mxu0 0.0
      %1877 = vmatmul.mubr.f32.gmra.mrb[0].mxu0 %v1715
      %v1878 = vpop.f32.mrb[0].mxu0
      %v1879 = vadd.f32 0.0, %v1878
      %v1880 = vpop.f32.mrb[0].mxu0
      %1881 = vmatprep.mubr.f32.mxu0 0.0
      %1882 = vmatmul.mubr.f32.gmra.mrb[0].mxu0 %v1718
      %v1883 = vpop.f32.mrb[0].mxu0
      %v1884 = vadd.f32 0.0, %v1883
      %v1885 = vpop.f32.mrb[0].mxu0
      %1886 = vmatprep.mubr.f32.mxu0 0.0
      %1887 = vmatmul.mubr.f32.gmra.mrb[0].mxu0 %v1721
      %v1888 = vpop.f32.mrb[0].mxu0
      %v1889 = vadd.f32 0.0, %v1888
      %v1890 = vpop.f32.mrb[0].mxu0
      %1891 = vmatprep.mubr.f32.mxu0 0.0
      %1892 = vmatmul.mubr.f32.gmra.mrb[0].mxu0 %v1724
      %v1893 = vpop.f32.mrb[0].mxu0
      %v1894 = vadd.f32 0.0, %v1893
      %v1895 = vpop.f32.mrb[0].mxu0
      %1896 = vmatprep.mubr.f32.mxu0 0.0
      %1897 = vmatmul.mubr.f32.gmra.mrb[0].mxu0 %v1727
      %v1898 = vpop.f32.mrb[0].mxu0
      %v1899 = vadd.f32 0.0, %v1898
      %v1900 = vpop.f32.mrb[0].mxu0
      %1901 = vmatprep.mubr.f32.mxu0 0.0
      %1902 = vmatmul.mubr.f32.gmra.mrb[0].mxu0 %v1730
      %v1903 = vpop.f32.mrb[0].mxu0
      %v1904 = vadd.f32 0.0, %v1903
      %v1905 = vpop.f32.mrb[0].mxu0
      %1906 = vmatprep.mubr.f32.mxu0 0.0
      %1907 = vmatmul.mubr.f32.gmra.mrb[0].mxu0 %v1733
      %v1908 = vpop.f32.mrb[0].mxu0
      %v1909 = vadd.f32 0.0, %v1908
      %v1910 = vpop.f32.mrb[0].mxu0
      %1911 = vmatprep.mubr.f32.mxu0 0.0
      %1912 = vmatmul.mubr.f32.gmra.mrb[0].mxu0 %v1736
      %v1913 = vpop.f32.mrb[0].mxu0
      %v1914 = vadd.f32 0.0, %v1913
      %v1915 = vpop.f32.mrb[0].mxu0
      %1916 = vmatprep.mubr.f32.mxu0 0.0
      %1917 = vmatmul.mubr.f32.gmra.mrb[0].mxu0 %v1739
      %v1918 = vpop.f32.mrb[0].mxu0
      %v1919 = vadd.f32 0.0, %v1918
      %v1920 = vpop.f32.mrb[0].mxu0
      %1921 = vmatprep.mubr.f32.mxu0 0.0
      %1922 = vmatmul.mubr.f32.gmra.mrb[0].mxu0 %v1742
      %v1923 = vpop.f32.mrb[0].mxu0
      %v1924 = vadd.f32 0.0, %v1923
      %v1925 = vpop.f32.mrb[0].mxu0
      %1926 = vmatprep.mubr.f32.mxu0 0.0
      %1927 = vmatmul.mubr.f32.gmra.mrb[0].mxu0 %v1745
      %v1928 = vpop.f32.mrb[0].mxu0
      %v1929 = vadd.f32 0.0, %v1928
      %v1930 = vpop.f32.mrb[0].mxu0
      %1931 = vmatprep.mubr.f32.mxu0 0.0
      %1932 = vmatmul.mubr.f32.gmra.mrb[0].mxu0 %v1748
      %v1933 = vpop.f32.mrb[0].mxu0
      %v1934 = vadd.f32 0.0, %v1933
      %v1935 = vpop.f32.mrb[0].mxu0
      %1936 = vmatprep.mubr.f32.mxu0 0.0
      %1937 = vmatmul.mubr.f32.gmra.mrb[0].mxu0 %v1751
      %v1938 = vpop.f32.mrb[0].mxu0
      %v1939 = vadd.f32 0.0, %v1938
      %v1940 = vpop.f32.mrb[0].mxu0
      %1941 = vmatprep.mubr.f32.mxu0 0.0
      %1942 = vmatmul.mubr.f32.gmra.mrb[0].mxu0 %v1754
      %v1943 = vpop.f32.mrb[0].mxu0
      %v1944 = vadd.f32 0.0, %v1943
      %v1945 = vpop.f32.mrb[0].mxu0
      %1946 = vmatprep.mubr.f32.mxu0 0.0
      %1947 = vmatmul.mubr.f32.gmra.mrb[0].mxu0 %v1757
      %v1948 = vpop.f32.mrb[0].mxu0
      %v1949 = vadd.f32 0.0, %v1948
      %v1950 = vpop.f32.mrb[0].mxu0
      %1951 = vmatprep.mubr.f32.mxu0 0.0
      %1952 = vmatmul.mubr.f32.gmra.mrb[0].mxu0 %v1760
      %v1953 = vpop.f32.mrb[0].mxu0
      %v1954 = vadd.f32 0.0, %v1953
      %v1955 = vpop.f32.mrb[0].mxu0
      %1956 = vmatprep.mubr.f32.mxu0 0.0
      %1957 = vmatmul.mubr.f32.gmra.mrb[0].mxu0 %v1763
      %v1958 = vpop.f32.mrb[0].mxu0
      %v1959 = vadd.f32 0.0, %v1958
      %v1960 = vpop.f32.mrb[0].mxu0
      %1961 = vmatprep.mubr.f32.mxu0 0.0
      %1962 = vmatmul.mubr.f32.gmra.mrb[0].mxu0 %v1766
      %v1963 = vpop.f32.mrb[0].mxu0
      %v1964 = vadd.f32 0.0, %v1963
      %v1965 = vpop.f32.mrb[0].mxu0
      %1966 = vmatprep.mubr.f32.mxu0 0.0
      %1967 = vmatmul.mubr.f32.gmra.mrb[0].mxu0 %v1769
      %v1968 = vpop.f32.mrb[0].mxu0
      %v1969 = vadd.f32 0.0, %v1968
      %v1970 = vpop.f32.mrb[0].mxu0
      %1971 = vmatprep.mubr.f32.mxu0 0.0
      %1972 = vmatmul.mubr.f32.gmra.mrb[0].mxu0 %v1772
      %v1973 = vpop.f32.mrb[0].mxu0
      %v1974 = vadd.f32 0.0, %v1973
      %v1975 = vpop.f32.mrb[0].mxu0
      %1976 = vmatprep.mubr.f32.mxu0 0.0
      %1977 = vmatmul.mubr.f32.gmra.mrb[0].mxu0 %v1775
      %v1978 = vpop.f32.mrb[0].mxu0
      %v1979 = vadd.f32 0.0, %v1978
      %v1980 = vpop.f32.mrb[0].mxu0
      %1981 = vmatprep.mubr.f32.mxu0 0.0
      %1982 = vmatmul.mubr.f32.gmra.mrb[0].mxu0 %v1778
      %v1983 = vpop.f32.mrb[0].mxu0
      %v1984 = vadd.f32 0.0, %v1983
      %v1985 = vpop.f32.mrb[0].mxu0
      %1986 = vmatprep.mubr.f32.mxu0 0.0
      %1987 = vmatmul.mubr.f32.gmra.mrb[0].mxu0 %v1781
      %v1988 = vpop.f32.mrb[0].mxu0
      %v1989 = vadd.f32 0.0, %v1988
      %v1990 = vpop.f32.mrb[0].mxu0
      %1991 = vmatprep.mubr.f32.mxu0 0.0
      %1992 = vmatmul.mubr.f32.gmra.mrb[0].mxu0 %v1784
      %v1993 = vpop.f32.mrb[0].mxu0
      %v1994 = vadd.f32 0.0, %v1993
      %v1995 = vpop.f32.mrb[0].mxu0
      %1996 = vmatprep.mubr.f32.mxu0 0.0
      %1997 = vmatmul.mubr.f32.gmra.mrb[0].mxu0 %v1787
      %v1998 = vpop.f32.mrb[0].mxu0
      %v1999 = vadd.f32 0.0, %v1998
      %v2000 = vpop.f32.mrb[0].mxu0
      %2001 = vmatprep.mubr.f32.mxu0 0.0
      %2002 = vmatmul.mubr.f32.gmra.mrb[0].mxu0 %v1790
      %v2003 = vpop.f32.mrb[0].mxu0
      %v2004 = vadd.f32 0.0, %v2003
      %v2005 = vpop.f32.mrb[0].mxu0
      %2006 = vmatprep.mubr.f32.mxu0 0.0
      %2007 = vmatmul.mubr.f32.gmra.mrb[0].mxu0 %v1793
      %v2008 = vpop.f32.mrb[0].mxu0
      %v2009 = vadd.f32 0.0, %v2008
      %v2010 = vpop.f32.mrb[0].mxu0
      %2011 = vmatprep.mubr.f32.mxu0 0.0
      %2012 = vmatmul.mubr.f32.gmra.mrb[0].mxu0 %v1796
      %v2013 = vpop.f32.mrb[0].mxu0
      %v2014 = vadd.f32 0.0, %v2013
      %v2015 = vpop.f32.mrb[0].mxu0
      %2016 = vmatprep.mubr.f32.mxu0 0.0
      %2017 = vmatmul.mubr.f32.gmra.mrb[0].mxu0 %v1799
      %v2018 = vpop.f32.mrb[0].mxu0
      %v2019 = vadd.f32 0.0, %v2018
      %v2020 = vpop.f32.mrb[0].mxu0
      %2021 = vmatprep.mubr.f32.mxu0 0.0
      %2022 = vmatmul.mubr.f32.gmra.mrb[0].mxu0 %v1802
      %v2023 = vpop.f32.mrb[0].mxu0
      %v2024 = vadd.f32 0.0, %v2023
      %v2025 = vpop.f32.mrb[0].mxu0
      %2026 = vmatprep.mubr.f32.mxu0 0.0
      %2027 = vmatmul.mubr.f32.gmra.mrb[0].mxu0 %v1805
      %v2028 = vpop.f32.mrb[0].mxu0
      %v2029 = vadd.f32 0.0, %v2028
      %v2030 = vpop.f32.mrb[0].mxu0
      %2031 = vdwg.mxu0
      %v2032 = vadd.f32 %v1643, %v1874
      %v2033 = vadd.f32 %v1644, %v1879
      %v2034 = vadd.f32 %v1645, %v1884
      %v2035 = vadd.f32 %v1646, %v1889
      %v2036 = vadd.f32 %v1647, %v1894
      %v2037 = vadd.f32 %v1648, %v1899
      %v2038 = vadd.f32 %v1649, %v1904
      %v2039 = vadd.f32 %v1650, %v1909
      %v2040 = vadd.f32 %v1651, %v1914
      %v2041 = vadd.f32 %v1652, %v1919
      %v2042 = vadd.f32 %v1653, %v1924
      %v2043 = vadd.f32 %v1654, %v1929
      %v2044 = vadd.f32 %v1655, %v1934
      %v2045 = vadd.f32 %v1656, %v1939
      %v2046 = vadd.f32 %v1657, %v1944
      %v2047 = vadd.f32 %v1658, %v1949
      %v2048 = vadd.f32 %v1659, %v1954
      %v2049 = vadd.f32 %v1660, %v1959
      %v2050 = vadd.f32 %v1661, %v1964
      %v2051 = vadd.f32 %v1662, %v1969
      %v2052 = vadd.f32 %v1663, %v1974
      %v2053 = vadd.f32 %v1664, %v1979
      %v2054 = vadd.f32 %v1665, %v1984
      %v2055 = vadd.f32 %v1666, %v1989
      %v2056 = vadd.f32 %v1667, %v1994
      %v2057 = vadd.f32 %v1668, %v1999
      %v2058 = vadd.f32 %v1669, %v2004
      %v2059 = vadd.f32 %v1670, %v2009
      %v2060 = vadd.f32 %v1671, %v2014
      %v2061 = vadd.f32 %v1672, %v2019
      %v2062 = vadd.f32 %v1673, %v2024
      %v2063 = vadd.f32 %v1674, %v2029
      %v2064 = vld [vmem:[#allocation3 + $0x2] sm:$0xff]
      %v2065 = vld [vmem:[#allocation3 + $0xa] sm:$0xff]
      %v2066 = vld [vmem:[#allocation3 + $0x12] sm:$0xff]
      %v2067 = vld [vmem:[#allocation3 + $0x1a] sm:$0xff]
      %v2068 = vld [vmem:[#allocation3 + $0x2a] sm:$0xff]
      %v2069 = vld [vmem:[#allocation3 + $0x32] sm:$0xff]
      %v2070 = vld [vmem:[#allocation3 + $0x3a] sm:$0xff]
      %v2071 = vld [vmem:[#allocation3 + $0x42] sm:$0xff]
      %v2072 = vld [vmem:[#allocation3 + $0x52] sm:$0xff]
      %v2073 = vld [vmem:[#allocation3 + $0x5a] sm:$0xff]
      %v2074 = vld [vmem:[#allocation3 + $0x62] sm:$0xff]
      %v2075 = vld [vmem:[#allocation3 + $0x6a] sm:$0xff]
      %v2076 = vld [vmem:[#allocation3 + $0x7a] sm:$0xff]
      %v2077 = vld [vmem:[#allocation3 + $0x82] sm:$0xff]
      %v2078 = vld [vmem:[#allocation3 + $0x8a] sm:$0xff]
      %v2079 = vld [vmem:[#allocation3 + $0x92] sm:$0xff]
      %v2080 = vld [vmem:[#allocation3 + $0xa2] sm:$0xff]
      %v2081 = vld [vmem:[#allocation3 + $0xaa] sm:$0xff]
      %v2082 = vld [vmem:[#allocation3 + $0xb2] sm:$0xff]
      %v2083 = vld [vmem:[#allocation3 + $0xba] sm:$0xff]
      %v2084 = vld [vmem:[#allocation3 + $0xca] sm:$0xff]
      %v2085 = vld [vmem:[#allocation3 + $0xd2] sm:$0xff]
      %v2086 = vld [vmem:[#allocation3 + $0xda] sm:$0xff]
      %v2087 = vld [vmem:[#allocation3 + $0xe2] sm:$0xff]
      %v2088 = vld [vmem:[#allocation3 + $0xf2] sm:$0xff]
      %v2089 = vld [vmem:[#allocation3 + $0xfa] sm:$0xff]
      %v2090 = vld [vmem:[#allocation3 + $0x102] sm:$0xff]
      %v2091 = vld [vmem:[#allocation3 + $0x10a] sm:$0xff]
      %v2092 = vld [vmem:[#allocation3 + $0x11a] sm:$0xff]
      %v2093 = vld [vmem:[#allocation3 + $0x122] sm:$0xff]
      %v2094 = vld [vmem:[#allocation3 + $0x12a] sm:$0xff]
      %v2095 = vld [vmem:[#allocation3 + $0x132] sm:$0xff]
      %v2096 = vld [vmem:[%s3 + $0x40] sm:$0xff]
      %v2097 = vld [vmem:[%s3 + $0x48] sm:$0xff]
      %v2098 = vld [vmem:[%s3 + $0x50] sm:$0xff]
      %v2099 = vld [vmem:[%s3 + $0x58] sm:$0xff]
      %v2101 = vsel %vm322, %v2064, 0
      %v2104 = vsel %vm322, %v2065, 0
      %v2107 = vsel %vm322, %v2066, 0
      %v2110 = vsel %vm322, %v2067, 0
      %v2113 = vsel %vm322, %v2068, 0
      %v2116 = vsel %vm322, %v2069, 0
      %v2119 = vsel %vm322, %v2070, 0
      %v2122 = vsel %vm322, %v2071, 0
      %v2125 = vsel %vm322, %v2072, 0
      %v2128 = vsel %vm322, %v2073, 0
      %v2131 = vsel %vm322, %v2074, 0
      %v2134 = vsel %vm322, %v2075, 0
      %v2137 = vsel %vm322, %v2076, 0
      %v2140 = vsel %vm322, %v2077, 0
      %v2143 = vsel %vm322, %v2078, 0
      %v2146 = vsel %vm322, %v2079, 0
      %v2149 = vsel %vm322, %v2080, 0
      %v2152 = vsel %vm322, %v2081, 0
      %v2155 = vsel %vm322, %v2082, 0
      %v2158 = vsel %vm322, %v2083, 0
      %v2161 = vsel %vm322, %v2084, 0
      %v2164 = vsel %vm322, %v2085, 0
      %v2167 = vsel %vm322, %v2086, 0
      %v2170 = vsel %vm322, %v2087, 0
      %v2173 = vsel %vm322, %v2088, 0
      %v2176 = vsel %vm322, %v2089, 0
      %v2179 = vsel %vm322, %v2090, 0
      %v2182 = vsel %vm322, %v2091, 0
      %v2185 = vsel %vm322, %v2092, 0
      %v2188 = vsel %vm322, %v2093, 0
      %v2191 = vsel %vm322, %v2094, 0
      %v2194 = vsel %vm322, %v2095, 0
      %2196 = vmatprep.subr.mxu0 0.0
      %2197 = vmatpush1.msra.mxu0 %v2096
      %2198 = vmatprep.subr.mxu0 0.0
      %2199 = vmatpush1.msra.mxu0 %v2097
      %2200 = vmatprep.subr.mxu0 0.0
      %2201 = vmatpush1.msra.mxu0 %v2098
      %2202 = vmatprep.subr.mxu0 0.0
      %2203 = vmatpush1.msra.mxu0 %v2099
      %2204 = vmatprep.subr.mxu0 0.0
      %2205 = vmatpush1.msra.mxu0 0.0
      %2206 = vmatprep.subr.mxu0 0.0
      %2207 = vmatpush1.msra.mxu0 0.0
      %2208 = vmatprep.subr.mxu0 0.0
      %2209 = vmatpush1.msra.mxu0 0.0
      %2210 = vmatprep.subr.mxu0 0.0
      %2211 = vmatpush1.msra.mxu0 0.0
      %2212 = vmatprep.subr.mxu0 0.0
      %2213 = vmatpush1.msra.mxu0 0.0
      %2214 = vmatprep.subr.mxu0 0.0
      %2215 = vmatpush1.msra.mxu0 0.0
      %2216 = vmatprep.subr.mxu0 0.0
      %2217 = vmatpush1.msra.mxu0 0.0
      %2218 = vmatprep.subr.mxu0 0.0
      %2219 = vmatpush1.msra.mxu0 0.0
      %2220 = vmatprep.subr.mxu0 0.0
      %2221 = vmatpush1.msra.mxu0 0.0
      %2222 = vmatprep.subr.mxu0 0.0
      %2223 = vmatpush1.msra.mxu0 0.0
      %2224 = vmatprep.subr.mxu0 0.0
      %2225 = vmatpush1.msra.mxu0 0.0
      %2226 = vmatprep.subr.mxu0 0.0
      %2227 = vmatpush1.msra.mxu0 0.0
      %2228 = vmatprep.subr.mxu0 0.0
      %2229 = vmatpush1.msra.mxu0 0.0
      %2230 = vmatprep.subr.mxu0 0.0
      %2231 = vmatpush1.msra.mxu0 0.0
      %2232 = vmatprep.subr.mxu0 0.0
      %2233 = vmatpush1.msra.mxu0 0.0
      %2234 = vmatprep.subr.mxu0 0.0
      %2235 = vmatpush1.msra.mxu0 0.0
      %2236 = vmatprep.subr.mxu0 0.0
      %2237 = vmatpush1.msra.mxu0 0.0
      %2238 = vmatprep.subr.mxu0 0.0
      %2239 = vmatpush1.msra.mxu0 0.0
      %2240 = vmatprep.subr.mxu0 0.0
      %2241 = vmatpush1.msra.mxu0 0.0
      %2242 = vmatprep.subr.mxu0 0.0
      %2243 = vmatpush1.msra.mxu0 0.0
      %2244 = vmatprep.subr.mxu0 0.0
      %2245 = vmatpush1.msra.mxu0 0.0
      %2246 = vmatprep.subr.mxu0 0.0
      %2247 = vmatpush1.msra.mxu0 0.0
      %2248 = vmatprep.subr.mxu0 0.0
      %2249 = vmatpush1.msra.mxu0 0.0
      %2250 = vmatprep.subr.mxu0 0.0
      %2251 = vmatpush1.msra.mxu0 0.0
      %2252 = vmatprep.subr.mxu0 0.0
      %2253 = vmatpush1.msra.mxu0 0.0
      %2254 = vmatprep.subr.mxu0 0.0
      %2255 = vmatpush1.msra.mxu0 0.0
      %2256 = vmatprep.subr.mxu0 0.0
      %2257 = vmatpush1.msra.mxu0 0.0
      %2258 = vmatprep.subr.mxu0 0.0
      %2259 = vmatpush1.msra.mxu0 0.0
      %2260 = vmatprep.mubr.f32.mxu0 0.0
      %2261 = vmatmul.mubr.f32.gmra.mrb[0].mxu0 %v2101
      %v2262 = vpop.f32.mrb[0].mxu0
      %v2263 = vadd.f32 0.0, %v2262
      %v2264 = vpop.f32.mrb[0].mxu0
      %2265 = vmatprep.mubr.f32.mxu0 0.0
      %2266 = vmatmul.mubr.f32.gmra.mrb[0].mxu0 %v2104
      %v2267 = vpop.f32.mrb[0].mxu0
      %v2268 = vadd.f32 0.0, %v2267
      %v2269 = vpop.f32.mrb[0].mxu0
      %2270 = vmatprep.mubr.f32.mxu0 0.0
      %2271 = vmatmul.mubr.f32.gmra.mrb[0].mxu0 %v2107
      %v2272 = vpop.f32.mrb[0].mxu0
      %v2273 = vadd.f32 0.0, %v2272
      %v2274 = vpop.f32.mrb[0].mxu0
      %2275 = vmatprep.mubr.f32.mxu0 0.0
      %2276 = vmatmul.mubr.f32.gmra.mrb[0].mxu0 %v2110
      %v2277 = vpop.f32.mrb[0].mxu0
      %v2278 = vadd.f32 0.0, %v2277
      %v2279 = vpop.f32.mrb[0].mxu0
      %2280 = vmatprep.mubr.f32.mxu0 0.0
      %2281 = vmatmul.mubr.f32.gmra.mrb[0].mxu0 %v2113
      %v2282 = vpop.f32.mrb[0].mxu0
      %v2283 = vadd.f32 0.0, %v2282
      %v2284 = vpop.f32.mrb[0].mxu0
      %2285 = vmatprep.mubr.f32.mxu0 0.0
      %2286 = vmatmul.mubr.f32.gmra.mrb[0].mxu0 %v2116
      %v2287 = vpop.f32.mrb[0].mxu0
      %v2288 = vadd.f32 0.0, %v2287
      %v2289 = vpop.f32.mrb[0].mxu0
      %2290 = vmatprep.mubr.f32.mxu0 0.0
      %2291 = vmatmul.mubr.f32.gmra.mrb[0].mxu0 %v2119
      %v2292 = vpop.f32.mrb[0].mxu0
      %v2293 = vadd.f32 0.0, %v2292
      %v2294 = vpop.f32.mrb[0].mxu0
      %2295 = vmatprep.mubr.f32.mxu0 0.0
      %2296 = vmatmul.mubr.f32.gmra.mrb[0].mxu0 %v2122
      %v2297 = vpop.f32.mrb[0].mxu0
      %v2298 = vadd.f32 0.0, %v2297
      %v2299 = vpop.f32.mrb[0].mxu0
      %2300 = vmatprep.mubr.f32.mxu0 0.0
      %2301 = vmatmul.mubr.f32.gmra.mrb[0].mxu0 %v2125
      %v2302 = vpop.f32.mrb[0].mxu0
      %v2303 = vadd.f32 0.0, %v2302
      %v2304 = vpop.f32.mrb[0].mxu0
      %2305 = vmatprep.mubr.f32.mxu0 0.0
      %2306 = vmatmul.mubr.f32.gmra.mrb[0].mxu0 %v2128
      %v2307 = vpop.f32.mrb[0].mxu0
      %v2308 = vadd.f32 0.0, %v2307
      %v2309 = vpop.f32.mrb[0].mxu0
      %2310 = vmatprep.mubr.f32.mxu0 0.0
      %2311 = vmatmul.mubr.f32.gmra.mrb[0].mxu0 %v2131
      %v2312 = vpop.f32.mrb[0].mxu0
      %v2313 = vadd.f32 0.0, %v2312
      %v2314 = vpop.f32.mrb[0].mxu0
      %2315 = vmatprep.mubr.f32.mxu0 0.0
      %2316 = vmatmul.mubr.f32.gmra.mrb[0].mxu0 %v2134
      %v2317 = vpop.f32.mrb[0].mxu0
      %v2318 = vadd.f32 0.0, %v2317
      %v2319 = vpop.f32.mrb[0].mxu0
      %2320 = vmatprep.mubr.f32.mxu0 0.0
      %2321 = vmatmul.mubr.f32.gmra.mrb[0].mxu0 %v2137
      %v2322 = vpop.f32.mrb[0].mxu0
      %v2323 = vadd.f32 0.0, %v2322
      %v2324 = vpop.f32.mrb[0].mxu0
      %2325 = vmatprep.mubr.f32.mxu0 0.0
      %2326 = vmatmul.mubr.f32.gmra.mrb[0].mxu0 %v2140
      %v2327 = vpop.f32.mrb[0].mxu0
      %v2328 = vadd.f32 0.0, %v2327
      %v2329 = vpop.f32.mrb[0].mxu0
      %2330 = vmatprep.mubr.f32.mxu0 0.0
      %2331 = vmatmul.mubr.f32.gmra.mrb[0].mxu0 %v2143
      %v2332 = vpop.f32.mrb[0].mxu0
      %v2333 = vadd.f32 0.0, %v2332
      %v2334 = vpop.f32.mrb[0].mxu0
      %2335 = vmatprep.mubr.f32.mxu0 0.0
      %2336 = vmatmul.mubr.f32.gmra.mrb[0].mxu0 %v2146
      %v2337 = vpop.f32.mrb[0].mxu0
      %v2338 = vadd.f32 0.0, %v2337
      %v2339 = vpop.f32.mrb[0].mxu0
      %2340 = vmatprep.mubr.f32.mxu0 0.0
      %2341 = vmatmul.mubr.f32.gmra.mrb[0].mxu0 %v2149
      %v2342 = vpop.f32.mrb[0].mxu0
      %v2343 = vadd.f32 0.0, %v2342
      %v2344 = vpop.f32.mrb[0].mxu0
      %2345 = vmatprep.mubr.f32.mxu0 0.0
      %2346 = vmatmul.mubr.f32.gmra.mrb[0].mxu0 %v2152
      %v2347 = vpop.f32.mrb[0].mxu0
      %v2348 = vadd.f32 0.0, %v2347
      %v2349 = vpop.f32.mrb[0].mxu0
      %2350 = vmatprep.mubr.f32.mxu0 0.0
      %2351 = vmatmul.mubr.f32.gmra.mrb[0].mxu0 %v2155
      %v2352 = vpop.f32.mrb[0].mxu0
      %v2353 = vadd.f32 0.0, %v2352
      %v2354 = vpop.f32.mrb[0].mxu0
      %2355 = vmatprep.mubr.f32.mxu0 0.0
      %2356 = vmatmul.mubr.f32.gmra.mrb[0].mxu0 %v2158
      %v2357 = vpop.f32.mrb[0].mxu0
      %v2358 = vadd.f32 0.0, %v2357
      %v2359 = vpop.f32.mrb[0].mxu0
      %2360 = vmatprep.mubr.f32.mxu0 0.0
      %2361 = vmatmul.mubr.f32.gmra.mrb[0].mxu0 %v2161
      %v2362 = vpop.f32.mrb[0].mxu0
      %v2363 = vadd.f32 0.0, %v2362
      %v2364 = vpop.f32.mrb[0].mxu0
      %2365 = vmatprep.mubr.f32.mxu0 0.0
      %2366 = vmatmul.mubr.f32.gmra.mrb[0].mxu0 %v2164
      %v2367 = vpop.f32.mrb[0].mxu0
      %v2368 = vadd.f32 0.0, %v2367
      %v2369 = vpop.f32.mrb[0].mxu0
      %2370 = vmatprep.mubr.f32.mxu0 0.0
      %2371 = vmatmul.mubr.f32.gmra.mrb[0].mxu0 %v2167
      %v2372 = vpop.f32.mrb[0].mxu0
      %v2373 = vadd.f32 0.0, %v2372
      %v2374 = vpop.f32.mrb[0].mxu0
      %2375 = vmatprep.mubr.f32.mxu0 0.0
      %2376 = vmatmul.mubr.f32.gmra.mrb[0].mxu0 %v2170
      %v2377 = vpop.f32.mrb[0].mxu0
      %v2378 = vadd.f32 0.0, %v2377
      %v2379 = vpop.f32.mrb[0].mxu0
      %2380 = vmatprep.mubr.f32.mxu0 0.0
      %2381 = vmatmul.mubr.f32.gmra.mrb[0].mxu0 %v2173
      %v2382 = vpop.f32.mrb[0].mxu0
      %v2383 = vadd.f32 0.0, %v2382
      %v2384 = vpop.f32.mrb[0].mxu0
      %2385 = vmatprep.mubr.f32.mxu0 0.0
      %2386 = vmatmul.mubr.f32.gmra.mrb[0].mxu0 %v2176
      %v2387 = vpop.f32.mrb[0].mxu0
      %v2388 = vadd.f32 0.0, %v2387
      %v2389 = vpop.f32.mrb[0].mxu0
      %2390 = vmatprep.mubr.f32.mxu0 0.0
      %2391 = vmatmul.mubr.f32.gmra.mrb[0].mxu0 %v2179
      %v2392 = vpop.f32.mrb[0].mxu0
      %v2393 = vadd.f32 0.0, %v2392
      %v2394 = vpop.f32.mrb[0].mxu0
      %2395 = vmatprep.mubr.f32.mxu0 0.0
      %2396 = vmatmul.mubr.f32.gmra.mrb[0].mxu0 %v2182
      %v2397 = vpop.f32.mrb[0].mxu0
      %v2398 = vadd.f32 0.0, %v2397
      %v2399 = vpop.f32.mrb[0].mxu0
      %2400 = vmatprep.mubr.f32.mxu0 0.0
      %2401 = vmatmul.mubr.f32.gmra.mrb[0].mxu0 %v2185
      %v2402 = vpop.f32.mrb[0].mxu0
      %v2403 = vadd.f32 0.0, %v2402
      %v2404 = vpop.f32.mrb[0].mxu0
      %2405 = vmatprep.mubr.f32.mxu0 0.0
      %2406 = vmatmul.mubr.f32.gmra.mrb[0].mxu0 %v2188
      %v2407 = vpop.f32.mrb[0].mxu0
      %v2408 = vadd.f32 0.0, %v2407
      %v2409 = vpop.f32.mrb[0].mxu0
      %2410 = vmatprep.mubr.f32.mxu0 0.0
      %2411 = vmatmul.mubr.f32.gmra.mrb[0].mxu0 %v2191
      %v2412 = vpop.f32.mrb[0].mxu0
      %v2413 = vadd.f32 0.0, %v2412
      %v2414 = vpop.f32.mrb[0].mxu0
      %2415 = vmatprep.mubr.f32.mxu0 0.0
      %2416 = vmatmul.mubr.f32.gmra.mrb[0].mxu0 %v2194
      %v2417 = vpop.f32.mrb[0].mxu0
      %v2418 = vadd.f32 0.0, %v2417
      %v2419 = vpop.f32.mrb[0].mxu0
      %2420 = vdwg.mxu0
      %v2421 = vadd.f32 %v2032, %v2263
      %v2422 = vadd.f32 %v2033, %v2268
      %v2423 = vadd.f32 %v2034, %v2273
      %v2424 = vadd.f32 %v2035, %v2278
      %v2425 = vadd.f32 %v2036, %v2283
      %v2426 = vadd.f32 %v2037, %v2288
      %v2427 = vadd.f32 %v2038, %v2293
      %v2428 = vadd.f32 %v2039, %v2298
      %v2429 = vadd.f32 %v2040, %v2303
      %v2430 = vadd.f32 %v2041, %v2308
      %v2431 = vadd.f32 %v2042, %v2313
      %v2432 = vadd.f32 %v2043, %v2318
      %v2433 = vadd.f32 %v2044, %v2323
      %v2434 = vadd.f32 %v2045, %v2328
      %v2435 = vadd.f32 %v2046, %v2333
      %v2436 = vadd.f32 %v2047, %v2338
      %v2437 = vadd.f32 %v2048, %v2343
      %v2438 = vadd.f32 %v2049, %v2348
      %v2439 = vadd.f32 %v2050, %v2353
      %v2440 = vadd.f32 %v2051, %v2358
      %v2441 = vadd.f32 %v2052, %v2363
      %v2442 = vadd.f32 %v2053, %v2368
      %v2443 = vadd.f32 %v2054, %v2373
      %v2444 = vadd.f32 %v2055, %v2378
      %v2445 = vadd.f32 %v2056, %v2383
      %v2446 = vadd.f32 %v2057, %v2388
      %v2447 = vadd.f32 %v2058, %v2393
      %v2448 = vadd.f32 %v2059, %v2398
      %v2449 = vadd.f32 %v2060, %v2403
      %v2450 = vadd.f32 %v2061, %v2408
      %v2451 = vadd.f32 %v2062, %v2413
      %v2452 = vadd.f32 %v2063, %v2418
      %v2453 = vld [vmem:[%s1230] sm:$0xff]
      %v2454 = vld [vmem:[%s1230 + $0x8] sm:$0xff]
      %v2455 = vld [vmem:[%s1230 + $0x10] sm:$0xff]
      %v2456 = vld [vmem:[%s1230 + $0x18] sm:$0xff]
      %v2457 = vld [vmem:[%s1230 + $0x28] sm:$0xff]
      %v2458 = vld [vmem:[%s1230 + $0x30] sm:$0xff]
      %v2459 = vld [vmem:[%s1230 + $0x38] sm:$0xff]
      %v2460 = vld [vmem:[%s1230 + $0x40] sm:$0xff]
      %v2461 = vld [vmem:[%s1230 + $0x50] sm:$0xff]
      %v2462 = vld [vmem:[%s1230 + $0x58] sm:$0xff]
      %v2463 = vld [vmem:[%s1230 + $0x60] sm:$0xff]
      %v2464 = vld [vmem:[%s1230 + $0x68] sm:$0xff]
      %v2465 = vld [vmem:[%s1230 + $0x78] sm:$0xff]
      %v2466 = vld [vmem:[%s1230 + $0x80] sm:$0xff]
      %v2467 = vld [vmem:[%s1230 + $0x88] sm:$0xff]
      %v2468 = vld [vmem:[%s1230 + $0x90] sm:$0xff]
      %v2469 = vld [vmem:[%s1230 + $0xa0] sm:$0xff]
      %v2470 = vld [vmem:[%s1230 + $0xa8] sm:$0xff]
      %v2471 = vld [vmem:[%s1230 + $0xb0] sm:$0xff]
      %v2472 = vld [vmem:[%s1230 + $0xb8] sm:$0xff]
      %v2473 = vld [vmem:[%s1230 + $0xc8] sm:$0xff]
      %v2474 = vld [vmem:[%s1230 + $0xd0] sm:$0xff]
      %v2475 = vld [vmem:[%s1230 + $0xd8] sm:$0xff]
      %v2476 = vld [vmem:[%s1230 + $0xe0] sm:$0xff]
      %v2477 = vld [vmem:[%s1230 + $0xf0] sm:$0xff]
      %v2478 = vld [vmem:[%s1230 + $0xf8] sm:$0xff]
      %v2479 = vld [vmem:[%s1230 + $0x100] sm:$0xff]
      %v2480 = vld [vmem:[%s1230 + $0x108] sm:$0xff]
      %v2481 = vld [vmem:[%s1230 + $0x118] sm:$0xff]
      %v2482 = vld [vmem:[%s1230 + $0x120] sm:$0xff]
      %v2483 = vld [vmem:[%s1230 + $0x128] sm:$0xff]
      %v2484 = vld [vmem:[%s1230 + $0x130] sm:$0xff]
      %v2485 = vld [vmem:[%s3 + $0x60] sm:$0xff]
      %v2486 = vld [vmem:[%s3 + $0x68] sm:$0xff]
      %v2487 = vld [vmem:[%s3 + $0x70] sm:$0xff]
      %v2488 = vld [vmem:[%s3 + $0x78] sm:$0xff]
      %v2490 = vsel %vm322, %v2453, 0
      %v2493 = vsel %vm322, %v2454, 0
      %v2496 = vsel %vm322, %v2455, 0
      %v2499 = vsel %vm322, %v2456, 0
      %v2502 = vsel %vm322, %v2457, 0
      %v2505 = vsel %vm322, %v2458, 0
      %v2508 = vsel %vm322, %v2459, 0
      %v2511 = vsel %vm322, %v2460, 0
      %v2514 = vsel %vm322, %v2461, 0
      %v2517 = vsel %vm322, %v2462, 0
      %v2520 = vsel %vm322, %v2463, 0
      %v2523 = vsel %vm322, %v2464, 0
      %v2526 = vsel %vm322, %v2465, 0
      %v2529 = vsel %vm322, %v2466, 0
      %v2532 = vsel %vm322, %v2467, 0
      %v2535 = vsel %vm322, %v2468, 0
      %v2538 = vsel %vm322, %v2469, 0
      %v2541 = vsel %vm322, %v2470, 0
      %v2544 = vsel %vm322, %v2471, 0
      %v2547 = vsel %vm322, %v2472, 0
      %v2550 = vsel %vm322, %v2473, 0
      %v2553 = vsel %vm322, %v2474, 0
      %v2556 = vsel %vm322, %v2475, 0
      %v2559 = vsel %vm322, %v2476, 0
      %v2562 = vsel %vm322, %v2477, 0
      %v2565 = vsel %vm322, %v2478, 0
      %v2568 = vsel %vm322, %v2479, 0
      %v2571 = vsel %vm322, %v2480, 0
      %v2574 = vsel %vm322, %v2481, 0
      %v2577 = vsel %vm322, %v2482, 0
      %v2580 = vsel %vm322, %v2483, 0
      %v2583 = vsel %vm322, %v2484, 0
      %2585 = vmatprep.subr.mxu0 0.0
      %2586 = vmatpush1.msra.mxu0 %v2485
      %2587 = vmatprep.subr.mxu0 0.0
      %2588 = vmatpush1.msra.mxu0 %v2486
      %2589 = vmatprep.subr.mxu0 0.0
      %2590 = vmatpush1.msra.mxu0 %v2487
      %2591 = vmatprep.subr.mxu0 0.0
      %2592 = vmatpush1.msra.mxu0 %v2488
      %2593 = vmatprep.subr.mxu0 0.0
      %2594 = vmatpush1.msra.mxu0 0.0
      %2595 = vmatprep.subr.mxu0 0.0
      %2596 = vmatpush1.msra.mxu0 0.0
      %2597 = vmatprep.subr.mxu0 0.0
      %2598 = vmatpush1.msra.mxu0 0.0
      %2599 = vmatprep.subr.mxu0 0.0
      %2600 = vmatpush1.msra.mxu0 0.0
      %2601 = vmatprep.subr.mxu0 0.0
      %2602 = vmatpush1.msra.mxu0 0.0
      %2603 = vmatprep.subr.mxu0 0.0
      %2604 = vmatpush1.msra.mxu0 0.0
      %2605 = vmatprep.subr.mxu0 0.0
      %2606 = vmatpush1.msra.mxu0 0.0
      %2607 = vmatprep.subr.mxu0 0.0
      %2608 = vmatpush1.msra.mxu0 0.0
      %2609 = vmatprep.subr.mxu0 0.0
      %2610 = vmatpush1.msra.mxu0 0.0
      %2611 = vmatprep.subr.mxu0 0.0
      %2612 = vmatpush1.msra.mxu0 0.0
      %2613 = vmatprep.subr.mxu0 0.0
      %2614 = vmatpush1.msra.mxu0 0.0
      %2615 = vmatprep.subr.mxu0 0.0
      %2616 = vmatpush1.msra.mxu0 0.0
      %2617 = vmatprep.subr.mxu0 0.0
      %2618 = vmatpush1.msra.mxu0 0.0
      %2619 = vmatprep.subr.mxu0 0.0
      %2620 = vmatpush1.msra.mxu0 0.0
      %2621 = vmatprep.subr.mxu0 0.0
      %2622 = vmatpush1.msra.mxu0 0.0
      %2623 = vmatprep.subr.mxu0 0.0
      %2624 = vmatpush1.msra.mxu0 0.0
      %2625 = vmatprep.subr.mxu0 0.0
      %2626 = vmatpush1.msra.mxu0 0.0
      %2627 = vmatprep.subr.mxu0 0.0
      %2628 = vmatpush1.msra.mxu0 0.0
      %2629 = vmatprep.subr.mxu0 0.0
      %2630 = vmatpush1.msra.mxu0 0.0
      %2631 = vmatprep.subr.mxu0 0.0
      %2632 = vmatpush1.msra.mxu0 0.0
      %2633 = vmatprep.subr.mxu0 0.0
      %2634 = vmatpush1.msra.mxu0 0.0
      %2635 = vmatprep.subr.mxu0 0.0
      %2636 = vmatpush1.msra.mxu0 0.0
      %2637 = vmatprep.subr.mxu0 0.0
      %2638 = vmatpush1.msra.mxu0 0.0
      %2639 = vmatprep.subr.mxu0 0.0
      %2640 = vmatpush1.msra.mxu0 0.0
      %2641 = vmatprep.subr.mxu0 0.0
      %2642 = vmatpush1.msra.mxu0 0.0
      %2643 = vmatprep.subr.mxu0 0.0
      %2644 = vmatpush1.msra.mxu0 0.0
      %2645 = vmatprep.subr.mxu0 0.0
      %2646 = vmatpush1.msra.mxu0 0.0
      %2647 = vmatprep.subr.mxu0 0.0
      %2648 = vmatpush1.msra.mxu0 0.0
      %2649 = vmatprep.mubr.f32.mxu0 0.0
      %2650 = vmatmul.mubr.f32.gmra.mrb[0].mxu0 %v2490
      %v2651 = vpop.f32.mrb[0].mxu0
      %v2652 = vadd.f32 0.0, %v2651
      %v2653 = vpop.f32.mrb[0].mxu0
      %2654 = vmatprep.mubr.f32.mxu0 0.0
      %2655 = vmatmul.mubr.f32.gmra.mrb[0].mxu0 %v2493
      %v2656 = vpop.f32.mrb[0].mxu0
      %v2657 = vadd.f32 0.0, %v2656
      %v2658 = vpop.f32.mrb[0].mxu0
      %2659 = vmatprep.mubr.f32.mxu0 0.0
      %2660 = vmatmul.mubr.f32.gmra.mrb[0].mxu0 %v2496
      %v2661 = vpop.f32.mrb[0].mxu0
      %v2662 = vadd.f32 0.0, %v2661
      %v2663 = vpop.f32.mrb[0].mxu0
      %2664 = vmatprep.mubr.f32.mxu0 0.0
      %2665 = vmatmul.mubr.f32.gmra.mrb[0].mxu0 %v2499
      %v2666 = vpop.f32.mrb[0].mxu0
      %v2667 = vadd.f32 0.0, %v2666
      %v2668 = vpop.f32.mrb[0].mxu0
      %2669 = vmatprep.mubr.f32.mxu0 0.0
      %2670 = vmatmul.mubr.f32.gmra.mrb[0].mxu0 %v2502
      %v2671 = vpop.f32.mrb[0].mxu0
      %v2672 = vadd.f32 0.0, %v2671
      %v2673 = vpop.f32.mrb[0].mxu0
      %2674 = vmatprep.mubr.f32.mxu0 0.0
      %2675 = vmatmul.mubr.f32.gmra.mrb[0].mxu0 %v2505
      %v2676 = vpop.f32.mrb[0].mxu0
      %v2677 = vadd.f32 0.0, %v2676
      %v2678 = vpop.f32.mrb[0].mxu0
      %2679 = vmatprep.mubr.f32.mxu0 0.0
      %2680 = vmatmul.mubr.f32.gmra.mrb[0].mxu0 %v2508
      %v2681 = vpop.f32.mrb[0].mxu0
      %v2682 = vadd.f32 0.0, %v2681
      %v2683 = vpop.f32.mrb[0].mxu0
      %2684 = vmatprep.mubr.f32.mxu0 0.0
      %2685 = vmatmul.mubr.f32.gmra.mrb[0].mxu0 %v2511
      %v2686 = vpop.f32.mrb[0].mxu0
      %v2687 = vadd.f32 0.0, %v2686
      %v2688 = vpop.f32.mrb[0].mxu0
      %2689 = vmatprep.mubr.f32.mxu0 0.0
      %2690 = vmatmul.mubr.f32.gmra.mrb[0].mxu0 %v2514
      %v2691 = vpop.f32.mrb[0].mxu0
      %v2692 = vadd.f32 0.0, %v2691
      %v2693 = vpop.f32.mrb[0].mxu0
      %2694 = vmatprep.mubr.f32.mxu0 0.0
      %2695 = vmatmul.mubr.f32.gmra.mrb[0].mxu0 %v2517
      %v2696 = vpop.f32.mrb[0].mxu0
      %v2697 = vadd.f32 0.0, %v2696
      %v2698 = vpop.f32.mrb[0].mxu0
      %2699 = vmatprep.mubr.f32.mxu0 0.0
      %2700 = vmatmul.mubr.f32.gmra.mrb[0].mxu0 %v2520
      %v2701 = vpop.f32.mrb[0].mxu0
      %v2702 = vadd.f32 0.0, %v2701
      %v2703 = vpop.f32.mrb[0].mxu0
      %2704 = vmatprep.mubr.f32.mxu0 0.0
      %2705 = vmatmul.mubr.f32.gmra.mrb[0].mxu0 %v2523
      %v2706 = vpop.f32.mrb[0].mxu0
      %v2707 = vadd.f32 0.0, %v2706
      %v2708 = vpop.f32.mrb[0].mxu0
      %2709 = vmatprep.mubr.f32.mxu0 0.0
      %2710 = vmatmul.mubr.f32.gmra.mrb[0].mxu0 %v2526
      %v2711 = vpop.f32.mrb[0].mxu0
      %v2712 = vadd.f32 0.0, %v2711
      %v2713 = vpop.f32.mrb[0].mxu0
      %2714 = vmatprep.mubr.f32.mxu0 0.0
      %2715 = vmatmul.mubr.f32.gmra.mrb[0].mxu0 %v2529
      %v2716 = vpop.f32.mrb[0].mxu0
      %v2717 = vadd.f32 0.0, %v2716
      %v2718 = vpop.f32.mrb[0].mxu0
      %2719 = vmatprep.mubr.f32.mxu0 0.0
      %2720 = vmatmul.mubr.f32.gmra.mrb[0].mxu0 %v2532
      %v2721 = vpop.f32.mrb[0].mxu0
      %v2722 = vadd.f32 0.0, %v2721
      %v2723 = vpop.f32.mrb[0].mxu0
      %2724 = vmatprep.mubr.f32.mxu0 0.0
      %2725 = vmatmul.mubr.f32.gmra.mrb[0].mxu0 %v2535
      %v2726 = vpop.f32.mrb[0].mxu0
      %v2727 = vadd.f32 0.0, %v2726
      %v2728 = vpop.f32.mrb[0].mxu0
      %2729 = vmatprep.mubr.f32.mxu0 0.0
      %2730 = vmatmul.mubr.f32.gmra.mrb[0].mxu0 %v2538
      %v2731 = vpop.f32.mrb[0].mxu0
      %v2732 = vadd.f32 0.0, %v2731
      %v2733 = vpop.f32.mrb[0].mxu0
      %2734 = vmatprep.mubr.f32.mxu0 0.0
      %2735 = vmatmul.mubr.f32.gmra.mrb[0].mxu0 %v2541
      %v2736 = vpop.f32.mrb[0].mxu0
      %v2737 = vadd.f32 0.0, %v2736
      %v2738 = vpop.f32.mrb[0].mxu0
      %2739 = vmatprep.mubr.f32.mxu0 0.0
      %2740 = vmatmul.mubr.f32.gmra.mrb[0].mxu0 %v2544
      %v2741 = vpop.f32.mrb[0].mxu0
      %v2742 = vadd.f32 0.0, %v2741
      %v2743 = vpop.f32.mrb[0].mxu0
      %2744 = vmatprep.mubr.f32.mxu0 0.0
      %2745 = vmatmul.mubr.f32.gmra.mrb[0].mxu0 %v2547
      %v2746 = vpop.f32.mrb[0].mxu0
      %v2747 = vadd.f32 0.0, %v2746
      %v2748 = vpop.f32.mrb[0].mxu0
      %2749 = vmatprep.mubr.f32.mxu0 0.0
      %2750 = vmatmul.mubr.f32.gmra.mrb[0].mxu0 %v2550
      %v2751 = vpop.f32.mrb[0].mxu0
      %v2752 = vadd.f32 0.0, %v2751
      %v2753 = vpop.f32.mrb[0].mxu0
      %2754 = vmatprep.mubr.f32.mxu0 0.0
      %2755 = vmatmul.mubr.f32.gmra.mrb[0].mxu0 %v2553
      %v2756 = vpop.f32.mrb[0].mxu0
      %v2757 = vadd.f32 0.0, %v2756
      %v2758 = vpop.f32.mrb[0].mxu0
      %2759 = vmatprep.mubr.f32.mxu0 0.0
      %2760 = vmatmul.mubr.f32.gmra.mrb[0].mxu0 %v2556
      %v2761 = vpop.f32.mrb[0].mxu0
      %v2762 = vadd.f32 0.0, %v2761
      %v2763 = vpop.f32.mrb[0].mxu0
      %2764 = vmatprep.mubr.f32.mxu0 0.0
      %2765 = vmatmul.mubr.f32.gmra.mrb[0].mxu0 %v2559
      %v2766 = vpop.f32.mrb[0].mxu0
      %v2767 = vadd.f32 0.0, %v2766
      %v2768 = vpop.f32.mrb[0].mxu0
      %2769 = vmatprep.mubr.f32.mxu0 0.0
      %2770 = vmatmul.mubr.f32.gmra.mrb[0].mxu0 %v2562
      %v2771 = vpop.f32.mrb[0].mxu0
      %v2772 = vadd.f32 0.0, %v2771
      %v2773 = vpop.f32.mrb[0].mxu0
      %2774 = vmatprep.mubr.f32.mxu0 0.0
      %2775 = vmatmul.mubr.f32.gmra.mrb[0].mxu0 %v2565
      %v2776 = vpop.f32.mrb[0].mxu0
      %v2777 = vadd.f32 0.0, %v2776
      %v2778 = vpop.f32.mrb[0].mxu0
      %2779 = vmatprep.mubr.f32.mxu0 0.0
      %2780 = vmatmul.mubr.f32.gmra.mrb[0].mxu0 %v2568
      %v2781 = vpop.f32.mrb[0].mxu0
      %v2782 = vadd.f32 0.0, %v2781
      %v2783 = vpop.f32.mrb[0].mxu0
      %2784 = vmatprep.mubr.f32.mxu0 0.0
      %2785 = vmatmul.mubr.f32.gmra.mrb[0].mxu0 %v2571
      %v2786 = vpop.f32.mrb[0].mxu0
      %v2787 = vadd.f32 0.0, %v2786
      %v2788 = vpop.f32.mrb[0].mxu0
      %2789 = vmatprep.mubr.f32.mxu0 0.0
      %2790 = vmatmul.mubr.f32.gmra.mrb[0].mxu0 %v2574
      %v2791 = vpop.f32.mrb[0].mxu0
      %v2792 = vadd.f32 0.0, %v2791
      %v2793 = vpop.f32.mrb[0].mxu0
      %2794 = vmatprep.mubr.f32.mxu0 0.0
      %2795 = vmatmul.mubr.f32.gmra.mrb[0].mxu0 %v2577
      %v2796 = vpop.f32.mrb[0].mxu0
      %v2797 = vadd.f32 0.0, %v2796
      %v2798 = vpop.f32.mrb[0].mxu0
      %2799 = vmatprep.mubr.f32.mxu0 0.0
      %2800 = vmatmul.mubr.f32.gmra.mrb[0].mxu0 %v2580
      %v2801 = vpop.f32.mrb[0].mxu0
      %v2802 = vadd.f32 0.0, %v2801
      %v2803 = vpop.f32.mrb[0].mxu0
      %2804 = vmatprep.mubr.f32.mxu0 0.0
      %2805 = vmatmul.mubr.f32.gmra.mrb[0].mxu0 %v2583
      %v2806 = vpop.f32.mrb[0].mxu0
      %v2807 = vadd.f32 0.0, %v2806
      %v2808 = vpop.f32.mrb[0].mxu0
      %2809 = vdwg.mxu0
      %v2810 = vadd.f32 %v2421, %v2652
      %v2811 = vadd.f32 %v2422, %v2657
      %v2812 = vadd.f32 %v2423, %v2662
      %v2813 = vadd.f32 %v2424, %v2667
      %v2814 = vadd.f32 %v2425, %v2672
      %v2815 = vadd.f32 %v2426, %v2677
      %v2816 = vadd.f32 %v2427, %v2682
      %v2817 = vadd.f32 %v2428, %v2687
      %v2818 = vadd.f32 %v2429, %v2692
      %v2819 = vadd.f32 %v2430, %v2697
      %v2820 = vadd.f32 %v2431, %v2702
      %v2821 = vadd.f32 %v2432, %v2707
      %v2822 = vadd.f32 %v2433, %v2712
      %v2823 = vadd.f32 %v2434, %v2717
      %v2824 = vadd.f32 %v2435, %v2722
      %v2825 = vadd.f32 %v2436, %v2727
      %v2826 = vadd.f32 %v2437, %v2732
      %v2827 = vadd.f32 %v2438, %v2737
      %v2828 = vadd.f32 %v2439, %v2742
      %v2829 = vadd.f32 %v2440, %v2747
      %v2830 = vadd.f32 %v2441, %v2752
      %v2831 = vadd.f32 %v2442, %v2757
      %v2832 = vadd.f32 %v2443, %v2762
      %v2833 = vadd.f32 %v2444, %v2767
      %v2834 = vadd.f32 %v2445, %v2772
      %v2835 = vadd.f32 %v2446, %v2777
      %v2836 = vadd.f32 %v2447, %v2782
      %v2837 = vadd.f32 %v2448, %v2787
      %v2838 = vadd.f32 %v2449, %v2792
      %v2839 = vadd.f32 %v2450, %v2797
      %v2840 = vadd.f32 %v2451, %v2802
      %v2841 = vadd.f32 %v2452, %v2807
      %v2842 = vld [vmem:[%s1230 + $0x1] sm:$0xff]
      %v2843 = vld [vmem:[%s1230 + $0x9] sm:$0xff]
      %v2844 = vld [vmem:[%s1230 + $0x11] sm:$0xff]
      %v2845 = vld [vmem:[%s1230 + $0x19] sm:$0xff]
      %v2846 = vld [vmem:[%s1230 + $0x29] sm:$0xff]
      %v2847 = vld [vmem:[%s1230 + $0x31] sm:$0xff]
      %v2848 = vld [vmem:[%s1230 + $0x39] sm:$0xff]
      %v2849 = vld [vmem:[%s1230 + $0x41] sm:$0xff]
      %v2850 = vld [vmem:[%s1230 + $0x51] sm:$0xff]
      %v2851 = vld [vmem:[%s1230 + $0x59] sm:$0xff]
      %v2852 = vld [vmem:[%s1230 + $0x61] sm:$0xff]
      %v2853 = vld [vmem:[%s1230 + $0x69] sm:$0xff]
      %v2854 = vld [vmem:[%s1230 + $0x79] sm:$0xff]
      %v2855 = vld [vmem:[%s1230 + $0x81] sm:$0xff]
      %v2856 = vld [vmem:[%s1230 + $0x89] sm:$0xff]
      %v2857 = vld [vmem:[%s1230 + $0x91] sm:$0xff]
      %v2858 = vld [vmem:[%s1230 + $0xa1] sm:$0xff]
      %v2859 = vld [vmem:[%s1230 + $0xa9] sm:$0xff]
      %v2860 = vld [vmem:[%s1230 + $0xb1] sm:$0xff]
      %v2861 = vld [vmem:[%s1230 + $0xb9] sm:$0xff]
      %v2862 = vld [vmem:[%s1230 + $0xc9] sm:$0xff]
      %v2863 = vld [vmem:[%s1230 + $0xd1] sm:$0xff]
      %v2864 = vld [vmem:[%s1230 + $0xd9] sm:$0xff]
      %v2865 = vld [vmem:[%s1230 + $0xe1] sm:$0xff]
      %v2866 = vld [vmem:[%s1230 + $0xf1] sm:$0xff]
      %v2867 = vld [vmem:[%s1230 + $0xf9] sm:$0xff]
      %v2868 = vld [vmem:[%s1230 + $0x101] sm:$0xff]
      %v2869 = vld [vmem:[%s1230 + $0x109] sm:$0xff]
      %v2870 = vld [vmem:[%s1230 + $0x119] sm:$0xff]
      %v2871 = vld [vmem:[%s1230 + $0x121] sm:$0xff]
      %v2872 = vld [vmem:[%s1230 + $0x129] sm:$0xff]
      %v2873 = vld [vmem:[%s1230 + $0x131] sm:$0xff]
      %v2874 = vld [vmem:[%s3 + $0x80] sm:$0xff]
      %v2875 = vld [vmem:[%s3 + $0x88] sm:$0xff]
      %v2876 = vld [vmem:[%s3 + $0x90] sm:$0xff]
      %v2877 = vld [vmem:[%s3 + $0x98] sm:$0xff]
      %v2879 = vsel %vm322, %v2842, 0
      %v2882 = vsel %vm322, %v2843, 0
      %v2885 = vsel %vm322, %v2844, 0
      %v2888 = vsel %vm322, %v2845, 0
      %v2891 = vsel %vm322, %v2846, 0
      %v2894 = vsel %vm322, %v2847, 0
      %v2897 = vsel %vm322, %v2848, 0
      %v2900 = vsel %vm322, %v2849, 0
      %v2903 = vsel %vm322, %v2850, 0
      %v2906 = vsel %vm322, %v2851, 0
      %v2909 = vsel %vm322, %v2852, 0
      %v2912 = vsel %vm322, %v2853, 0
      %v2915 = vsel %vm322, %v2854, 0
      %v2918 = vsel %vm322, %v2855, 0
      %v2921 = vsel %vm322, %v2856, 0
      %v2924 = vsel %vm322, %v2857, 0
      %v2927 = vsel %vm322, %v2858, 0
      %v2930 = vsel %vm322, %v2859, 0
      %v2933 = vsel %vm322, %v2860, 0
      %v2936 = vsel %vm322, %v2861, 0
      %v2939 = vsel %vm322, %v2862, 0
      %v2942 = vsel %vm322, %v2863, 0
      %v2945 = vsel %vm322, %v2864, 0
      %v2948 = vsel %vm322, %v2865, 0
      %v2951 = vsel %vm322, %v2866, 0
      %v2954 = vsel %vm322, %v2867, 0
      %v2957 = vsel %vm322, %v2868, 0
      %v2960 = vsel %vm322, %v2869, 0
      %v2963 = vsel %vm322, %v2870, 0
      %v2966 = vsel %vm322, %v2871, 0
      %v2969 = vsel %vm322, %v2872, 0
      %v2972 = vsel %vm322, %v2873, 0
      %2974 = vmatprep.subr.mxu0 0.0
      %2975 = vmatpush1.msra.mxu0 %v2874
      %2976 = vmatprep.subr.mxu0 0.0
      %2977 = vmatpush1.msra.mxu0 %v2875
      %2978 = vmatprep.subr.mxu0 0.0
      %2979 = vmatpush1.msra.mxu0 %v2876
      %2980 = vmatprep.subr.mxu0 0.0
      %2981 = vmatpush1.msra.mxu0 %v2877
      %2982 = vmatprep.subr.mxu0 0.0
      %2983 = vmatpush1.msra.mxu0 0.0
      %2984 = vmatprep.subr.mxu0 0.0
      %2985 = vmatpush1.msra.mxu0 0.0
      %2986 = vmatprep.subr.mxu0 0.0
      %2987 = vmatpush1.msra.mxu0 0.0
      %2988 = vmatprep.subr.mxu0 0.0
      %2989 = vmatpush1.msra.mxu0 0.0
      %2990 = vmatprep.subr.mxu0 0.0
      %2991 = vmatpush1.msra.mxu0 0.0
      %2992 = vmatprep.subr.mxu0 0.0
      %2993 = vmatpush1.msra.mxu0 0.0
      %2994 = vmatprep.subr.mxu0 0.0
      %2995 = vmatpush1.msra.mxu0 0.0
      %2996 = vmatprep.subr.mxu0 0.0
      %2997 = vmatpush1.msra.mxu0 0.0
      %2998 = vmatprep.subr.mxu0 0.0
      %2999 = vmatpush1.msra.mxu0 0.0
      %3000 = vmatprep.subr.mxu0 0.0
      %3001 = vmatpush1.msra.mxu0 0.0
      %3002 = vmatprep.subr.mxu0 0.0
      %3003 = vmatpush1.msra.mxu0 0.0
      %3004 = vmatprep.subr.mxu0 0.0
      %3005 = vmatpush1.msra.mxu0 0.0
      %3006 = vmatprep.subr.mxu0 0.0
      %3007 = vmatpush1.msra.mxu0 0.0
      %3008 = vmatprep.subr.mxu0 0.0
      %3009 = vmatpush1.msra.mxu0 0.0
      %3010 = vmatprep.subr.mxu0 0.0
      %3011 = vmatpush1.msra.mxu0 0.0
      %3012 = vmatprep.subr.mxu0 0.0
      %3013 = vmatpush1.msra.mxu0 0.0
      %3014 = vmatprep.subr.mxu0 0.0
      %3015 = vmatpush1.msra.mxu0 0.0
      %3016 = vmatprep.subr.mxu0 0.0
      %3017 = vmatpush1.msra.mxu0 0.0
      %3018 = vmatprep.subr.mxu0 0.0
      %3019 = vmatpush1.msra.mxu0 0.0
      %3020 = vmatprep.subr.mxu0 0.0
      %3021 = vmatpush1.msra.mxu0 0.0
      %3022 = vmatprep.subr.mxu0 0.0
      %3023 = vmatpush1.msra.mxu0 0.0
      %3024 = vmatprep.subr.mxu0 0.0
      %3025 = vmatpush1.msra.mxu0 0.0
      %3026 = vmatprep.subr.mxu0 0.0
      %3027 = vmatpush1.msra.mxu0 0.0
      %3028 = vmatprep.subr.mxu0 0.0
      %3029 = vmatpush1.msra.mxu0 0.0
      %3030 = vmatprep.subr.mxu0 0.0
      %3031 = vmatpush1.msra.mxu0 0.0
      %3032 = vmatprep.subr.mxu0 0.0
      %3033 = vmatpush1.msra.mxu0 0.0
      %3034 = vmatprep.subr.mxu0 0.0
      %3035 = vmatpush1.msra.mxu0 0.0
      %3036 = vmatprep.subr.mxu0 0.0
      %3037 = vmatpush1.msra.mxu0 0.0
      %3038 = vmatprep.mubr.f32.mxu0 0.0
      %3039 = vmatmul.mubr.f32.gmra.mrb[0].mxu0 %v2879
      %v3040 = vpop.f32.mrb[0].mxu0
      %v3041 = vadd.f32 0.0, %v3040
      %v3042 = vpop.f32.mrb[0].mxu0
      %3043 = vmatprep.mubr.f32.mxu0 0.0
      %3044 = vmatmul.mubr.f32.gmra.mrb[0].mxu0 %v2882
      %v3045 = vpop.f32.mrb[0].mxu0
      %v3046 = vadd.f32 0.0, %v3045
      %v3047 = vpop.f32.mrb[0].mxu0
      %3048 = vmatprep.mubr.f32.mxu0 0.0
      %3049 = vmatmul.mubr.f32.gmra.mrb[0].mxu0 %v2885
      %v3050 = vpop.f32.mrb[0].mxu0
      %v3051 = vadd.f32 0.0, %v3050
      %v3052 = vpop.f32.mrb[0].mxu0
      %3053 = vmatprep.mubr.f32.mxu0 0.0
      %3054 = vmatmul.mubr.f32.gmra.mrb[0].mxu0 %v2888
      %v3055 = vpop.f32.mrb[0].mxu0
      %v3056 = vadd.f32 0.0, %v3055
      %v3057 = vpop.f32.mrb[0].mxu0
      %3058 = vmatprep.mubr.f32.mxu0 0.0
      %3059 = vmatmul.mubr.f32.gmra.mrb[0].mxu0 %v2891
      %v3060 = vpop.f32.mrb[0].mxu0
      %v3061 = vadd.f32 0.0, %v3060
      %v3062 = vpop.f32.mrb[0].mxu0
      %3063 = vmatprep.mubr.f32.mxu0 0.0
      %3064 = vmatmul.mubr.f32.gmra.mrb[0].mxu0 %v2894
      %v3065 = vpop.f32.mrb[0].mxu0
      %v3066 = vadd.f32 0.0, %v3065
      %v3067 = vpop.f32.mrb[0].mxu0
      %3068 = vmatprep.mubr.f32.mxu0 0.0
      %3069 = vmatmul.mubr.f32.gmra.mrb[0].mxu0 %v2897
      %v3070 = vpop.f32.mrb[0].mxu0
      %v3071 = vadd.f32 0.0, %v3070
      %v3072 = vpop.f32.mrb[0].mxu0
      %3073 = vmatprep.mubr.f32.mxu0 0.0
      %3074 = vmatmul.mubr.f32.gmra.mrb[0].mxu0 %v2900
      %v3075 = vpop.f32.mrb[0].mxu0
      %v3076 = vadd.f32 0.0, %v3075
      %v3077 = vpop.f32.mrb[0].mxu0
      %3078 = vmatprep.mubr.f32.mxu0 0.0
      %3079 = vmatmul.mubr.f32.gmra.mrb[0].mxu0 %v2903
      %v3080 = vpop.f32.mrb[0].mxu0
      %v3081 = vadd.f32 0.0, %v3080
      %v3082 = vpop.f32.mrb[0].mxu0
      %3083 = vmatprep.mubr.f32.mxu0 0.0
      %3084 = vmatmul.mubr.f32.gmra.mrb[0].mxu0 %v2906
      %v3085 = vpop.f32.mrb[0].mxu0
      %v3086 = vadd.f32 0.0, %v3085
      %v3087 = vpop.f32.mrb[0].mxu0
      %3088 = vmatprep.mubr.f32.mxu0 0.0
      %3089 = vmatmul.mubr.f32.gmra.mrb[0].mxu0 %v2909
      %v3090 = vpop.f32.mrb[0].mxu0
      %v3091 = vadd.f32 0.0, %v3090
      %v3092 = vpop.f32.mrb[0].mxu0
      %3093 = vmatprep.mubr.f32.mxu0 0.0
      %3094 = vmatmul.mubr.f32.gmra.mrb[0].mxu0 %v2912
      %v3095 = vpop.f32.mrb[0].mxu0
      %v3096 = vadd.f32 0.0, %v3095
      %v3097 = vpop.f32.mrb[0].mxu0
      %3098 = vmatprep.mubr.f32.mxu0 0.0
      %3099 = vmatmul.mubr.f32.gmra.mrb[0].mxu0 %v2915
      %v3100 = vpop.f32.mrb[0].mxu0
      %v3101 = vadd.f32 0.0, %v3100
      %v3102 = vpop.f32.mrb[0].mxu0
      %3103 = vmatprep.mubr.f32.mxu0 0.0
      %3104 = vmatmul.mubr.f32.gmra.mrb[0].mxu0 %v2918
      %v3105 = vpop.f32.mrb[0].mxu0
      %v3106 = vadd.f32 0.0, %v3105
      %v3107 = vpop.f32.mrb[0].mxu0
      %3108 = vmatprep.mubr.f32.mxu0 0.0
      %3109 = vmatmul.mubr.f32.gmra.mrb[0].mxu0 %v2921
      %v3110 = vpop.f32.mrb[0].mxu0
      %v3111 = vadd.f32 0.0, %v3110
      %v3112 = vpop.f32.mrb[0].mxu0
      %3113 = vmatprep.mubr.f32.mxu0 0.0
      %3114 = vmatmul.mubr.f32.gmra.mrb[0].mxu0 %v2924
      %v3115 = vpop.f32.mrb[0].mxu0
      %v3116 = vadd.f32 0.0, %v3115
      %v3117 = vpop.f32.mrb[0].mxu0
      %3118 = vmatprep.mubr.f32.mxu0 0.0
      %3119 = vmatmul.mubr.f32.gmra.mrb[0].mxu0 %v2927
      %v3120 = vpop.f32.mrb[0].mxu0
      %v3121 = vadd.f32 0.0, %v3120
      %v3122 = vpop.f32.mrb[0].mxu0
      %3123 = vmatprep.mubr.f32.mxu0 0.0
      %3124 = vmatmul.mubr.f32.gmra.mrb[0].mxu0 %v2930
      %v3125 = vpop.f32.mrb[0].mxu0
      %v3126 = vadd.f32 0.0, %v3125
      %v3127 = vpop.f32.mrb[0].mxu0
      %3128 = vmatprep.mubr.f32.mxu0 0.0
      %3129 = vmatmul.mubr.f32.gmra.mrb[0].mxu0 %v2933
      %v3130 = vpop.f32.mrb[0].mxu0
      %v3131 = vadd.f32 0.0, %v3130
      %v3132 = vpop.f32.mrb[0].mxu0
      %3133 = vmatprep.mubr.f32.mxu0 0.0
      %3134 = vmatmul.mubr.f32.gmra.mrb[0].mxu0 %v2936
      %v3135 = vpop.f32.mrb[0].mxu0
      %v3136 = vadd.f32 0.0, %v3135
      %v3137 = vpop.f32.mrb[0].mxu0
      %3138 = vmatprep.mubr.f32.mxu0 0.0
      %3139 = vmatmul.mubr.f32.gmra.mrb[0].mxu0 %v2939
      %v3140 = vpop.f32.mrb[0].mxu0
      %v3141 = vadd.f32 0.0, %v3140
      %v3142 = vpop.f32.mrb[0].mxu0
      %3143 = vmatprep.mubr.f32.mxu0 0.0
      %3144 = vmatmul.mubr.f32.gmra.mrb[0].mxu0 %v2942
      %v3145 = vpop.f32.mrb[0].mxu0
      %v3146 = vadd.f32 0.0, %v3145
      %v3147 = vpop.f32.mrb[0].mxu0
      %3148 = vmatprep.mubr.f32.mxu0 0.0
      %3149 = vmatmul.mubr.f32.gmra.mrb[0].mxu0 %v2945
      %v3150 = vpop.f32.mrb[0].mxu0
      %v3151 = vadd.f32 0.0, %v3150
      %v3152 = vpop.f32.mrb[0].mxu0
      %3153 = vmatprep.mubr.f32.mxu0 0.0
      %3154 = vmatmul.mubr.f32.gmra.mrb[0].mxu0 %v2948
      %v3155 = vpop.f32.mrb[0].mxu0
      %v3156 = vadd.f32 0.0, %v3155
      %v3157 = vpop.f32.mrb[0].mxu0
      %3158 = vmatprep.mubr.f32.mxu0 0.0
      %3159 = vmatmul.mubr.f32.gmra.mrb[0].mxu0 %v2951
      %v3160 = vpop.f32.mrb[0].mxu0
      %v3161 = vadd.f32 0.0, %v3160
      %v3162 = vpop.f32.mrb[0].mxu0
      %3163 = vmatprep.mubr.f32.mxu0 0.0
      %3164 = vmatmul.mubr.f32.gmra.mrb[0].mxu0 %v2954
      %v3165 = vpop.f32.mrb[0].mxu0
      %v3166 = vadd.f32 0.0, %v3165
      %v3167 = vpop.f32.mrb[0].mxu0
      %3168 = vmatprep.mubr.f32.mxu0 0.0
      %3169 = vmatmul.mubr.f32.gmra.mrb[0].mxu0 %v2957
      %v3170 = vpop.f32.mrb[0].mxu0
      %v3171 = vadd.f32 0.0, %v3170
      %v3172 = vpop.f32.mrb[0].mxu0
      %3173 = vmatprep.mubr.f32.mxu0 0.0
      %3174 = vmatmul.mubr.f32.gmra.mrb[0].mxu0 %v2960
      %v3175 = vpop.f32.mrb[0].mxu0
      %v3176 = vadd.f32 0.0, %v3175
      %v3177 = vpop.f32.mrb[0].mxu0
      %3178 = vmatprep.mubr.f32.mxu0 0.0
      %3179 = vmatmul.mubr.f32.gmra.mrb[0].mxu0 %v2963
      %v3180 = vpop.f32.mrb[0].mxu0
      %v3181 = vadd.f32 0.0, %v3180
      %v3182 = vpop.f32.mrb[0].mxu0
      %3183 = vmatprep.mubr.f32.mxu0 0.0
      %3184 = vmatmul.mubr.f32.gmra.mrb[0].mxu0 %v2966
      %v3185 = vpop.f32.mrb[0].mxu0
      %v3186 = vadd.f32 0.0, %v3185
      %v3187 = vpop.f32.mrb[0].mxu0
      %3188 = vmatprep.mubr.f32.mxu0 0.0
      %3189 = vmatmul.mubr.f32.gmra.mrb[0].mxu0 %v2969
      %v3190 = vpop.f32.mrb[0].mxu0
      %v3191 = vadd.f32 0.0, %v3190
      %v3192 = vpop.f32.mrb[0].mxu0
      %3193 = vmatprep.mubr.f32.mxu0 0.0
      %3194 = vmatmul.mubr.f32.gmra.mrb[0].mxu0 %v2972
      %v3195 = vpop.f32.mrb[0].mxu0
      %v3196 = vadd.f32 0.0, %v3195
      %v3197 = vpop.f32.mrb[0].mxu0
      %3198 = vdwg.mxu0
      %v3199 = vadd.f32 %v2810, %v3041
      %v3200 = vadd.f32 %v2811, %v3046
      %v3201 = vadd.f32 %v2812, %v3051
      %v3202 = vadd.f32 %v2813, %v3056
      %v3203 = vadd.f32 %v2814, %v3061
      %v3204 = vadd.f32 %v2815, %v3066
      %v3205 = vadd.f32 %v2816, %v3071
      %v3206 = vadd.f32 %v2817, %v3076
      %v3207 = vadd.f32 %v2818, %v3081
      %v3208 = vadd.f32 %v2819, %v3086
      %v3209 = vadd.f32 %v2820, %v3091
      %v3210 = vadd.f32 %v2821, %v3096
      %v3211 = vadd.f32 %v2822, %v3101
      %v3212 = vadd.f32 %v2823, %v3106
      %v3213 = vadd.f32 %v2824, %v3111
      %v3214 = vadd.f32 %v2825, %v3116
      %v3215 = vadd.f32 %v2826, %v3121
      %v3216 = vadd.f32 %v2827, %v3126
      %v3217 = vadd.f32 %v2828, %v3131
      %v3218 = vadd.f32 %v2829, %v3136
      %v3219 = vadd.f32 %v2830, %v3141
      %v3220 = vadd.f32 %v2831, %v3146
      %v3221 = vadd.f32 %v2832, %v3151
      %v3222 = vadd.f32 %v2833, %v3156
      %v3223 = vadd.f32 %v2834, %v3161
      %v3224 = vadd.f32 %v2835, %v3166
      %v3225 = vadd.f32 %v2836, %v3171
      %v3226 = vadd.f32 %v2837, %v3176
      %v3227 = vadd.f32 %v2838, %v3181
      %v3228 = vadd.f32 %v2839, %v3186
      %v3229 = vadd.f32 %v2840, %v3191
      %v3230 = vadd.f32 %v2841, %v3196
      %v3231 = vld [vmem:[%s1230 + $0x2] sm:$0xff]
      %v3232 = vld [vmem:[%s1230 + $0xa] sm:$0xff]
      %v3233 = vld [vmem:[%s1230 + $0x12] sm:$0xff]
      %v3234 = vld [vmem:[%s1230 + $0x1a] sm:$0xff]
      %v3235 = vld [vmem:[%s1230 + $0x2a] sm:$0xff]
      %v3236 = vld [vmem:[%s1230 + $0x32] sm:$0xff]
      %v3237 = vld [vmem:[%s1230 + $0x3a] sm:$0xff]
      %v3238 = vld [vmem:[%s1230 + $0x42] sm:$0xff]
      %v3239 = vld [vmem:[%s1230 + $0x52] sm:$0xff]
      %v3240 = vld [vmem:[%s1230 + $0x5a] sm:$0xff]
      %v3241 = vld [vmem:[%s1230 + $0x62] sm:$0xff]
      %v3242 = vld [vmem:[%s1230 + $0x6a] sm:$0xff]
      %v3243 = vld [vmem:[%s1230 + $0x7a] sm:$0xff]
      %v3244 = vld [vmem:[%s1230 + $0x82] sm:$0xff]
      %v3245 = vld [vmem:[%s1230 + $0x8a] sm:$0xff]
      %v3246 = vld [vmem:[%s1230 + $0x92] sm:$0xff]
      %v3247 = vld [vmem:[%s1230 + $0xa2] sm:$0xff]
      %v3248 = vld [vmem:[%s1230 + $0xaa] sm:$0xff]
      %v3249 = vld [vmem:[%s1230 + $0xb2] sm:$0xff]
      %v3250 = vld [vmem:[%s1230 + $0xba] sm:$0xff]
      %v3251 = vld [vmem:[%s1230 + $0xca] sm:$0xff]
      %v3252 = vld [vmem:[%s1230 + $0xd2] sm:$0xff]
      %v3253 = vld [vmem:[%s1230 + $0xda] sm:$0xff]
      %v3254 = vld [vmem:[%s1230 + $0xe2] sm:$0xff]
      %v3255 = vld [vmem:[%s1230 + $0xf2] sm:$0xff]
      %v3256 = vld [vmem:[%s1230 + $0xfa] sm:$0xff]
      %v3257 = vld [vmem:[%s1230 + $0x102] sm:$0xff]
      %v3258 = vld [vmem:[%s1230 + $0x10a] sm:$0xff]
      %v3259 = vld [vmem:[%s1230 + $0x11a] sm:$0xff]
      %v3260 = vld [vmem:[%s1230 + $0x122] sm:$0xff]
      %v3261 = vld [vmem:[%s1230 + $0x12a] sm:$0xff]
      %v3262 = vld [vmem:[%s1230 + $0x132] sm:$0xff]
      %v3263 = vld [vmem:[%s3 + $0xa0] sm:$0xff]
      %v3264 = vld [vmem:[%s3 + $0xa8] sm:$0xff]
      %v3265 = vld [vmem:[%s3 + $0xb0] sm:$0xff]
      %v3266 = vld [vmem:[%s3 + $0xb8] sm:$0xff]
      %v3268 = vsel %vm322, %v3231, 0
      %v3271 = vsel %vm322, %v3232, 0
      %v3274 = vsel %vm322, %v3233, 0
      %v3277 = vsel %vm322, %v3234, 0
      %v3280 = vsel %vm322, %v3235, 0
      %v3283 = vsel %vm322, %v3236, 0
      %v3286 = vsel %vm322, %v3237, 0
      %v3289 = vsel %vm322, %v3238, 0
      %v3292 = vsel %vm322, %v3239, 0
      %v3295 = vsel %vm322, %v3240, 0
      %v3298 = vsel %vm322, %v3241, 0
      %v3301 = vsel %vm322, %v3242, 0
      %v3304 = vsel %vm322, %v3243, 0
      %v3307 = vsel %vm322, %v3244, 0
      %v3310 = vsel %vm322, %v3245, 0
      %v3313 = vsel %vm322, %v3246, 0
      %v3316 = vsel %vm322, %v3247, 0
      %v3319 = vsel %vm322, %v3248, 0
      %v3322 = vsel %vm322, %v3249, 0
      %v3325 = vsel %vm322, %v3250, 0
      %v3328 = vsel %vm322, %v3251, 0
      %v3331 = vsel %vm322, %v3252, 0
      %v3334 = vsel %vm322, %v3253, 0
      %v3337 = vsel %vm322, %v3254, 0
      %v3340 = vsel %vm322, %v3255, 0
      %v3343 = vsel %vm322, %v3256, 0
      %v3346 = vsel %vm322, %v3257, 0
      %v3349 = vsel %vm322, %v3258, 0
      %v3352 = vsel %vm322, %v3259, 0
      %v3355 = vsel %vm322, %v3260, 0
      %v3358 = vsel %vm322, %v3261, 0
      %v3361 = vsel %vm322, %v3262, 0
      %3363 = vmatprep.subr.mxu0 0.0
      %3364 = vmatpush1.msra.mxu0 %v3263
      %3365 = vmatprep.subr.mxu0 0.0
      %3366 = vmatpush1.msra.mxu0 %v3264
      %3367 = vmatprep.subr.mxu0 0.0
      %3368 = vmatpush1.msra.mxu0 %v3265
      %3369 = vmatprep.subr.mxu0 0.0
      %3370 = vmatpush1.msra.mxu0 %v3266
      %3371 = vmatprep.subr.mxu0 0.0
      %3372 = vmatpush1.msra.mxu0 0.0
      %3373 = vmatprep.subr.mxu0 0.0
      %3374 = vmatpush1.msra.mxu0 0.0
      %3375 = vmatprep.subr.mxu0 0.0
      %3376 = vmatpush1.msra.mxu0 0.0
      %3377 = vmatprep.subr.mxu0 0.0
      %3378 = vmatpush1.msra.mxu0 0.0
      %3379 = vmatprep.subr.mxu0 0.0
      %3380 = vmatpush1.msra.mxu0 0.0
      %3381 = vmatprep.subr.mxu0 0.0
      %3382 = vmatpush1.msra.mxu0 0.0
      %3383 = vmatprep.subr.mxu0 0.0
      %3384 = vmatpush1.msra.mxu0 0.0
      %3385 = vmatprep.subr.mxu0 0.0
      %3386 = vmatpush1.msra.mxu0 0.0
      %3387 = vmatprep.subr.mxu0 0.0
      %3388 = vmatpush1.msra.mxu0 0.0
      %3389 = vmatprep.subr.mxu0 0.0
      %3390 = vmatpush1.msra.mxu0 0.0
      %3391 = vmatprep.subr.mxu0 0.0
      %3392 = vmatpush1.msra.mxu0 0.0
      %3393 = vmatprep.subr.mxu0 0.0
      %3394 = vmatpush1.msra.mxu0 0.0
      %3395 = vmatprep.subr.mxu0 0.0
      %3396 = vmatpush1.msra.mxu0 0.0
      %3397 = vmatprep.subr.mxu0 0.0
      %3398 = vmatpush1.msra.mxu0 0.0
      %3399 = vmatprep.subr.mxu0 0.0
      %3400 = vmatpush1.msra.mxu0 0.0
      %3401 = vmatprep.subr.mxu0 0.0
      %3402 = vmatpush1.msra.mxu0 0.0
      %3403 = vmatprep.subr.mxu0 0.0
      %3404 = vmatpush1.msra.mxu0 0.0
      %3405 = vmatprep.subr.mxu0 0.0
      %3406 = vmatpush1.msra.mxu0 0.0
      %3407 = vmatprep.subr.mxu0 0.0
      %3408 = vmatpush1.msra.mxu0 0.0
      %3409 = vmatprep.subr.mxu0 0.0
      %3410 = vmatpush1.msra.mxu0 0.0
      %3411 = vmatprep.subr.mxu0 0.0
      %3412 = vmatpush1.msra.mxu0 0.0
      %3413 = vmatprep.subr.mxu0 0.0
      %3414 = vmatpush1.msra.mxu0 0.0
      %3415 = vmatprep.subr.mxu0 0.0
      %3416 = vmatpush1.msra.mxu0 0.0
      %3417 = vmatprep.subr.mxu0 0.0
      %3418 = vmatpush1.msra.mxu0 0.0
      %3419 = vmatprep.subr.mxu0 0.0
      %3420 = vmatpush1.msra.mxu0 0.0
      %3421 = vmatprep.subr.mxu0 0.0
      %3422 = vmatpush1.msra.mxu0 0.0
      %3423 = vmatprep.subr.mxu0 0.0
      %3424 = vmatpush1.msra.mxu0 0.0
      %3425 = vmatprep.subr.mxu0 0.0
      %3426 = vmatpush1.msra.mxu0 0.0
      %3427 = vmatprep.mubr.f32.mxu0 0.0
      %3428 = vmatmul.mubr.f32.gmra.mrb[0].mxu0 %v3268
      %v3429 = vpop.f32.mrb[0].mxu0
      %v3430 = vadd.f32 0.0, %v3429
      %v3431 = vpop.f32.mrb[0].mxu0
      %3432 = vmatprep.mubr.f32.mxu0 0.0
      %3433 = vmatmul.mubr.f32.gmra.mrb[0].mxu0 %v3271
      %v3434 = vpop.f32.mrb[0].mxu0
      %v3435 = vadd.f32 0.0, %v3434
      %v3436 = vpop.f32.mrb[0].mxu0
      %3437 = vmatprep.mubr.f32.mxu0 0.0
      %3438 = vmatmul.mubr.f32.gmra.mrb[0].mxu0 %v3274
      %v3439 = vpop.f32.mrb[0].mxu0
      %v3440 = vadd.f32 0.0, %v3439
      %v3441 = vpop.f32.mrb[0].mxu0
      %3442 = vmatprep.mubr.f32.mxu0 0.0
      %3443 = vmatmul.mubr.f32.gmra.mrb[0].mxu0 %v3277
      %v3444 = vpop.f32.mrb[0].mxu0
      %v3445 = vadd.f32 0.0, %v3444
      %v3446 = vpop.f32.mrb[0].mxu0
      %3447 = vmatprep.mubr.f32.mxu0 0.0
      %3448 = vmatmul.mubr.f32.gmra.mrb[0].mxu0 %v3280
      %v3449 = vpop.f32.mrb[0].mxu0
      %v3450 = vadd.f32 0.0, %v3449
      %v3451 = vpop.f32.mrb[0].mxu0
      %3452 = vmatprep.mubr.f32.mxu0 0.0
      %3453 = vmatmul.mubr.f32.gmra.mrb[0].mxu0 %v3283
      %v3454 = vpop.f32.mrb[0].mxu0
      %v3455 = vadd.f32 0.0, %v3454
      %v3456 = vpop.f32.mrb[0].mxu0
      %3457 = vmatprep.mubr.f32.mxu0 0.0
      %3458 = vmatmul.mubr.f32.gmra.mrb[0].mxu0 %v3286
      %v3459 = vpop.f32.mrb[0].mxu0
      %v3460 = vadd.f32 0.0, %v3459
      %v3461 = vpop.f32.mrb[0].mxu0
      %3462 = vmatprep.mubr.f32.mxu0 0.0
      %3463 = vmatmul.mubr.f32.gmra.mrb[0].mxu0 %v3289
      %v3464 = vpop.f32.mrb[0].mxu0
      %v3465 = vadd.f32 0.0, %v3464
      %v3466 = vpop.f32.mrb[0].mxu0
      %3467 = vmatprep.mubr.f32.mxu0 0.0
      %3468 = vmatmul.mubr.f32.gmra.mrb[0].mxu0 %v3292
      %v3469 = vpop.f32.mrb[0].mxu0
      %v3470 = vadd.f32 0.0, %v3469
      %v3471 = vpop.f32.mrb[0].mxu0
      %3472 = vmatprep.mubr.f32.mxu0 0.0
      %3473 = vmatmul.mubr.f32.gmra.mrb[0].mxu0 %v3295
      %v3474 = vpop.f32.mrb[0].mxu0
      %v3475 = vadd.f32 0.0, %v3474
      %v3476 = vpop.f32.mrb[0].mxu0
      %3477 = vmatprep.mubr.f32.mxu0 0.0
      %3478 = vmatmul.mubr.f32.gmra.mrb[0].mxu0 %v3298
      %v3479 = vpop.f32.mrb[0].mxu0
      %v3480 = vadd.f32 0.0, %v3479
      %v3481 = vpop.f32.mrb[0].mxu0
      %3482 = vmatprep.mubr.f32.mxu0 0.0
      %3483 = vmatmul.mubr.f32.gmra.mrb[0].mxu0 %v3301
      %v3484 = vpop.f32.mrb[0].mxu0
      %v3485 = vadd.f32 0.0, %v3484
      %v3486 = vpop.f32.mrb[0].mxu0
      %3487 = vmatprep.mubr.f32.mxu0 0.0
      %3488 = vmatmul.mubr.f32.gmra.mrb[0].mxu0 %v3304
      %v3489 = vpop.f32.mrb[0].mxu0
      %v3490 = vadd.f32 0.0, %v3489
      %v3491 = vpop.f32.mrb[0].mxu0
      %3492 = vmatprep.mubr.f32.mxu0 0.0
      %3493 = vmatmul.mubr.f32.gmra.mrb[0].mxu0 %v3307
      %v3494 = vpop.f32.mrb[0].mxu0
      %v3495 = vadd.f32 0.0, %v3494
      %v3496 = vpop.f32.mrb[0].mxu0
      %3497 = vmatprep.mubr.f32.mxu0 0.0
      %3498 = vmatmul.mubr.f32.gmra.mrb[0].mxu0 %v3310
      %v3499 = vpop.f32.mrb[0].mxu0
      %v3500 = vadd.f32 0.0, %v3499
      %v3501 = vpop.f32.mrb[0].mxu0
      %3502 = vmatprep.mubr.f32.mxu0 0.0
      %3503 = vmatmul.mubr.f32.gmra.mrb[0].mxu0 %v3313
      %v3504 = vpop.f32.mrb[0].mxu0
      %v3505 = vadd.f32 0.0, %v3504
      %v3506 = vpop.f32.mrb[0].mxu0
      %3507 = vmatprep.mubr.f32.mxu0 0.0
      %3508 = vmatmul.mubr.f32.gmra.mrb[0].mxu0 %v3316
      %v3509 = vpop.f32.mrb[0].mxu0
      %v3510 = vadd.f32 0.0, %v3509
      %v3511 = vpop.f32.mrb[0].mxu0
      %3512 = vmatprep.mubr.f32.mxu0 0.0
      %3513 = vmatmul.mubr.f32.gmra.mrb[0].mxu0 %v3319
      %v3514 = vpop.f32.mrb[0].mxu0
      %v3515 = vadd.f32 0.0, %v3514
      %v3516 = vpop.f32.mrb[0].mxu0
      %3517 = vmatprep.mubr.f32.mxu0 0.0
      %3518 = vmatmul.mubr.f32.gmra.mrb[0].mxu0 %v3322
      %v3519 = vpop.f32.mrb[0].mxu0
      %v3520 = vadd.f32 0.0, %v3519
      %v3521 = vpop.f32.mrb[0].mxu0
      %3522 = vmatprep.mubr.f32.mxu0 0.0
      %3523 = vmatmul.mubr.f32.gmra.mrb[0].mxu0 %v3325
      %v3524 = vpop.f32.mrb[0].mxu0
      %v3525 = vadd.f32 0.0, %v3524
      %v3526 = vpop.f32.mrb[0].mxu0
      %3527 = vmatprep.mubr.f32.mxu0 0.0
      %3528 = vmatmul.mubr.f32.gmra.mrb[0].mxu0 %v3328
      %v3529 = vpop.f32.mrb[0].mxu0
      %v3530 = vadd.f32 0.0, %v3529
      %v3531 = vpop.f32.mrb[0].mxu0
      %3532 = vmatprep.mubr.f32.mxu0 0.0
      %3533 = vmatmul.mubr.f32.gmra.mrb[0].mxu0 %v3331
      %v3534 = vpop.f32.mrb[0].mxu0
      %v3535 = vadd.f32 0.0, %v3534
      %v3536 = vpop.f32.mrb[0].mxu0
      %3537 = vmatprep.mubr.f32.mxu0 0.0
      %3538 = vmatmul.mubr.f32.gmra.mrb[0].mxu0 %v3334
      %v3539 = vpop.f32.mrb[0].mxu0
      %v3540 = vadd.f32 0.0, %v3539
      %v3541 = vpop.f32.mrb[0].mxu0
      %3542 = vmatprep.mubr.f32.mxu0 0.0
      %3543 = vmatmul.mubr.f32.gmra.mrb[0].mxu0 %v3337
      %v3544 = vpop.f32.mrb[0].mxu0
      %v3545 = vadd.f32 0.0, %v3544
      %v3546 = vpop.f32.mrb[0].mxu0
      %3547 = vmatprep.mubr.f32.mxu0 0.0
      %3548 = vmatmul.mubr.f32.gmra.mrb[0].mxu0 %v3340
      %v3549 = vpop.f32.mrb[0].mxu0
      %v3550 = vadd.f32 0.0, %v3549
      %v3551 = vpop.f32.mrb[0].mxu0
      %3552 = vmatprep.mubr.f32.mxu0 0.0
      %3553 = vmatmul.mubr.f32.gmra.mrb[0].mxu0 %v3343
      %v3554 = vpop.f32.mrb[0].mxu0
      %v3555 = vadd.f32 0.0, %v3554
      %v3556 = vpop.f32.mrb[0].mxu0
      %3557 = vmatprep.mubr.f32.mxu0 0.0
      %3558 = vmatmul.mubr.f32.gmra.mrb[0].mxu0 %v3346
      %v3559 = vpop.f32.mrb[0].mxu0
      %v3560 = vadd.f32 0.0, %v3559
      %v3561 = vpop.f32.mrb[0].mxu0
      %3562 = vmatprep.mubr.f32.mxu0 0.0
      %3563 = vmatmul.mubr.f32.gmra.mrb[0].mxu0 %v3349
      %v3564 = vpop.f32.mrb[0].mxu0
      %v3565 = vadd.f32 0.0, %v3564
      %v3566 = vpop.f32.mrb[0].mxu0
      %3567 = vmatprep.mubr.f32.mxu0 0.0
      %3568 = vmatmul.mubr.f32.gmra.mrb[0].mxu0 %v3352
      %v3569 = vpop.f32.mrb[0].mxu0
      %v3570 = vadd.f32 0.0, %v3569
      %v3571 = vpop.f32.mrb[0].mxu0
      %3572 = vmatprep.mubr.f32.mxu0 0.0
      %3573 = vmatmul.mubr.f32.gmra.mrb[0].mxu0 %v3355
      %v3574 = vpop.f32.mrb[0].mxu0
      %v3575 = vadd.f32 0.0, %v3574
      %v3576 = vpop.f32.mrb[0].mxu0
      %3577 = vmatprep.mubr.f32.mxu0 0.0
      %3578 = vmatmul.mubr.f32.gmra.mrb[0].mxu0 %v3358
      %v3579 = vpop.f32.mrb[0].mxu0
      %v3580 = vadd.f32 0.0, %v3579
      %v3581 = vpop.f32.mrb[0].mxu0
      %3582 = vmatprep.mubr.f32.mxu0 0.0
      %3583 = vmatmul.mubr.f32.gmra.mrb[0].mxu0 %v3361
      %v3584 = vpop.f32.mrb[0].mxu0
      %v3585 = vadd.f32 0.0, %v3584
      %v3586 = vpop.f32.mrb[0].mxu0
      %3587 = vdwg.mxu0
      %v3588 = vadd.f32 %v3199, %v3430
      %v3589 = vadd.f32 %v3200, %v3435
      %v3590 = vadd.f32 %v3201, %v3440
      %v3591 = vadd.f32 %v3202, %v3445
      %v3592 = vadd.f32 %v3203, %v3450
      %v3593 = vadd.f32 %v3204, %v3455
      %v3594 = vadd.f32 %v3205, %v3460
      %v3595 = vadd.f32 %v3206, %v3465
      %v3596 = vadd.f32 %v3207, %v3470
      %v3597 = vadd.f32 %v3208, %v3475
      %v3598 = vadd.f32 %v3209, %v3480
      %v3599 = vadd.f32 %v3210, %v3485
      %v3600 = vadd.f32 %v3211, %v3490
      %v3601 = vadd.f32 %v3212, %v3495
      %v3602 = vadd.f32 %v3213, %v3500
      %v3603 = vadd.f32 %v3214, %v3505
      %v3604 = vadd.f32 %v3215, %v3510
      %v3605 = vadd.f32 %v3216, %v3515
      %v3606 = vadd.f32 %v3217, %v3520
      %v3607 = vadd.f32 %v3218, %v3525
      %v3608 = vadd.f32 %v3219, %v3530
      %v3609 = vadd.f32 %v3220, %v3535
      %v3610 = vadd.f32 %v3221, %v3540
      %v3611 = vadd.f32 %v3222, %v3545
      %v3612 = vadd.f32 %v3223, %v3550
      %v3613 = vadd.f32 %v3224, %v3555
      %v3614 = vadd.f32 %v3225, %v3560
      %v3615 = vadd.f32 %v3226, %v3565
      %v3616 = vadd.f32 %v3227, %v3570
      %v3617 = vadd.f32 %v3228, %v3575
      %v3618 = vadd.f32 %v3229, %v3580
      %v3619 = vadd.f32 %v3230, %v3585
      %s3620 = scalar_lea.vmem [#allocation3], 80
      %v3621 = vld [vmem:[%s3620] sm:$0xff]
      %v3622 = vld [vmem:[%s3620 + $0x8] sm:$0xff]
      %v3623 = vld [vmem:[%s3620 + $0x10] sm:$0xff]
      %v3624 = vld [vmem:[%s3620 + $0x18] sm:$0xff]
      %v3625 = vld [vmem:[%s3620 + $0x28] sm:$0xff]
      %v3626 = vld [vmem:[%s3620 + $0x30] sm:$0xff]
      %v3627 = vld [vmem:[%s3620 + $0x38] sm:$0xff]
      %v3628 = vld [vmem:[%s3620 + $0x40] sm:$0xff]
      %v3629 = vld [vmem:[%s3620 + $0x50] sm:$0xff]
      %v3630 = vld [vmem:[%s3620 + $0x58] sm:$0xff]
      %v3631 = vld [vmem:[%s3620 + $0x60] sm:$0xff]
      %v3632 = vld [vmem:[%s3620 + $0x68] sm:$0xff]
      %v3633 = vld [vmem:[%s3620 + $0x78] sm:$0xff]
      %v3634 = vld [vmem:[%s3620 + $0x80] sm:$0xff]
      %v3635 = vld [vmem:[%s3620 + $0x88] sm:$0xff]
      %v3636 = vld [vmem:[%s3620 + $0x90] sm:$0xff]
      %v3637 = vld [vmem:[%s3620 + $0xa0] sm:$0xff]
      %v3638 = vld [vmem:[%s3620 + $0xa8] sm:$0xff]
      %v3639 = vld [vmem:[%s3620 + $0xb0] sm:$0xff]
      %v3640 = vld [vmem:[%s3620 + $0xb8] sm:$0xff]
      %v3641 = vld [vmem:[%s3620 + $0xc8] sm:$0xff]
      %v3642 = vld [vmem:[%s3620 + $0xd0] sm:$0xff]
      %v3643 = vld [vmem:[%s3620 + $0xd8] sm:$0xff]
      %v3644 = vld [vmem:[%s3620 + $0xe0] sm:$0xff]
      %v3645 = vld [vmem:[%s3620 + $0xf0] sm:$0xff]
      %v3646 = vld [vmem:[%s3620 + $0xf8] sm:$0xff]
      %v3647 = vld [vmem:[%s3620 + $0x100] sm:$0xff]
      %v3648 = vld [vmem:[%s3620 + $0x108] sm:$0xff]
      %v3649 = vld [vmem:[%s3620 + $0x118] sm:$0xff]
      %v3650 = vld [vmem:[%s3620 + $0x120] sm:$0xff]
      %v3651 = vld [vmem:[%s3620 + $0x128] sm:$0xff]
      %v3652 = vld [vmem:[%s3620 + $0x130] sm:$0xff]
      %v3653 = vld [vmem:[%s3 + $0xc0] sm:$0xff]
      %v3654 = vld [vmem:[%s3 + $0xc8] sm:$0xff]
      %v3655 = vld [vmem:[%s3 + $0xd0] sm:$0xff]
      %v3656 = vld [vmem:[%s3 + $0xd8] sm:$0xff]
      %v3658 = vsel %vm322, %v3621, 0
      %v3661 = vsel %vm322, %v3622, 0
      %v3664 = vsel %vm322, %v3623, 0
      %v3667 = vsel %vm322, %v3624, 0
      %v3670 = vsel %vm322, %v3625, 0
      %v3673 = vsel %vm322, %v3626, 0
      %v3676 = vsel %vm322, %v3627, 0
      %v3679 = vsel %vm322, %v3628, 0
      %v3682 = vsel %vm322, %v3629, 0
      %v3685 = vsel %vm322, %v3630, 0
      %v3688 = vsel %vm322, %v3631, 0
      %v3691 = vsel %vm322, %v3632, 0
      %v3694 = vsel %vm322, %v3633, 0
      %v3697 = vsel %vm322, %v3634, 0
      %v3700 = vsel %vm322, %v3635, 0
      %v3703 = vsel %vm322, %v3636, 0
      %v3706 = vsel %vm322, %v3637, 0
      %v3709 = vsel %vm322, %v3638, 0
      %v3712 = vsel %vm322, %v3639, 0
      %v3715 = vsel %vm322, %v3640, 0
      %v3718 = vsel %vm322, %v3641, 0
      %v3721 = vsel %vm322, %v3642, 0
      %v3724 = vsel %vm322, %v3643, 0
      %v3727 = vsel %vm322, %v3644, 0
      %v3730 = vsel %vm322, %v3645, 0
      %v3733 = vsel %vm322, %v3646, 0
      %v3736 = vsel %vm322, %v3647, 0
      %v3739 = vsel %vm322, %v3648, 0
      %v3742 = vsel %vm322, %v3649, 0
      %v3745 = vsel %vm322, %v3650, 0
      %v3748 = vsel %vm322, %v3651, 0
      %v3751 = vsel %vm322, %v3652, 0
      %3753 = vmatprep.subr.mxu0 0.0
      %3754 = vmatpush1.msra.mxu0 %v3653
      %3755 = vmatprep.subr.mxu0 0.0
      %3756 = vmatpush1.msra.mxu0 %v3654
      %3757 = vmatprep.subr.mxu0 0.0
      %3758 = vmatpush1.msra.mxu0 %v3655
      %3759 = vmatprep.subr.mxu0 0.0
      %3760 = vmatpush1.msra.mxu0 %v3656
      %3761 = vmatprep.subr.mxu0 0.0
      %3762 = vmatpush1.msra.mxu0 0.0
      %3763 = vmatprep.subr.mxu0 0.0
      %3764 = vmatpush1.msra.mxu0 0.0
      %3765 = vmatprep.subr.mxu0 0.0
      %3766 = vmatpush1.msra.mxu0 0.0
      %3767 = vmatprep.subr.mxu0 0.0
      %3768 = vmatpush1.msra.mxu0 0.0
      %3769 = vmatprep.subr.mxu0 0.0
      %3770 = vmatpush1.msra.mxu0 0.0
      %3771 = vmatprep.subr.mxu0 0.0
      %3772 = vmatpush1.msra.mxu0 0.0
      %3773 = vmatprep.subr.mxu0 0.0
      %3774 = vmatpush1.msra.mxu0 0.0
      %3775 = vmatprep.subr.mxu0 0.0
      %3776 = vmatpush1.msra.mxu0 0.0
      %3777 = vmatprep.subr.mxu0 0.0
      %3778 = vmatpush1.msra.mxu0 0.0
      %3779 = vmatprep.subr.mxu0 0.0
      %3780 = vmatpush1.msra.mxu0 0.0
      %3781 = vmatprep.subr.mxu0 0.0
      %3782 = vmatpush1.msra.mxu0 0.0
      %3783 = vmatprep.subr.mxu0 0.0
      %3784 = vmatpush1.msra.mxu0 0.0
      %3785 = vmatprep.subr.mxu0 0.0
      %3786 = vmatpush1.msra.mxu0 0.0
      %3787 = vmatprep.subr.mxu0 0.0
      %3788 = vmatpush1.msra.mxu0 0.0
      %3789 = vmatprep.subr.mxu0 0.0
      %3790 = vmatpush1.msra.mxu0 0.0
      %3791 = vmatprep.subr.mxu0 0.0
      %3792 = vmatpush1.msra.mxu0 0.0
      %3793 = vmatprep.subr.mxu0 0.0
      %3794 = vmatpush1.msra.mxu0 0.0
      %3795 = vmatprep.subr.mxu0 0.0
      %3796 = vmatpush1.msra.mxu0 0.0
      %3797 = vmatprep.subr.mxu0 0.0
      %3798 = vmatpush1.msra.mxu0 0.0
      %3799 = vmatprep.subr.mxu0 0.0
      %3800 = vmatpush1.msra.mxu0 0.0
      %3801 = vmatprep.subr.mxu0 0.0
      %3802 = vmatpush1.msra.mxu0 0.0
      %3803 = vmatprep.subr.mxu0 0.0
      %3804 = vmatpush1.msra.mxu0 0.0
      %3805 = vmatprep.subr.mxu0 0.0
      %3806 = vmatpush1.msra.mxu0 0.0
      %3807 = vmatprep.subr.mxu0 0.0
      %3808 = vmatpush1.msra.mxu0 0.0
      %3809 = vmatprep.subr.mxu0 0.0
      %3810 = vmatpush1.msra.mxu0 0.0
      %3811 = vmatprep.subr.mxu0 0.0
      %3812 = vmatpush1.msra.mxu0 0.0
      %3813 = vmatprep.subr.mxu0 0.0
      %3814 = vmatpush1.msra.mxu0 0.0
      %3815 = vmatprep.subr.mxu0 0.0
      %3816 = vmatpush1.msra.mxu0 0.0
      %3817 = vmatprep.mubr.f32.mxu0 0.0
      %3818 = vmatmul.mubr.f32.gmra.mrb[0].mxu0 %v3658
      %v3819 = vpop.f32.mrb[0].mxu0
      %v3820 = vadd.f32 0.0, %v3819
      %v3821 = vpop.f32.mrb[0].mxu0
      %3822 = vmatprep.mubr.f32.mxu0 0.0
      %3823 = vmatmul.mubr.f32.gmra.mrb[0].mxu0 %v3661
      %v3824 = vpop.f32.mrb[0].mxu0
      %v3825 = vadd.f32 0.0, %v3824
      %v3826 = vpop.f32.mrb[0].mxu0
      %3827 = vmatprep.mubr.f32.mxu0 0.0
      %3828 = vmatmul.mubr.f32.gmra.mrb[0].mxu0 %v3664
      %v3829 = vpop.f32.mrb[0].mxu0
      %v3830 = vadd.f32 0.0, %v3829
      %v3831 = vpop.f32.mrb[0].mxu0
      %3832 = vmatprep.mubr.f32.mxu0 0.0
      %3833 = vmatmul.mubr.f32.gmra.mrb[0].mxu0 %v3667
      %v3834 = vpop.f32.mrb[0].mxu0
      %v3835 = vadd.f32 0.0, %v3834
      %v3836 = vpop.f32.mrb[0].mxu0
      %3837 = vmatprep.mubr.f32.mxu0 0.0
      %3838 = vmatmul.mubr.f32.gmra.mrb[0].mxu0 %v3670
      %v3839 = vpop.f32.mrb[0].mxu0
      %v3840 = vadd.f32 0.0, %v3839
      %v3841 = vpop.f32.mrb[0].mxu0
      %3842 = vmatprep.mubr.f32.mxu0 0.0
      %3843 = vmatmul.mubr.f32.gmra.mrb[0].mxu0 %v3673
      %v3844 = vpop.f32.mrb[0].mxu0
      %v3845 = vadd.f32 0.0, %v3844
      %v3846 = vpop.f32.mrb[0].mxu0
      %3847 = vmatprep.mubr.f32.mxu0 0.0
      %3848 = vmatmul.mubr.f32.gmra.mrb[0].mxu0 %v3676
      %v3849 = vpop.f32.mrb[0].mxu0
      %v3850 = vadd.f32 0.0, %v3849
      %v3851 = vpop.f32.mrb[0].mxu0
      %3852 = vmatprep.mubr.f32.mxu0 0.0
      %3853 = vmatmul.mubr.f32.gmra.mrb[0].mxu0 %v3679
      %v3854 = vpop.f32.mrb[0].mxu0
      %v3855 = vadd.f32 0.0, %v3854
      %v3856 = vpop.f32.mrb[0].mxu0
      %3857 = vmatprep.mubr.f32.mxu0 0.0
      %3858 = vmatmul.mubr.f32.gmra.mrb[0].mxu0 %v3682
      %v3859 = vpop.f32.mrb[0].mxu0
      %v3860 = vadd.f32 0.0, %v3859
      %v3861 = vpop.f32.mrb[0].mxu0
      %3862 = vmatprep.mubr.f32.mxu0 0.0
      %3863 = vmatmul.mubr.f32.gmra.mrb[0].mxu0 %v3685
      %v3864 = vpop.f32.mrb[0].mxu0
      %v3865 = vadd.f32 0.0, %v3864
      %v3866 = vpop.f32.mrb[0].mxu0
      %3867 = vmatprep.mubr.f32.mxu0 0.0
      %3868 = vmatmul.mubr.f32.gmra.mrb[0].mxu0 %v3688
      %v3869 = vpop.f32.mrb[0].mxu0
      %v3870 = vadd.f32 0.0, %v3869
      %v3871 = vpop.f32.mrb[0].mxu0
      %3872 = vmatprep.mubr.f32.mxu0 0.0
      %3873 = vmatmul.mubr.f32.gmra.mrb[0].mxu0 %v3691
      %v3874 = vpop.f32.mrb[0].mxu0
      %v3875 = vadd.f32 0.0, %v3874
      %v3876 = vpop.f32.mrb[0].mxu0
      %3877 = vmatprep.mubr.f32.mxu0 0.0
      %3878 = vmatmul.mubr.f32.gmra.mrb[0].mxu0 %v3694
      %v3879 = vpop.f32.mrb[0].mxu0
      %v3880 = vadd.f32 0.0, %v3879
      %v3881 = vpop.f32.mrb[0].mxu0
      %3882 = vmatprep.mubr.f32.mxu0 0.0
      %3883 = vmatmul.mubr.f32.gmra.mrb[0].mxu0 %v3697
      %v3884 = vpop.f32.mrb[0].mxu0
      %v3885 = vadd.f32 0.0, %v3884
      %v3886 = vpop.f32.mrb[0].mxu0
      %3887 = vmatprep.mubr.f32.mxu0 0.0
      %3888 = vmatmul.mubr.f32.gmra.mrb[0].mxu0 %v3700
      %v3889 = vpop.f32.mrb[0].mxu0
      %v3890 = vadd.f32 0.0, %v3889
      %v3891 = vpop.f32.mrb[0].mxu0
      %3892 = vmatprep.mubr.f32.mxu0 0.0
      %3893 = vmatmul.mubr.f32.gmra.mrb[0].mxu0 %v3703
      %v3894 = vpop.f32.mrb[0].mxu0
      %v3895 = vadd.f32 0.0, %v3894
      %v3896 = vpop.f32.mrb[0].mxu0
      %3897 = vmatprep.mubr.f32.mxu0 0.0
      %3898 = vmatmul.mubr.f32.gmra.mrb[0].mxu0 %v3706
      %v3899 = vpop.f32.mrb[0].mxu0
      %v3900 = vadd.f32 0.0, %v3899
      %v3901 = vpop.f32.mrb[0].mxu0
      %3902 = vmatprep.mubr.f32.mxu0 0.0
      %3903 = vmatmul.mubr.f32.gmra.mrb[0].mxu0 %v3709
      %v3904 = vpop.f32.mrb[0].mxu0
      %v3905 = vadd.f32 0.0, %v3904
      %v3906 = vpop.f32.mrb[0].mxu0
      %3907 = vmatprep.mubr.f32.mxu0 0.0
      %3908 = vmatmul.mubr.f32.gmra.mrb[0].mxu0 %v3712
      %v3909 = vpop.f32.mrb[0].mxu0
      %v3910 = vadd.f32 0.0, %v3909
      %v3911 = vpop.f32.mrb[0].mxu0
      %3912 = vmatprep.mubr.f32.mxu0 0.0
      %3913 = vmatmul.mubr.f32.gmra.mrb[0].mxu0 %v3715
      %v3914 = vpop.f32.mrb[0].mxu0
      %v3915 = vadd.f32 0.0, %v3914
      %v3916 = vpop.f32.mrb[0].mxu0
      %3917 = vmatprep.mubr.f32.mxu0 0.0
      %3918 = vmatmul.mubr.f32.gmra.mrb[0].mxu0 %v3718
      %v3919 = vpop.f32.mrb[0].mxu0
      %v3920 = vadd.f32 0.0, %v3919
      %v3921 = vpop.f32.mrb[0].mxu0
      %3922 = vmatprep.mubr.f32.mxu0 0.0
      %3923 = vmatmul.mubr.f32.gmra.mrb[0].mxu0 %v3721
      %v3924 = vpop.f32.mrb[0].mxu0
      %v3925 = vadd.f32 0.0, %v3924
      %v3926 = vpop.f32.mrb[0].mxu0
      %3927 = vmatprep.mubr.f32.mxu0 0.0
      %3928 = vmatmul.mubr.f32.gmra.mrb[0].mxu0 %v3724
      %v3929 = vpop.f32.mrb[0].mxu0
      %v3930 = vadd.f32 0.0, %v3929
      %v3931 = vpop.f32.mrb[0].mxu0
      %3932 = vmatprep.mubr.f32.mxu0 0.0
      %3933 = vmatmul.mubr.f32.gmra.mrb[0].mxu0 %v3727
      %v3934 = vpop.f32.mrb[0].mxu0
      %v3935 = vadd.f32 0.0, %v3934
      %v3936 = vpop.f32.mrb[0].mxu0
      %3937 = vmatprep.mubr.f32.mxu0 0.0
      %3938 = vmatmul.mubr.f32.gmra.mrb[0].mxu0 %v3730
      %v3939 = vpop.f32.mrb[0].mxu0
      %v3940 = vadd.f32 0.0, %v3939
      %v3941 = vpop.f32.mrb[0].mxu0
      %3942 = vmatprep.mubr.f32.mxu0 0.0
      %3943 = vmatmul.mubr.f32.gmra.mrb[0].mxu0 %v3733
      %v3944 = vpop.f32.mrb[0].mxu0
      %v3945 = vadd.f32 0.0, %v3944
      %v3946 = vpop.f32.mrb[0].mxu0
      %3947 = vmatprep.mubr.f32.mxu0 0.0
      %3948 = vmatmul.mubr.f32.gmra.mrb[0].mxu0 %v3736
      %v3949 = vpop.f32.mrb[0].mxu0
      %v3950 = vadd.f32 0.0, %v3949
      %v3951 = vpop.f32.mrb[0].mxu0
      %3952 = vmatprep.mubr.f32.mxu0 0.0
      %3953 = vmatmul.mubr.f32.gmra.mrb[0].mxu0 %v3739
      %v3954 = vpop.f32.mrb[0].mxu0
      %v3955 = vadd.f32 0.0, %v3954
      %v3956 = vpop.f32.mrb[0].mxu0
      %3957 = vmatprep.mubr.f32.mxu0 0.0
      %3958 = vmatmul.mubr.f32.gmra.mrb[0].mxu0 %v3742
      %v3959 = vpop.f32.mrb[0].mxu0
      %v3960 = vadd.f32 0.0, %v3959
      %v3961 = vpop.f32.mrb[0].mxu0
      %3962 = vmatprep.mubr.f32.mxu0 0.0
      %3963 = vmatmul.mubr.f32.gmra.mrb[0].mxu0 %v3745
      %v3964 = vpop.f32.mrb[0].mxu0
      %v3965 = vadd.f32 0.0, %v3964
      %v3966 = vpop.f32.mrb[0].mxu0
      %3967 = vmatprep.mubr.f32.mxu0 0.0
      %3968 = vmatmul.mubr.f32.gmra.mrb[0].mxu0 %v3748
      %v3969 = vpop.f32.mrb[0].mxu0
      %v3970 = vadd.f32 0.0, %v3969
      %v3971 = vpop.f32.mrb[0].mxu0
      %3972 = vmatprep.mubr.f32.mxu0 0.0
      %3973 = vmatmul.mubr.f32.gmra.mrb[0].mxu0 %v3751
      %v3974 = vpop.f32.mrb[0].mxu0
      %v3975 = vadd.f32 0.0, %v3974
      %v3976 = vpop.f32.mrb[0].mxu0
      %3977 = vdwg.mxu0
      %v3978 = vadd.f32 %v3588, %v3820
      %v3979 = vadd.f32 %v3589, %v3825
      %v3980 = vadd.f32 %v3590, %v3830
      %v3981 = vadd.f32 %v3591, %v3835
      %v3982 = vadd.f32 %v3592, %v3840
      %v3983 = vadd.f32 %v3593, %v3845
      %v3984 = vadd.f32 %v3594, %v3850
      %v3985 = vadd.f32 %v3595, %v3855
      %v3986 = vadd.f32 %v3596, %v3860
      %v3987 = vadd.f32 %v3597, %v3865
      %v3988 = vadd.f32 %v3598, %v3870
      %v3989 = vadd.f32 %v3599, %v3875
      %v3990 = vadd.f32 %v3600, %v3880
      %v3991 = vadd.f32 %v3601, %v3885
      %v3992 = vadd.f32 %v3602, %v3890
      %v3993 = vadd.f32 %v3603, %v3895
      %v3994 = vadd.f32 %v3604, %v3900
      %v3995 = vadd.f32 %v3605, %v3905
      %v3996 = vadd.f32 %v3606, %v3910
      %v3997 = vadd.f32 %v3607, %v3915
      %v3998 = vadd.f32 %v3608, %v3920
      %v3999 = vadd.f32 %v3609, %v3925
      %v4000 = vadd.f32 %v3610, %v3930
      %v4001 = vadd.f32 %v3611, %v3935
      %v4002 = vadd.f32 %v3612, %v3940
      %v4003 = vadd.f32 %v3613, %v3945
      %v4004 = vadd.f32 %v3614, %v3950
      %v4005 = vadd.f32 %v3615, %v3955
      %v4006 = vadd.f32 %v3616, %v3960
      %v4007 = vadd.f32 %v3617, %v3965
      %v4008 = vadd.f32 %v3618, %v3970
      %v4009 = vadd.f32 %v3619, %v3975
      %v4010 = vld [vmem:[%s3620 + $0x1] sm:$0xff]
      %v4011 = vld [vmem:[%s3620 + $0x9] sm:$0xff]
      %v4012 = vld [vmem:[%s3620 + $0x11] sm:$0xff]
      %v4013 = vld [vmem:[%s3620 + $0x19] sm:$0xff]
      %v4014 = vld [vmem:[%s3620 + $0x29] sm:$0xff]
      %v4015 = vld [vmem:[%s3620 + $0x31] sm:$0xff]
      %v4016 = vld [vmem:[%s3620 + $0x39] sm:$0xff]
      %v4017 = vld [vmem:[%s3620 + $0x41] sm:$0xff]
      %v4018 = vld [vmem:[%s3620 + $0x51] sm:$0xff]
      %v4019 = vld [vmem:[%s3620 + $0x59] sm:$0xff]
      %v4020 = vld [vmem:[%s3620 + $0x61] sm:$0xff]
      %v4021 = vld [vmem:[%s3620 + $0x69] sm:$0xff]
      %v4022 = vld [vmem:[%s3620 + $0x79] sm:$0xff]
      %v4023 = vld [vmem:[%s3620 + $0x81] sm:$0xff]
      %v4024 = vld [vmem:[%s3620 + $0x89] sm:$0xff]
      %v4025 = vld [vmem:[%s3620 + $0x91] sm:$0xff]
      %v4026 = vld [vmem:[%s3620 + $0xa1] sm:$0xff]
      %v4027 = vld [vmem:[%s3620 + $0xa9] sm:$0xff]
      %v4028 = vld [vmem:[%s3620 + $0xb1] sm:$0xff]
      %v4029 = vld [vmem:[%s3620 + $0xb9] sm:$0xff]
      %v4030 = vld [vmem:[%s3620 + $0xc9] sm:$0xff]
      %v4031 = vld [vmem:[%s3620 + $0xd1] sm:$0xff]
      %v4032 = vld [vmem:[%s3620 + $0xd9] sm:$0xff]
      %v4033 = vld [vmem:[%s3620 + $0xe1] sm:$0xff]
      %v4034 = vld [vmem:[%s3620 + $0xf1] sm:$0xff]
      %v4035 = vld [vmem:[%s3620 + $0xf9] sm:$0xff]
      %v4036 = vld [vmem:[%s3620 + $0x101] sm:$0xff]
      %v4037 = vld [vmem:[%s3620 + $0x109] sm:$0xff]
      %v4038 = vld [vmem:[%s3620 + $0x119] sm:$0xff]
      %v4039 = vld [vmem:[%s3620 + $0x121] sm:$0xff]
      %v4040 = vld [vmem:[%s3620 + $0x129] sm:$0xff]
      %v4041 = vld [vmem:[%s3620 + $0x131] sm:$0xff]
      %v4042 = vld [vmem:[%s3 + $0xe0] sm:$0xff]
      %v4043 = vld [vmem:[%s3 + $0xe8] sm:$0xff]
      %v4044 = vld [vmem:[%s3 + $0xf0] sm:$0xff]
      %v4045 = vld [vmem:[%s3 + $0xf8] sm:$0xff]
      %v4047 = vsel %vm322, %v4010, 0
      %v4050 = vsel %vm322, %v4011, 0
      %v4053 = vsel %vm322, %v4012, 0
      %v4056 = vsel %vm322, %v4013, 0
      %v4059 = vsel %vm322, %v4014, 0
      %v4062 = vsel %vm322, %v4015, 0
      %v4065 = vsel %vm322, %v4016, 0
      %v4068 = vsel %vm322, %v4017, 0
      %v4071 = vsel %vm322, %v4018, 0
      %v4074 = vsel %vm322, %v4019, 0
      %v4077 = vsel %vm322, %v4020, 0
      %v4080 = vsel %vm322, %v4021, 0
      %v4083 = vsel %vm322, %v4022, 0
      %v4086 = vsel %vm322, %v4023, 0
      %v4089 = vsel %vm322, %v4024, 0
      %v4092 = vsel %vm322, %v4025, 0
      %v4095 = vsel %vm322, %v4026, 0
      %v4098 = vsel %vm322, %v4027, 0
      %v4101 = vsel %vm322, %v4028, 0
      %v4104 = vsel %vm322, %v4029, 0
      %v4107 = vsel %vm322, %v4030, 0
      %v4110 = vsel %vm322, %v4031, 0
      %v4113 = vsel %vm322, %v4032, 0
      %v4116 = vsel %vm322, %v4033, 0
      %v4119 = vsel %vm322, %v4034, 0
      %v4122 = vsel %vm322, %v4035, 0
      %v4125 = vsel %vm322, %v4036, 0
      %v4128 = vsel %vm322, %v4037, 0
      %v4131 = vsel %vm322, %v4038, 0
      %v4134 = vsel %vm322, %v4039, 0
      %v4137 = vsel %vm322, %v4040, 0
      %v4140 = vsel %vm322, %v4041, 0
      %4142 = vmatprep.subr.mxu0 0.0
      %4143 = vmatpush1.msra.mxu0 %v4042
      %4144 = vmatprep.subr.mxu0 0.0
      %4145 = vmatpush1.msra.mxu0 %v4043
      %4146 = vmatprep.subr.mxu0 0.0
      %4147 = vmatpush1.msra.mxu0 %v4044
      %4148 = vmatprep.subr.mxu0 0.0
      %4149 = vmatpush1.msra.mxu0 %v4045
      %4150 = vmatprep.subr.mxu0 0.0
      %4151 = vmatpush1.msra.mxu0 0.0
      %4152 = vmatprep.subr.mxu0 0.0
      %4153 = vmatpush1.msra.mxu0 0.0
      %4154 = vmatprep.subr.mxu0 0.0
      %4155 = vmatpush1.msra.mxu0 0.0
      %4156 = vmatprep.subr.mxu0 0.0
      %4157 = vmatpush1.msra.mxu0 0.0
      %4158 = vmatprep.subr.mxu0 0.0
      %4159 = vmatpush1.msra.mxu0 0.0
      %4160 = vmatprep.subr.mxu0 0.0
      %4161 = vmatpush1.msra.mxu0 0.0
      %4162 = vmatprep.subr.mxu0 0.0
      %4163 = vmatpush1.msra.mxu0 0.0
      %4164 = vmatprep.subr.mxu0 0.0
      %4165 = vmatpush1.msra.mxu0 0.0
      %4166 = vmatprep.subr.mxu0 0.0
      %4167 = vmatpush1.msra.mxu0 0.0
      %4168 = vmatprep.subr.mxu0 0.0
      %4169 = vmatpush1.msra.mxu0 0.0
      %4170 = vmatprep.subr.mxu0 0.0
      %4171 = vmatpush1.msra.mxu0 0.0
      %4172 = vmatprep.subr.mxu0 0.0
      %4173 = vmatpush1.msra.mxu0 0.0
      %4174 = vmatprep.subr.mxu0 0.0
      %4175 = vmatpush1.msra.mxu0 0.0
      %4176 = vmatprep.subr.mxu0 0.0
      %4177 = vmatpush1.msra.mxu0 0.0
      %4178 = vmatprep.subr.mxu0 0.0
      %4179 = vmatpush1.msra.mxu0 0.0
      %4180 = vmatprep.subr.mxu0 0.0
      %4181 = vmatpush1.msra.mxu0 0.0
      %4182 = vmatprep.subr.mxu0 0.0
      %4183 = vmatpush1.msra.mxu0 0.0
      %4184 = vmatprep.subr.mxu0 0.0
      %4185 = vmatpush1.msra.mxu0 0.0
      %4186 = vmatprep.subr.mxu0 0.0
      %4187 = vmatpush1.msra.mxu0 0.0
      %4188 = vmatprep.subr.mxu0 0.0
      %4189 = vmatpush1.msra.mxu0 0.0
      %4190 = vmatprep.subr.mxu0 0.0
      %4191 = vmatpush1.msra.mxu0 0.0
      %4192 = vmatprep.subr.mxu0 0.0
      %4193 = vmatpush1.msra.mxu0 0.0
      %4194 = vmatprep.subr.mxu0 0.0
      %4195 = vmatpush1.msra.mxu0 0.0
      %4196 = vmatprep.subr.mxu0 0.0
      %4197 = vmatpush1.msra.mxu0 0.0
      %4198 = vmatprep.subr.mxu0 0.0
      %4199 = vmatpush1.msra.mxu0 0.0
      %4200 = vmatprep.subr.mxu0 0.0
      %4201 = vmatpush1.msra.mxu0 0.0
      %4202 = vmatprep.subr.mxu0 0.0
      %4203 = vmatpush1.msra.mxu0 0.0
      %4204 = vmatprep.subr.mxu0 0.0
      %4205 = vmatpush1.msra.mxu0 0.0
      %4206 = vmatprep.mubr.f32.mxu0 0.0
      %4207 = vmatmul.mubr.f32.gmra.mrb[0].mxu0 %v4047
      %v4208 = vpop.f32.mrb[0].mxu0
      %v4209 = vadd.f32 0.0, %v4208
      %v4210 = vpop.f32.mrb[0].mxu0
      %4211 = vmatprep.mubr.f32.mxu0 0.0
      %4212 = vmatmul.mubr.f32.gmra.mrb[0].mxu0 %v4050
      %v4213 = vpop.f32.mrb[0].mxu0
      %v4214 = vadd.f32 0.0, %v4213
      %v4215 = vpop.f32.mrb[0].mxu0
      %4216 = vmatprep.mubr.f32.mxu0 0.0
      %4217 = vmatmul.mubr.f32.gmra.mrb[0].mxu0 %v4053
      %v4218 = vpop.f32.mrb[0].mxu0
      %v4219 = vadd.f32 0.0, %v4218
      %v4220 = vpop.f32.mrb[0].mxu0
      %4221 = vmatprep.mubr.f32.mxu0 0.0
      %4222 = vmatmul.mubr.f32.gmra.mrb[0].mxu0 %v4056
      %v4223 = vpop.f32.mrb[0].mxu0
      %v4224 = vadd.f32 0.0, %v4223
      %v4225 = vpop.f32.mrb[0].mxu0
      %4226 = vmatprep.mubr.f32.mxu0 0.0
      %4227 = vmatmul.mubr.f32.gmra.mrb[0].mxu0 %v4059
      %v4228 = vpop.f32.mrb[0].mxu0
      %v4229 = vadd.f32 0.0, %v4228
      %v4230 = vpop.f32.mrb[0].mxu0
      %4231 = vmatprep.mubr.f32.mxu0 0.0
      %4232 = vmatmul.mubr.f32.gmra.mrb[0].mxu0 %v4062
      %v4233 = vpop.f32.mrb[0].mxu0
      %v4234 = vadd.f32 0.0, %v4233
      %v4235 = vpop.f32.mrb[0].mxu0
      %4236 = vmatprep.mubr.f32.mxu0 0.0
      %4237 = vmatmul.mubr.f32.gmra.mrb[0].mxu0 %v4065
      %v4238 = vpop.f32.mrb[0].mxu0
      %v4239 = vadd.f32 0.0, %v4238
      %v4240 = vpop.f32.mrb[0].mxu0
      %4241 = vmatprep.mubr.f32.mxu0 0.0
      %4242 = vmatmul.mubr.f32.gmra.mrb[0].mxu0 %v4068
      %v4243 = vpop.f32.mrb[0].mxu0
      %v4244 = vadd.f32 0.0, %v4243
      %v4245 = vpop.f32.mrb[0].mxu0
      %4246 = vmatprep.mubr.f32.mxu0 0.0
      %4247 = vmatmul.mubr.f32.gmra.mrb[0].mxu0 %v4071
      %v4248 = vpop.f32.mrb[0].mxu0
      %v4249 = vadd.f32 0.0, %v4248
      %v4250 = vpop.f32.mrb[0].mxu0
      %4251 = vmatprep.mubr.f32.mxu0 0.0
      %4252 = vmatmul.mubr.f32.gmra.mrb[0].mxu0 %v4074
      %v4253 = vpop.f32.mrb[0].mxu0
      %v4254 = vadd.f32 0.0, %v4253
      %v4255 = vpop.f32.mrb[0].mxu0
      %4256 = vmatprep.mubr.f32.mxu0 0.0
      %4257 = vmatmul.mubr.f32.gmra.mrb[0].mxu0 %v4077
      %v4258 = vpop.f32.mrb[0].mxu0
      %v4259 = vadd.f32 0.0, %v4258
      %v4260 = vpop.f32.mrb[0].mxu0
      %4261 = vmatprep.mubr.f32.mxu0 0.0
      %4262 = vmatmul.mubr.f32.gmra.mrb[0].mxu0 %v4080
      %v4263 = vpop.f32.mrb[0].mxu0
      %v4264 = vadd.f32 0.0, %v4263
      %v4265 = vpop.f32.mrb[0].mxu0
      %4266 = vmatprep.mubr.f32.mxu0 0.0
      %4267 = vmatmul.mubr.f32.gmra.mrb[0].mxu0 %v4083
      %v4268 = vpop.f32.mrb[0].mxu0
      %v4269 = vadd.f32 0.0, %v4268
      %v4270 = vpop.f32.mrb[0].mxu0
      %4271 = vmatprep.mubr.f32.mxu0 0.0
      %4272 = vmatmul.mubr.f32.gmra.mrb[0].mxu0 %v4086
      %v4273 = vpop.f32.mrb[0].mxu0
      %v4274 = vadd.f32 0.0, %v4273
      %v4275 = vpop.f32.mrb[0].mxu0
      %4276 = vmatprep.mubr.f32.mxu0 0.0
      %4277 = vmatmul.mubr.f32.gmra.mrb[0].mxu0 %v4089
      %v4278 = vpop.f32.mrb[0].mxu0
      %v4279 = vadd.f32 0.0, %v4278
      %v4280 = vpop.f32.mrb[0].mxu0
      %4281 = vmatprep.mubr.f32.mxu0 0.0
      %4282 = vmatmul.mubr.f32.gmra.mrb[0].mxu0 %v4092
      %v4283 = vpop.f32.mrb[0].mxu0
      %v4284 = vadd.f32 0.0, %v4283
      %v4285 = vpop.f32.mrb[0].mxu0
      %4286 = vmatprep.mubr.f32.mxu0 0.0
      %4287 = vmatmul.mubr.f32.gmra.mrb[0].mxu0 %v4095
      %v4288 = vpop.f32.mrb[0].mxu0
      %v4289 = vadd.f32 0.0, %v4288
      %v4290 = vpop.f32.mrb[0].mxu0
      %4291 = vmatprep.mubr.f32.mxu0 0.0
      %4292 = vmatmul.mubr.f32.gmra.mrb[0].mxu0 %v4098
      %v4293 = vpop.f32.mrb[0].mxu0
      %v4294 = vadd.f32 0.0, %v4293
      %v4295 = vpop.f32.mrb[0].mxu0
      %4296 = vmatprep.mubr.f32.mxu0 0.0
      %4297 = vmatmul.mubr.f32.gmra.mrb[0].mxu0 %v4101
      %v4298 = vpop.f32.mrb[0].mxu0
      %v4299 = vadd.f32 0.0, %v4298
      %v4300 = vpop.f32.mrb[0].mxu0
      %4301 = vmatprep.mubr.f32.mxu0 0.0
      %4302 = vmatmul.mubr.f32.gmra.mrb[0].mxu0 %v4104
      %v4303 = vpop.f32.mrb[0].mxu0
      %v4304 = vadd.f32 0.0, %v4303
      %v4305 = vpop.f32.mrb[0].mxu0
      %4306 = vmatprep.mubr.f32.mxu0 0.0
      %4307 = vmatmul.mubr.f32.gmra.mrb[0].mxu0 %v4107
      %v4308 = vpop.f32.mrb[0].mxu0
      %v4309 = vadd.f32 0.0, %v4308
      %v4310 = vpop.f32.mrb[0].mxu0
      %4311 = vmatprep.mubr.f32.mxu0 0.0
      %4312 = vmatmul.mubr.f32.gmra.mrb[0].mxu0 %v4110
      %v4313 = vpop.f32.mrb[0].mxu0
      %v4314 = vadd.f32 0.0, %v4313
      %v4315 = vpop.f32.mrb[0].mxu0
      %4316 = vmatprep.mubr.f32.mxu0 0.0
      %4317 = vmatmul.mubr.f32.gmra.mrb[0].mxu0 %v4113
      %v4318 = vpop.f32.mrb[0].mxu0
      %v4319 = vadd.f32 0.0, %v4318
      %v4320 = vpop.f32.mrb[0].mxu0
      %4321 = vmatprep.mubr.f32.mxu0 0.0
      %4322 = vmatmul.mubr.f32.gmra.mrb[0].mxu0 %v4116
      %v4323 = vpop.f32.mrb[0].mxu0
      %v4324 = vadd.f32 0.0, %v4323
      %v4325 = vpop.f32.mrb[0].mxu0
      %4326 = vmatprep.mubr.f32.mxu0 0.0
      %4327 = vmatmul.mubr.f32.gmra.mrb[0].mxu0 %v4119
      %v4328 = vpop.f32.mrb[0].mxu0
      %v4329 = vadd.f32 0.0, %v4328
      %v4330 = vpop.f32.mrb[0].mxu0
      %4331 = vmatprep.mubr.f32.mxu0 0.0
      %4332 = vmatmul.mubr.f32.gmra.mrb[0].mxu0 %v4122
      %v4333 = vpop.f32.mrb[0].mxu0
      %v4334 = vadd.f32 0.0, %v4333
      %v4335 = vpop.f32.mrb[0].mxu0
      %4336 = vmatprep.mubr.f32.mxu0 0.0
      %4337 = vmatmul.mubr.f32.gmra.mrb[0].mxu0 %v4125
      %v4338 = vpop.f32.mrb[0].mxu0
      %v4339 = vadd.f32 0.0, %v4338
      %v4340 = vpop.f32.mrb[0].mxu0
      %4341 = vmatprep.mubr.f32.mxu0 0.0
      %4342 = vmatmul.mubr.f32.gmra.mrb[0].mxu0 %v4128
      %v4343 = vpop.f32.mrb[0].mxu0
      %v4344 = vadd.f32 0.0, %v4343
      %v4345 = vpop.f32.mrb[0].mxu0
      %4346 = vmatprep.mubr.f32.mxu0 0.0
      %4347 = vmatmul.mubr.f32.gmra.mrb[0].mxu0 %v4131
      %v4348 = vpop.f32.mrb[0].mxu0
      %v4349 = vadd.f32 0.0, %v4348
      %v4350 = vpop.f32.mrb[0].mxu0
      %4351 = vmatprep.mubr.f32.mxu0 0.0
      %4352 = vmatmul.mubr.f32.gmra.mrb[0].mxu0 %v4134
      %v4353 = vpop.f32.mrb[0].mxu0
      %v4354 = vadd.f32 0.0, %v4353
      %v4355 = vpop.f32.mrb[0].mxu0
      %4356 = vmatprep.mubr.f32.mxu0 0.0
      %4357 = vmatmul.mubr.f32.gmra.mrb[0].mxu0 %v4137
      %v4358 = vpop.f32.mrb[0].mxu0
      %v4359 = vadd.f32 0.0, %v4358
      %v4360 = vpop.f32.mrb[0].mxu0
      %4361 = vmatprep.mubr.f32.mxu0 0.0
      %4362 = vmatmul.mubr.f32.gmra.mrb[0].mxu0 %v4140
      %v4363 = vpop.f32.mrb[0].mxu0
      %v4364 = vadd.f32 0.0, %v4363
      %v4365 = vpop.f32.mrb[0].mxu0
      %4366 = vdwg.mxu0
      %v4367 = vadd.f32 %v3978, %v4209
      %v4368 = vadd.f32 %v3979, %v4214
      %v4369 = vadd.f32 %v3980, %v4219
      %v4370 = vadd.f32 %v3981, %v4224
      %v4371 = vadd.f32 %v3982, %v4229
      %v4372 = vadd.f32 %v3983, %v4234
      %v4373 = vadd.f32 %v3984, %v4239
      %v4374 = vadd.f32 %v3985, %v4244
      %v4375 = vadd.f32 %v3986, %v4249
      %v4376 = vadd.f32 %v3987, %v4254
      %v4377 = vadd.f32 %v3988, %v4259
      %v4378 = vadd.f32 %v3989, %v4264
      %v4379 = vadd.f32 %v3990, %v4269
      %v4380 = vadd.f32 %v3991, %v4274
      %v4381 = vadd.f32 %v3992, %v4279
      %v4382 = vadd.f32 %v3993, %v4284
      %v4383 = vadd.f32 %v3994, %v4289
      %v4384 = vadd.f32 %v3995, %v4294
      %v4385 = vadd.f32 %v3996, %v4299
      %v4386 = vadd.f32 %v3997, %v4304
      %v4387 = vadd.f32 %v3998, %v4309
      %v4388 = vadd.f32 %v3999, %v4314
      %v4389 = vadd.f32 %v4000, %v4319
      %v4390 = vadd.f32 %v4001, %v4324
      %v4391 = vadd.f32 %v4002, %v4329
      %v4392 = vadd.f32 %v4003, %v4334
      %v4393 = vadd.f32 %v4004, %v4339
      %v4394 = vadd.f32 %v4005, %v4344
      %v4395 = vadd.f32 %v4006, %v4349
      %v4396 = vadd.f32 %v4007, %v4354
      %v4397 = vadd.f32 %v4008, %v4359
      %v4398 = vadd.f32 %v4009, %v4364
      %v4399 = vld [vmem:[%s3620 + $0x2] sm:$0xff]
      %v4400 = vld [vmem:[%s3620 + $0xa] sm:$0xff]
      %v4401 = vld [vmem:[%s3620 + $0x12] sm:$0xff]
      %v4402 = vld [vmem:[%s3620 + $0x1a] sm:$0xff]
      %v4403 = vld [vmem:[%s3620 + $0x2a] sm:$0xff]
      %v4404 = vld [vmem:[%s3620 + $0x32] sm:$0xff]
      %v4405 = vld [vmem:[%s3620 + $0x3a] sm:$0xff]
      %v4406 = vld [vmem:[%s3620 + $0x42] sm:$0xff]
      %v4407 = vld [vmem:[%s3620 + $0x52] sm:$0xff]
      %v4408 = vld [vmem:[%s3620 + $0x5a] sm:$0xff]
      %v4409 = vld [vmem:[%s3620 + $0x62] sm:$0xff]
      %v4410 = vld [vmem:[%s3620 + $0x6a] sm:$0xff]
      %v4411 = vld [vmem:[%s3620 + $0x7a] sm:$0xff]
      %v4412 = vld [vmem:[%s3620 + $0x82] sm:$0xff]
      %v4413 = vld [vmem:[%s3620 + $0x8a] sm:$0xff]
      %v4414 = vld [vmem:[%s3620 + $0x92] sm:$0xff]
      %v4415 = vld [vmem:[%s3620 + $0xa2] sm:$0xff]
      %v4416 = vld [vmem:[%s3620 + $0xaa] sm:$0xff]
      %v4417 = vld [vmem:[%s3620 + $0xb2] sm:$0xff]
      %v4418 = vld [vmem:[%s3620 + $0xba] sm:$0xff]
      %v4419 = vld [vmem:[%s3620 + $0xca] sm:$0xff]
      %v4420 = vld [vmem:[%s3620 + $0xd2] sm:$0xff]
      %v4421 = vld [vmem:[%s3620 + $0xda] sm:$0xff]
      %v4422 = vld [vmem:[%s3620 + $0xe2] sm:$0xff]
      %v4423 = vld [vmem:[%s3620 + $0xf2] sm:$0xff]
      %v4424 = vld [vmem:[%s3620 + $0xfa] sm:$0xff]
      %v4425 = vld [vmem:[%s3620 + $0x102] sm:$0xff]
      %v4426 = vld [vmem:[%s3620 + $0x10a] sm:$0xff]
      %v4427 = vld [vmem:[%s3620 + $0x11a] sm:$0xff]
      %v4428 = vld [vmem:[%s3620 + $0x122] sm:$0xff]
      %v4429 = vld [vmem:[%s3620 + $0x12a] sm:$0xff]
      %v4430 = vld [vmem:[%s3620 + $0x132] sm:$0xff]
      %v4431 = vld [vmem:[%s3 + $0x100] sm:$0xff]
      %v4432 = vld [vmem:[%s3 + $0x108] sm:$0xff]
      %v4433 = vld [vmem:[%s3 + $0x110] sm:$0xff]
      %v4434 = vld [vmem:[%s3 + $0x118] sm:$0xff]
      %v4436 = vsel %vm322, %v4399, 0
      %v4439 = vsel %vm322, %v4400, 0
      %v4442 = vsel %vm322, %v4401, 0
      %v4445 = vsel %vm322, %v4402, 0
      %v4448 = vsel %vm322, %v4403, 0
      %v4451 = vsel %vm322, %v4404, 0
      %v4454 = vsel %vm322, %v4405, 0
      %v4457 = vsel %vm322, %v4406, 0
      %v4460 = vsel %vm322, %v4407, 0
      %v4463 = vsel %vm322, %v4408, 0
      %v4466 = vsel %vm322, %v4409, 0
      %v4469 = vsel %vm322, %v4410, 0
      %v4472 = vsel %vm322, %v4411, 0
      %v4475 = vsel %vm322, %v4412, 0
      %v4478 = vsel %vm322, %v4413, 0
      %v4481 = vsel %vm322, %v4414, 0
      %v4484 = vsel %vm322, %v4415, 0
      %v4487 = vsel %vm322, %v4416, 0
      %v4490 = vsel %vm322, %v4417, 0
      %v4493 = vsel %vm322, %v4418, 0
      %v4496 = vsel %vm322, %v4419, 0
      %v4499 = vsel %vm322, %v4420, 0
      %v4502 = vsel %vm322, %v4421, 0
      %v4505 = vsel %vm322, %v4422, 0
      %v4508 = vsel %vm322, %v4423, 0
      %v4511 = vsel %vm322, %v4424, 0
      %v4514 = vsel %vm322, %v4425, 0
      %v4517 = vsel %vm322, %v4426, 0
      %v4520 = vsel %vm322, %v4427, 0
      %v4523 = vsel %vm322, %v4428, 0
      %v4526 = vsel %vm322, %v4429, 0
      %v4529 = vsel %vm322, %v4430, 0
      %4531 = vmatprep.subr.mxu0 0.0
      %4532 = vmatpush1.msra.mxu0 %v4431
      %4533 = vmatprep.subr.mxu0 0.0
      %4534 = vmatpush1.msra.mxu0 %v4432
      %4535 = vmatprep.subr.mxu0 0.0
      %4536 = vmatpush1.msra.mxu0 %v4433
      %4537 = vmatprep.subr.mxu0 0.0
      %4538 = vmatpush1.msra.mxu0 %v4434
      %4539 = vmatprep.subr.mxu0 0.0
      %4540 = vmatpush1.msra.mxu0 0.0
      %4541 = vmatprep.subr.mxu0 0.0
      %4542 = vmatpush1.msra.mxu0 0.0
      %4543 = vmatprep.subr.mxu0 0.0
      %4544 = vmatpush1.msra.mxu0 0.0
      %4545 = vmatprep.subr.mxu0 0.0
      %4546 = vmatpush1.msra.mxu0 0.0
      %4547 = vmatprep.subr.mxu0 0.0
      %4548 = vmatpush1.msra.mxu0 0.0
      %4549 = vmatprep.subr.mxu0 0.0
      %4550 = vmatpush1.msra.mxu0 0.0
      %4551 = vmatprep.subr.mxu0 0.0
      %4552 = vmatpush1.msra.mxu0 0.0
      %4553 = vmatprep.subr.mxu0 0.0
      %4554 = vmatpush1.msra.mxu0 0.0
      %4555 = vmatprep.subr.mxu0 0.0
      %4556 = vmatpush1.msra.mxu0 0.0
      %4557 = vmatprep.subr.mxu0 0.0
      %4558 = vmatpush1.msra.mxu0 0.0
      %4559 = vmatprep.subr.mxu0 0.0
      %4560 = vmatpush1.msra.mxu0 0.0
      %4561 = vmatprep.subr.mxu0 0.0
      %4562 = vmatpush1.msra.mxu0 0.0
      %4563 = vmatprep.subr.mxu0 0.0
      %4564 = vmatpush1.msra.mxu0 0.0
      %4565 = vmatprep.subr.mxu0 0.0
      %4566 = vmatpush1.msra.mxu0 0.0
      %4567 = vmatprep.subr.mxu0 0.0
      %4568 = vmatpush1.msra.mxu0 0.0
      %4569 = vmatprep.subr.mxu0 0.0
      %4570 = vmatpush1.msra.mxu0 0.0
      %4571 = vmatprep.subr.mxu0 0.0
      %4572 = vmatpush1.msra.mxu0 0.0
      %4573 = vmatprep.subr.mxu0 0.0
      %4574 = vmatpush1.msra.mxu0 0.0
      %4575 = vmatprep.subr.mxu0 0.0
      %4576 = vmatpush1.msra.mxu0 0.0
      %4577 = vmatprep.subr.mxu0 0.0
      %4578 = vmatpush1.msra.mxu0 0.0
      %4579 = vmatprep.subr.mxu0 0.0
      %4580 = vmatpush1.msra.mxu0 0.0
      %4581 = vmatprep.subr.mxu0 0.0
      %4582 = vmatpush1.msra.mxu0 0.0
      %4583 = vmatprep.subr.mxu0 0.0
      %4584 = vmatpush1.msra.mxu0 0.0
      %4585 = vmatprep.subr.mxu0 0.0
      %4586 = vmatpush1.msra.mxu0 0.0
      %4587 = vmatprep.subr.mxu0 0.0
      %4588 = vmatpush1.msra.mxu0 0.0
      %4589 = vmatprep.subr.mxu0 0.0
      %4590 = vmatpush1.msra.mxu0 0.0
      %4591 = vmatprep.subr.mxu0 0.0
      %4592 = vmatpush1.msra.mxu0 0.0
      %4593 = vmatprep.subr.mxu0 0.0
      %4594 = vmatpush1.msra.mxu0 0.0
      %4595 = vmatprep.mubr.f32.mxu0 0.0
      %4596 = vmatmul.mubr.f32.gmra.mrb[0].mxu0 %v4436
      %v4597 = vpop.f32.mrb[0].mxu0
      %v4598 = vadd.f32 0.0, %v4597
      %v4599 = vpop.f32.mrb[0].mxu0
      %4600 = vmatprep.mubr.f32.mxu0 0.0
      %4601 = vmatmul.mubr.f32.gmra.mrb[0].mxu0 %v4439
      %v4602 = vpop.f32.mrb[0].mxu0
      %v4603 = vadd.f32 0.0, %v4602
      %v4604 = vpop.f32.mrb[0].mxu0
      %4605 = vmatprep.mubr.f32.mxu0 0.0
      %4606 = vmatmul.mubr.f32.gmra.mrb[0].mxu0 %v4442
      %v4607 = vpop.f32.mrb[0].mxu0
      %v4608 = vadd.f32 0.0, %v4607
      %v4609 = vpop.f32.mrb[0].mxu0
      %4610 = vmatprep.mubr.f32.mxu0 0.0
      %4611 = vmatmul.mubr.f32.gmra.mrb[0].mxu0 %v4445
      %v4612 = vpop.f32.mrb[0].mxu0
      %v4613 = vadd.f32 0.0, %v4612
      %v4614 = vpop.f32.mrb[0].mxu0
      %4615 = vmatprep.mubr.f32.mxu0 0.0
      %4616 = vmatmul.mubr.f32.gmra.mrb[0].mxu0 %v4448
      %v4617 = vpop.f32.mrb[0].mxu0
      %v4618 = vadd.f32 0.0, %v4617
      %v4619 = vpop.f32.mrb[0].mxu0
      %4620 = vmatprep.mubr.f32.mxu0 0.0
      %4621 = vmatmul.mubr.f32.gmra.mrb[0].mxu0 %v4451
      %v4622 = vpop.f32.mrb[0].mxu0
      %v4623 = vadd.f32 0.0, %v4622
      %v4624 = vpop.f32.mrb[0].mxu0
      %4625 = vmatprep.mubr.f32.mxu0 0.0
      %4626 = vmatmul.mubr.f32.gmra.mrb[0].mxu0 %v4454
      %v4627 = vpop.f32.mrb[0].mxu0
      %v4628 = vadd.f32 0.0, %v4627
      %v4629 = vpop.f32.mrb[0].mxu0
      %4630 = vmatprep.mubr.f32.mxu0 0.0
      %4631 = vmatmul.mubr.f32.gmra.mrb[0].mxu0 %v4457
      %v4632 = vpop.f32.mrb[0].mxu0
      %v4633 = vadd.f32 0.0, %v4632
      %v4634 = vpop.f32.mrb[0].mxu0
      %4635 = vmatprep.mubr.f32.mxu0 0.0
      %4636 = vmatmul.mubr.f32.gmra.mrb[0].mxu0 %v4460
      %v4637 = vpop.f32.mrb[0].mxu0
      %v4638 = vadd.f32 0.0, %v4637
      %v4639 = vpop.f32.mrb[0].mxu0
      %4640 = vmatprep.mubr.f32.mxu0 0.0
      %4641 = vmatmul.mubr.f32.gmra.mrb[0].mxu0 %v4463
      %v4642 = vpop.f32.mrb[0].mxu0
      %v4643 = vadd.f32 0.0, %v4642
      %v4644 = vpop.f32.mrb[0].mxu0
      %4645 = vmatprep.mubr.f32.mxu0 0.0
      %4646 = vmatmul.mubr.f32.gmra.mrb[0].mxu0 %v4466
      %v4647 = vpop.f32.mrb[0].mxu0
      %v4648 = vadd.f32 0.0, %v4647
      %v4649 = vpop.f32.mrb[0].mxu0
      %4650 = vmatprep.mubr.f32.mxu0 0.0
      %4651 = vmatmul.mubr.f32.gmra.mrb[0].mxu0 %v4469
      %v4652 = vpop.f32.mrb[0].mxu0
      %v4653 = vadd.f32 0.0, %v4652
      %v4654 = vpop.f32.mrb[0].mxu0
      %4655 = vmatprep.mubr.f32.mxu0 0.0
      %4656 = vmatmul.mubr.f32.gmra.mrb[0].mxu0 %v4472
      %v4657 = vpop.f32.mrb[0].mxu0
      %v4658 = vadd.f32 0.0, %v4657
      %v4659 = vpop.f32.mrb[0].mxu0
      %4660 = vmatprep.mubr.f32.mxu0 0.0
      %4661 = vmatmul.mubr.f32.gmra.mrb[0].mxu0 %v4475
      %v4662 = vpop.f32.mrb[0].mxu0
      %v4663 = vadd.f32 0.0, %v4662
      %v4664 = vpop.f32.mrb[0].mxu0
      %4665 = vmatprep.mubr.f32.mxu0 0.0
      %4666 = vmatmul.mubr.f32.gmra.mrb[0].mxu0 %v4478
      %v4667 = vpop.f32.mrb[0].mxu0
      %v4668 = vadd.f32 0.0, %v4667
      %v4669 = vpop.f32.mrb[0].mxu0
      %4670 = vmatprep.mubr.f32.mxu0 0.0
      %4671 = vmatmul.mubr.f32.gmra.mrb[0].mxu0 %v4481
      %v4672 = vpop.f32.mrb[0].mxu0
      %v4673 = vadd.f32 0.0, %v4672
      %v4674 = vpop.f32.mrb[0].mxu0
      %4675 = vmatprep.mubr.f32.mxu0 0.0
      %4676 = vmatmul.mubr.f32.gmra.mrb[0].mxu0 %v4484
      %v4677 = vpop.f32.mrb[0].mxu0
      %v4678 = vadd.f32 0.0, %v4677
      %v4679 = vpop.f32.mrb[0].mxu0
      %4680 = vmatprep.mubr.f32.mxu0 0.0
      %4681 = vmatmul.mubr.f32.gmra.mrb[0].mxu0 %v4487
      %v4682 = vpop.f32.mrb[0].mxu0
      %v4683 = vadd.f32 0.0, %v4682
      %v4684 = vpop.f32.mrb[0].mxu0
      %4685 = vmatprep.mubr.f32.mxu0 0.0
      %4686 = vmatmul.mubr.f32.gmra.mrb[0].mxu0 %v4490
      %v4687 = vpop.f32.mrb[0].mxu0
      %v4688 = vadd.f32 0.0, %v4687
      %v4689 = vpop.f32.mrb[0].mxu0
      %4690 = vmatprep.mubr.f32.mxu0 0.0
      %4691 = vmatmul.mubr.f32.gmra.mrb[0].mxu0 %v4493
      %v4692 = vpop.f32.mrb[0].mxu0
      %v4693 = vadd.f32 0.0, %v4692
      %v4694 = vpop.f32.mrb[0].mxu0
      %4695 = vmatprep.mubr.f32.mxu0 0.0
      %4696 = vmatmul.mubr.f32.gmra.mrb[0].mxu0 %v4496
      %v4697 = vpop.f32.mrb[0].mxu0
      %v4698 = vadd.f32 0.0, %v4697
      %v4699 = vpop.f32.mrb[0].mxu0
      %4700 = vmatprep.mubr.f32.mxu0 0.0
      %4701 = vmatmul.mubr.f32.gmra.mrb[0].mxu0 %v4499
      %v4702 = vpop.f32.mrb[0].mxu0
      %v4703 = vadd.f32 0.0, %v4702
      %v4704 = vpop.f32.mrb[0].mxu0
      %4705 = vmatprep.mubr.f32.mxu0 0.0
      %4706 = vmatmul.mubr.f32.gmra.mrb[0].mxu0 %v4502
      %v4707 = vpop.f32.mrb[0].mxu0
      %v4708 = vadd.f32 0.0, %v4707
      %v4709 = vpop.f32.mrb[0].mxu0
      %4710 = vmatprep.mubr.f32.mxu0 0.0
      %4711 = vmatmul.mubr.f32.gmra.mrb[0].mxu0 %v4505
      %v4712 = vpop.f32.mrb[0].mxu0
      %v4713 = vadd.f32 0.0, %v4712
      %v4714 = vpop.f32.mrb[0].mxu0
      %4715 = vmatprep.mubr.f32.mxu0 0.0
      %4716 = vmatmul.mubr.f32.gmra.mrb[0].mxu0 %v4508
      %v4717 = vpop.f32.mrb[0].mxu0
      %v4718 = vadd.f32 0.0, %v4717
      %v4719 = vpop.f32.mrb[0].mxu0
      %4720 = vmatprep.mubr.f32.mxu0 0.0
      %4721 = vmatmul.mubr.f32.gmra.mrb[0].mxu0 %v4511
      %v4722 = vpop.f32.mrb[0].mxu0
      %v4723 = vadd.f32 0.0, %v4722
      %v4724 = vpop.f32.mrb[0].mxu0
      %4725 = vmatprep.mubr.f32.mxu0 0.0
      %4726 = vmatmul.mubr.f32.gmra.mrb[0].mxu0 %v4514
      %v4727 = vpop.f32.mrb[0].mxu0
      %v4728 = vadd.f32 0.0, %v4727
      %v4729 = vpop.f32.mrb[0].mxu0
      %4730 = vmatprep.mubr.f32.mxu0 0.0
      %4731 = vmatmul.mubr.f32.gmra.mrb[0].mxu0 %v4517
      %v4732 = vpop.f32.mrb[0].mxu0
      %v4733 = vadd.f32 0.0, %v4732
      %v4734 = vpop.f32.mrb[0].mxu0
      %4735 = vmatprep.mubr.f32.mxu0 0.0
      %4736 = vmatmul.mubr.f32.gmra.mrb[0].mxu0 %v4520
      %v4737 = vpop.f32.mrb[0].mxu0
      %v4738 = vadd.f32 0.0, %v4737
      %v4739 = vpop.f32.mrb[0].mxu0
      %4740 = vmatprep.mubr.f32.mxu0 0.0
      %4741 = vmatmul.mubr.f32.gmra.mrb[0].mxu0 %v4523
      %v4742 = vpop.f32.mrb[0].mxu0
      %v4743 = vadd.f32 0.0, %v4742
      %v4744 = vpop.f32.mrb[0].mxu0
      %4745 = vmatprep.mubr.f32.mxu0 0.0
      %4746 = vmatmul.mubr.f32.gmra.mrb[0].mxu0 %v4526
      %v4747 = vpop.f32.mrb[0].mxu0
      %v4748 = vadd.f32 0.0, %v4747
      %v4749 = vpop.f32.mrb[0].mxu0
      %4750 = vmatprep.mubr.f32.mxu0 0.0
      %4751 = vmatmul.mubr.f32.gmra.mrb[0].mxu0 %v4529
      %v4752 = vpop.f32.mrb[0].mxu0
      %v4753 = vadd.f32 0.0, %v4752
      %v4754 = vpop.f32.mrb[0].mxu0
      %4755 = vdwg.mxu0
      %v4756 = vadd.f32 %v4367, %v4598
      %v4757 = vadd.f32 %v4368, %v4603
      %v4758 = vadd.f32 %v4369, %v4608
      %v4759 = vadd.f32 %v4370, %v4613
      %v4760 = vadd.f32 %v4371, %v4618
      %v4761 = vadd.f32 %v4372, %v4623
      %v4762 = vadd.f32 %v4373, %v4628
      %v4763 = vadd.f32 %v4374, %v4633
      %v4764 = vadd.f32 %v4375, %v4638
      %v4765 = vadd.f32 %v4376, %v4643
      %v4766 = vadd.f32 %v4377, %v4648
      %v4767 = vadd.f32 %v4378, %v4653
      %v4768 = vadd.f32 %v4379, %v4658
      %v4769 = vadd.f32 %v4380, %v4663
      %v4770 = vadd.f32 %v4381, %v4668
      %v4771 = vadd.f32 %v4382, %v4673
      %v4772 = vadd.f32 %v4383, %v4678
      %v4773 = vadd.f32 %v4384, %v4683
      %v4774 = vadd.f32 %v4385, %v4688
      %v4775 = vadd.f32 %v4386, %v4693
      %v4776 = vadd.f32 %v4387, %v4698
      %v4777 = vadd.f32 %v4388, %v4703
      %v4778 = vadd.f32 %v4389, %v4708
      %v4779 = vadd.f32 %v4390, %v4713
      %v4780 = vadd.f32 %v4391, %v4718
      %v4781 = vadd.f32 %v4392, %v4723
      %v4782 = vadd.f32 %v4393, %v4728
      %v4783 = vadd.f32 %v4394, %v4733
      %v4784 = vadd.f32 %v4395, %v4738
      %v4785 = vadd.f32 %v4396, %v4743
      %v4786 = vadd.f32 %v4397, %v4748
      %v4787 = vadd.f32 %v4398, %v4753
      %4788 = vxpose.xlu0.b32.start [1/16] %v4756, 128
      %4789 = vxpose.xlu0.b32.cont [2/16] %v4757, 128
      %4790 = vxpose.xlu0.b32.cont [3/16] %v4758, 128
      %4791 = vxpose.xlu0.b32.cont [4/16] %v4759, 128
      %4792 = vxpose.xlu0.b32.cont [5/16] %v4760, 128
      %4793 = vxpose.xlu0.b32.cont [6/16] %v4761, 128
      %4794 = vxpose.xlu0.b32.cont [7/16] %v4762, 128
      %4795 = vxpose.xlu0.b32.cont [8/16] %v4763, 128
      %4796 = vxpose.xlu0.b32.cont [9/16] %v4764, 128
      %4797 = vxpose.xlu0.b32.cont [10/16] %v4765, 128
      %4798 = vxpose.xlu0.b32.cont [11/16] %v4766, 128
      %4799 = vxpose.xlu0.b32.cont [12/16] %v4767, 128
      %4800 = vxpose.xlu0.b32.cont [13/16] %v4768, 128
      %4801 = vxpose.xlu0.b32.cont [14/16] %v4769, 128
      %4802 = vxpose.xlu0.b32.cont [15/16] %v4770, 128
      %4803 = vxpose.xlu0.b32.end [16/16] %v4771, 128
      %v4804 = vpop.trf.xlu0
      %v4805 = vpop.trf.xlu0
      %v4806 = vpop.trf.xlu0
      %v4807 = vpop.trf.xlu0
      %v4808 = vpop.trf.xlu0
      %v4809 = vpop.trf.xlu0
      %v4810 = vpop.trf.xlu0
      %v4811 = vpop.trf.xlu0
      %v4812 = vpop.trf.xlu0
      %v4813 = vpop.trf.xlu0
      %v4814 = vpop.trf.xlu0
      %v4815 = vpop.trf.xlu0
      %v4816 = vpop.trf.xlu0
      %v4817 = vpop.trf.xlu0
      %v4818 = vpop.trf.xlu0
      %v4819 = vpop.trf.xlu0
      %4820 = vxpose.xlu0.b32.start [1/16] %v4772, 128
      %4821 = vxpose.xlu0.b32.cont [2/16] %v4773, 128
      %4822 = vxpose.xlu0.b32.cont [3/16] %v4774, 128
      %4823 = vxpose.xlu0.b32.cont [4/16] %v4775, 128
      %4824 = vxpose.xlu0.b32.cont [5/16] %v4776, 128
      %4825 = vxpose.xlu0.b32.cont [6/16] %v4777, 128
      %4826 = vxpose.xlu0.b32.cont [7/16] %v4778, 128
      %4827 = vxpose.xlu0.b32.cont [8/16] %v4779, 128
      %4828 = vxpose.xlu0.b32.cont [9/16] %v4780, 128
      %4829 = vxpose.xlu0.b32.cont [10/16] %v4781, 128
      %4830 = vxpose.xlu0.b32.cont [11/16] %v4782, 128
      %4831 = vxpose.xlu0.b32.cont [12/16] %v4783, 128
      %4832 = vxpose.xlu0.b32.cont [13/16] %v4784, 128
      %4833 = vxpose.xlu0.b32.cont [14/16] %v4785, 128
      %4834 = vxpose.xlu0.b32.cont [15/16] %v4786, 128
      %4835 = vxpose.xlu0.b32.end [16/16] %v4787, 128
      %v4836 = vpop.trf.xlu0
      %v4837 = vpop.trf.xlu0
      %v4838 = vpop.trf.xlu0
      %v4839 = vpop.trf.xlu0
      %v4840 = vpop.trf.xlu0
      %v4841 = vpop.trf.xlu0
      %v4842 = vpop.trf.xlu0
      %v4843 = vpop.trf.xlu0
      %v4844 = vpop.trf.xlu0
      %v4845 = vpop.trf.xlu0
      %v4846 = vpop.trf.xlu0
      %v4847 = vpop.trf.xlu0
      %v4848 = vpop.trf.xlu0
      %v4849 = vpop.trf.xlu0
      %v4850 = vpop.trf.xlu0
      %v4851 = vpop.trf.xlu0
      %v4853 = vrot.slane %v4804, 7
      %4854 = vrot.lane.b32.xlu0 %v4853, 96
      %v4855 = vpop.permute.xlu0 %4854
      %v4857 = vrot.slane %v4804, 6
      %4858 = vrot.lane.b32.xlu0 %v4857, 64
      %v4859 = vpop.permute.xlu0 %4858
      %v4861 = vrot.slane %v4804, 5
      %4862 = vrot.lane.b32.xlu0 %v4861, 32
      %v4863 = vpop.permute.xlu0 %4862
      %v4866 = vrot.slane %v4836, 4
      %v4868 = vrot.slane %v4836, 3
      %4869 = vrot.lane.b32.xlu0 %v4868, 96
      %v4870 = vpop.permute.xlu0 %4869
      %v4872 = vrot.slane %v4836, 2
      %4873 = vrot.lane.b32.xlu0 %v4872, 64
      %v4874 = vpop.permute.xlu0 %4873
      %v4876 = vrot.slane %v4836, 1
      %4877 = vrot.lane.b32.xlu0 %v4876, 32
      %v4878 = vpop.permute.xlu0 %4877
      %v4880 = vrot.slane %v4804, 1
      %4882 = vrot.lane.b32.xlu0 %v4804, 96
      %v4883 = vpop.permute.xlu0 %4882
      %4885 = vrot.lane.b32.xlu0 %v4853, 64
      %v4886 = vpop.permute.xlu0 %4885
      %4888 = vrot.lane.b32.xlu0 %v4857, 32
      %v4889 = vpop.permute.xlu0 %4888
      %v4891 = vrot.slane %v4836, 5
      %4893 = vrot.lane.b32.xlu0 %v4866, 96
      %v4894 = vpop.permute.xlu0 %4893
      %4896 = vrot.lane.b32.xlu0 %v4868, 64
      %v4897 = vpop.permute.xlu0 %4896
      %4899 = vrot.lane.b32.xlu0 %v4872, 32
      %v4900 = vpop.permute.xlu0 %4899
      %vm4902 = vcmask 1040384
      %v4903 = vsel %vm4902, %v4804, %v4855
      %vm4904 = vcmask 1041408
      %v4905 = vsel %vm4904, %v4903, %v4859
      %vm4906 = vcmask 1042432
      %v4907 = vsel %vm4906, %v4905, %v4863
      %vm4908 = vcmask 1043456
      %v4909 = vsel %vm4908, %v4907, %v4866
      %vm4910 = vcmask 1044480
      %v4911 = vsel %vm4910, %v4909, %v4870
      %vm4912 = vcmask 1045504
      %v4913 = vsel %vm4912, %v4911, %v4874
      %vm4914 = vcmask 1046528
      %v4915 = vsel %vm4914, %v4913, %v4878
      %v4916 = vsel %vm4902, %v4880, %v4883
      %v4917 = vsel %vm4904, %v4916, %v4886
      %v4918 = vsel %vm4906, %v4917, %v4889
      %v4919 = vsel %vm4908, %v4918, %v4891
      %v4920 = vsel %vm4910, %v4919, %v4894
      %v4921 = vsel %vm4912, %v4920, %v4897
      %v4922 = vsel %vm4914, %v4921, %v4900
      %v4923 = vrot.slane %v4804, 2
      %4925 = vrot.lane.b32.xlu0 %v4880, 96
      %v4926 = vpop.permute.xlu0 %4925
      %4928 = vrot.lane.b32.xlu0 %v4804, 64
      %v4929 = vpop.permute.xlu0 %4928
      %4931 = vrot.lane.b32.xlu0 %v4853, 32
      %v4932 = vpop.permute.xlu0 %4931
      %v4934 = vrot.slane %v4836, 6
      %4936 = vrot.lane.b32.xlu0 %v4891, 96
      %v4937 = vpop.permute.xlu0 %4936
      %4939 = vrot.lane.b32.xlu0 %v4866, 64
      %v4940 = vpop.permute.xlu0 %4939
      %4942 = vrot.lane.b32.xlu0 %v4868, 32
      %v4943 = vpop.permute.xlu0 %4942
      %v4945 = vsel %vm4902, %v4923, %v4926
      %v4946 = vsel %vm4904, %v4945, %v4929
      %v4947 = vsel %vm4906, %v4946, %v4932
      %v4948 = vsel %vm4908, %v4947, %v4934
      %v4949 = vsel %vm4910, %v4948, %v4937
      %v4950 = vsel %vm4912, %v4949, %v4940
      %v4951 = vsel %vm4914, %v4950, %v4943
      %v4952 = vld [vmem:[%s5] sm:$0xff]
      %v4953 = vld [vmem:[%s5 + $0x8] sm:$0xff]
      %v4954 = vld [vmem:[%s5 + $0x10] sm:$0xff]
      %v4955 = vld [vmem:[%s5 + $0x18] sm:$0xff]
      %v4956 = vld [vmem:[%s6] sm:$0x1]
      %v4958 = vlaneseq
      %v4959 = vshrl.u32 %v4958, 7
      %v4960 = vsub.s32 0, %v4959
      %v4961 = vrot.slane %v4956, %v4960
      %v4964 = vsel %vm322, %v4915, 0
      %v4967 = vsel %vm322, %v4922, 0
      %v4970 = vsel %vm322, %v4951, 0
      %4972 = vmatprep.subr.mxu0 0.0
      %4973 = vmatpush1.msra.mxu0 %v4952
      %4974 = vmatprep.subr.mxu0 0.0
      %4975 = vmatpush1.msra.mxu0 %v4953
      %4976 = vmatprep.subr.mxu0 0.0
      %4977 = vmatpush1.msra.mxu0 %v4954
      %4978 = vmatprep.subr.mxu0 0.0
      %4979 = vmatpush1.msra.mxu0 %v4955
      %4980 = vmatprep.subr.mxu0 0.0
      %4981 = vmatpush1.msra.mxu0 0.0
      %4982 = vmatprep.subr.mxu0 0.0
      %4983 = vmatpush1.msra.mxu0 0.0
      %4984 = vmatprep.subr.mxu0 0.0
      %4985 = vmatpush1.msra.mxu0 0.0
      %4986 = vmatprep.subr.mxu0 0.0
      %4987 = vmatpush1.msra.mxu0 0.0
      %4988 = vmatprep.subr.mxu0 0.0
      %4989 = vmatpush1.msra.mxu0 0.0
      %4990 = vmatprep.subr.mxu0 0.0
      %4991 = vmatpush1.msra.mxu0 0.0
      %4992 = vmatprep.subr.mxu0 0.0
      %4993 = vmatpush1.msra.mxu0 0.0
      %4994 = vmatprep.subr.mxu0 0.0
      %4995 = vmatpush1.msra.mxu0 0.0
      %4996 = vmatprep.subr.mxu0 0.0
      %4997 = vmatpush1.msra.mxu0 0.0
      %4998 = vmatprep.subr.mxu0 0.0
      %4999 = vmatpush1.msra.mxu0 0.0
      %5000 = vmatprep.subr.mxu0 0.0
      %5001 = vmatpush1.msra.mxu0 0.0
      %5002 = vmatprep.subr.mxu0 0.0
      %5003 = vmatpush1.msra.mxu0 0.0
      %5004 = vmatprep.subr.mxu0 0.0
      %5005 = vmatpush1.msra.mxu0 0.0
      %5006 = vmatprep.subr.mxu0 0.0
      %5007 = vmatpush1.msra.mxu0 0.0
      %5008 = vmatprep.subr.mxu0 0.0
      %5009 = vmatpush1.msra.mxu0 0.0
      %5010 = vmatprep.subr.mxu0 0.0
      %5011 = vmatpush1.msra.mxu0 0.0
      %5012 = vmatprep.subr.mxu0 0.0
      %5013 = vmatpush1.msra.mxu0 0.0
      %5014 = vmatprep.subr.mxu0 0.0
      %5015 = vmatpush1.msra.mxu0 0.0
      %5016 = vmatprep.subr.mxu0 0.0
      %5017 = vmatpush1.msra.mxu0 0.0
      %5018 = vmatprep.subr.mxu0 0.0
      %5019 = vmatpush1.msra.mxu0 0.0
      %5020 = vmatprep.subr.mxu0 0.0
      %5021 = vmatpush1.msra.mxu0 0.0
      %5022 = vmatprep.subr.mxu0 0.0
      %5023 = vmatpush1.msra.mxu0 0.0
      %5024 = vmatprep.subr.mxu0 0.0
      %5025 = vmatpush1.msra.mxu0 0.0
      %5026 = vmatprep.subr.mxu0 0.0
      %5027 = vmatpush1.msra.mxu0 0.0
      %5028 = vmatprep.subr.mxu0 0.0
      %5029 = vmatpush1.msra.mxu0 0.0
      %5030 = vmatprep.subr.mxu0 0.0
      %5031 = vmatpush1.msra.mxu0 0.0
      %5032 = vmatprep.subr.mxu0 0.0
      %5033 = vmatpush1.msra.mxu0 0.0
      %5034 = vmatprep.subr.mxu0 0.0
      %5035 = vmatpush1.msra.mxu0 0.0
      %5036 = vmatprep.mubr.f32.mxu0 0.0
      %5037 = vmatmul.mubr.f32.gmra.mrb[0].mxu0 %v4964
      %v5038 = vpop.f32.mrb[0].mxu0
      %v5039 = vadd.f32 %v4961, %v5038
      %v5040 = vpop.f32.mrb[0].mxu0
      %5041 = vmatprep.mubr.f32.mxu0 0.0
      %5042 = vmatmul.mubr.f32.gmra.mrb[0].mxu0 %v4967
      %v5043 = vpop.f32.mrb[0].mxu0
      %v5044 = vadd.f32 %v4961, %v5043
      %v5045 = vpop.f32.mrb[0].mxu0
      %5046 = vmatprep.mubr.f32.mxu0 0.0
      %5047 = vmatmul.mubr.f32.gmra.mrb[0].mxu0 %v4970
      %v5048 = vpop.f32.mrb[0].mxu0
      %v5049 = vadd.f32 %v4961, %v5048
      %v5050 = vpop.f32.mrb[0].mxu0
      %5051 = vdwg.mxu0
      %v5052 = vsel %vm322, %v4915, 0.0
      %v5053 = vsel %vm322, %v4922, 0.0
      %v5054 = vsel %vm322, %v4951, 0.0
      %5055 = vst [vmem:[%s278] sm:$0xff] %v5052
      %5056 = vst [vmem:[%s278 + $0x8] sm:$0xff] %v5053
      %5057 = vst [vmem:[%s278 + $0x10] sm:$0xff] %v5054
      %5058 = vst [vmem:[%s278 + $0x18] sm:$0xff] %v5039
      %5059 = vst [vmem:[%s278 + $0x20] sm:$0xff] %v5044
      %5060 = vst [vmem:[%s278 + $0x28] sm:$0xff] %v5049
      %p5061 = scmp.lt.s32.totalorder %s18, 1
      %s5062 = scalar_select %p5061, %s18, 1
      %s5063 = smul.addr %s5062, 6
      %s5064 = smul.addr %s5063, 8
      %s5065 = scalar_lea.vmem %s7, %s5064
      // Predicated region
      $region49: #{forward.1} parent=47 // pred_check
        %p5066 = pneg %p188
      $region50: #{forward.1} parent=47 // pred_check_branch
        %5068 = sbr.rel (%p5066) target = $region52
      $region51: #{forward.1} parent=47 // pred_region
        _
      $region52: #{forward.1} parent=47 // pred_fallthru
        _
    $region48: #{forward.1} parent=5 // pred_fallthru
      _
    %p5069 = scmp.le.s32.totalorder 2, %s13
    // Predicated region
    $region53: #{forward.1} parent=5 // pred_check
      %p5070 = pneg %p5069
    $region54: #{forward.1} parent=5 // pred_check_branch
      %5072 = sbr.rel (%p5070) target = $region56
    $region55: #{forward.1} parent=5 // pred_region
      %s5073 = ssub.s32 %s13, 2
      // Predicated region
      $region57: #{forward.1} parent=55 // pred_check
        %p5074 = pneg %p194
      $region58: #{forward.1} parent=55 // pred_check_branch
        %5076 = sbr.rel (%p5074) target = $region60
      $region59: #{forward.1} parent=55 // pred_region
        %p5077 = scmp.lt.s32.totalorder %s19, 1
        %s5078 = scalar_select %p5077, %s19, 1
        %s5079 = smul.addr %s5078, 6
        %s5080 = smul.addr %s5079, 8
        %s5081 = scalar_lea.vmem %s7, %s5080
      $region60: #{forward.1} parent=55 // pred_fallthru
        _
    $region56: #{forward.1} parent=5 // pred_fallthru
      _
  $region6: #{forward.1} parent=0 // loop_footer
    %s17 = sadd.s32 1, %s13
  $region7: #{forward.1} parent=0 // loop_footer_branch
    %12 = sbr.rel target = $region3
  $region8: #{forward.1} parent=0 // loop_exit
    _

</llo_original>
